<compile_context>
chip_gen: v7x
topology: tpu7x:2x2x1
jax: 0.10.0
libtpu: 0.0.40
codegen_flags: <defaults>
</compile_context>

<pallas_src>
import functools

import jax
import jax.numpy as jnp
from jax.experimental import pallas as pl
from jax.experimental.pallas import tpu as pltpu

_BN_EPS = 1e-5
_VMEM_LIMIT = 32 * 1024 * 1024  # safe scoped-VMEM budget on v5e / v6e / v7x


def _row_tile(h):
    return 8 if h % 8 == 0 else h


# ----------------------------------------------------------------------------
# Kernels
# ----------------------------------------------------------------------------
def _bnrelu_conv1x1_kernel(x_ref, scale_ref, bias_ref, w_ref, b_ref, o_ref,
                           *stats_refs):
    # x_ref: (1, TH, W, Cin) (f32 or bf16); scale/bias: (1, Cin) f32
    # w_ref: (Cin, Cout) bf16; b_ref: (1, Cout) f32; o_ref: (1, TH, W, Cout)
    # optional stats_refs[0]: (1, 1, 2, Cout) f32 -> per-block [sum, sumsq]
    _, TH, W, Cin = x_ref.shape
    Cout = o_ref.shape[3]
    # BN (pre-folded affine) + ReLU in f32, then cast to bf16 for the MXU.
    a = jnp.maximum(x_ref[0].astype(jnp.float32) * scale_ref[0] + bias_ref[0],
                    0.0)
    a2 = a.reshape(TH * W, Cin).astype(jnp.bfloat16)
    y = jnp.dot(a2, w_ref[...], preferred_element_type=jnp.float32) + b_ref[0]
    o_ref[0] = y.reshape(TH, W, Cout).astype(o_ref.dtype)
    if stats_refs:
        st = stats_refs[0]
        s_sum = jnp.sum(y, axis=0, keepdims=True)
        s_sq = jnp.sum(y * y, axis=0, keepdims=True)
        st[0, 0] = jnp.concatenate([s_sum, s_sq], axis=0)


def _bnrelu_conv3x3_kernel(x_ref, scale_ref, bias_ref, w_ref, b_ref, o_ref,
                           stats_ref, *, row_tile):
    # x_ref: (1, H, W, C); w_ref: (3, 3*C, Cout) bf16 (kx folded into K)
    # o_ref: (1, H, W, Cout); stats_ref: (1, 2, Cout) f32
    _, H, W, C = x_ref.shape
    Cout = o_ref.shape[3]
    TH = row_tile
    scale = scale_ref[0]
    bias = bias_ref[0]
    s_sum = jnp.zeros((1, Cout), jnp.float32)
    s_sq = jnp.zeros((1, Cout), jnp.float32)

    # Static loop over row chunks; each chunk loads only its rows (+1 halo row
    # each side), does 3 dots with K = 3*C, and stores straight to o_ref.
    for r0 in range(0, H, TH):
        lo = max(r0 - 1, 0)
        hi = min(r0 + TH + 1, H)
        xa = x_ref[0, lo:hi].astype(jnp.float32)            # (rows, W, C)
        av = jnp.maximum(xa * scale + bias, 0.0)            # BN + ReLU (f32)
        # Zero halo rows at the image border (pad happens AFTER BN+ReLU, like
        # PyTorch's conv padding of the ReLU output).
        if r0 == 0:
            av = jnp.concatenate(
                [jnp.zeros((1, W, C), jnp.float32), av], axis=0)
        if r0 + TH == H:
            av = jnp.concatenate(
                [av, jnp.zeros((1, W, C), jnp.float32)], axis=0)
        # av: (TH + 2, W, C)

        # W-shifted taps via XLU roll + boundary mask (no padded scratch).
        col = jax.lax.broadcasted_iota(jnp.int32, av.shape, 1)
        a_l = jnp.where(col == 0, 0.0, pltpu.roll(av, shift=1, axis=1))
        a_r = jnp.where(col == W - 1, 0.0,
                        pltpu.roll(av, shift=W - 1, axis=1))
        # Fold the 3 kx taps into K: (TH+2, W, 3*C), bf16 for the MXU.
        cat = jnp.concatenate([a_l, av, a_r], axis=-1).astype(jnp.bfloat16)

        acc = jnp.zeros((TH * W, Cout), jnp.float32)
        for ky in range(3):
            win = cat[ky:ky + TH].reshape(TH * W, 3 * C)
            acc = acc + jnp.dot(win, w_ref[ky],
                                preferred_element_type=jnp.float32)
        y = acc + b_ref[0]
        o_ref[0, r0:r0 + TH] = y.reshape(TH, W, Cout).astype(o_ref.dtype)
        s_sum = s_sum + jnp.sum(y, axis=0, keepdims=True)
        s_sq = s_sq + jnp.sum(y * y, axis=0, keepdims=True)

    stats_ref[0] = jnp.concatenate([s_sum, s_sq], axis=0)


# ----------------------------------------------------------------------------
# Wrappers (BlockSpecs, grids, BN moment folding)
# ----------------------------------------------------------------------------
def _fold_moments(total_sum, total_sq, count, gamma, beta, eps=_BN_EPS):
    mean = total_sum / count
    var = jnp.maximum(total_sq / count - mean * mean, 0.0)  # biased variance
    scale = gamma * jax.lax.rsqrt(var + eps)
    bias = beta - mean * scale
    return scale.reshape(1, -1).astype(jnp.float32), \
        bias.reshape(1, -1).astype(jnp.float32)


def _bn_relu_conv1x1(x, scale, bias, w_bf16, b, *, out_dtype, emit_stats):
    N, H, W, Cin = x.shape
    Cout = w_bf16.shape[1]
    TH = _row_tile(H)
    GH = H // TH

    out_spec = pl.BlockSpec((1, TH, W, Cout), lambda n, h: (n, h, 0, 0))
    out_shape = jax.ShapeDtypeStruct((N, H, W, Cout), out_dtype)
    if emit_stats:
        out_shape = (out_shape,
                     jax.ShapeDtypeStruct((N, GH, 2, Cout), jnp.float32))
        out_spec = (out_spec,
                    pl.BlockSpec((1, 1, 2, Cout), lambda n, h: (n, h, 0, 0)))

    res = pl.pallas_call(
        _bnrelu_conv1x1_kernel,
        out_shape=out_shape,
        grid=(N, GH),
        in_specs=[
            pl.BlockSpec((1, TH, W, Cin), lambda n, h: (n, h, 0, 0)),
            pl.BlockSpec((1, Cin), lambda n, h: (0, 0)),
            pl.BlockSpec((1, Cin), lambda n, h: (0, 0)),
            pl.BlockSpec((Cin, Cout), lambda n, h: (0, 0)),
            pl.BlockSpec((1, Cout), lambda n, h: (0, 0)),
        ],
        out_specs=out_spec,
        compiler_params=pltpu.CompilerParams(
            dimension_semantics=("parallel", "parallel"),
            vmem_limit_bytes=_VMEM_LIMIT),
    )(x, scale, bias, w_bf16, b.reshape(1, -1))
    return res


def _bn_relu_conv3x3(x, scale, bias, w3_bf16, b, *, out_dtype):
    N, H, W, Cin = x.shape
    Cout = w3_bf16.shape[2]
    TH = _row_tile(H)

    kernel = functools.partial(_bnrelu_conv3x3_kernel, row_tile=TH)
    return pl.pallas_call(
        kernel,
        out_shape=(jax.ShapeDtypeStruct((N, H, W, Cout), out_dtype),
                   jax.ShapeDtypeStruct((N, 2, Cout), jnp.float32)),
        grid=(N,),
        in_specs=[
            pl.BlockSpec((1, H, W, Cin), lambda n: (n, 0, 0, 0)),
            pl.BlockSpec((1, Cin), lambda n: (0, 0)),
            pl.BlockSpec((1, Cin), lambda n: (0, 0)),
            pl.BlockSpec((3, 3 * Cin, Cout), lambda n: (0, 0, 0)),
            pl.BlockSpec((1, Cout), lambda n: (0, 0)),
        ],
        out_specs=(pl.BlockSpec((1, H, W, Cout), lambda n: (n, 0, 0, 0)),
                   pl.BlockSpec((1, 2, Cout), lambda n: (n, 0, 0))),
        compiler_params=pltpu.CompilerParams(
            dimension_semantics=("parallel",),
            vmem_limit_bytes=_VMEM_LIMIT),
    )(x, scale, bias, w3_bf16, b.reshape(1, -1))


def conv_block_forward_nhwc(x, params, *, inter_dtype=jnp.bfloat16):
    """NHWC end-to-end ConvBlock forward (intermediates stay NHWC/bf16)."""
    N, H, W, _ = x.shape
    count = jnp.float32(N * H * W)
    mid = params["conv2_w"].shape[2]

    # Stage 1: stats of the original input (unavoidable extra pass, as in BN).
    s1 = jnp.sum(x, axis=(0, 1, 2))
    q1 = jnp.sum(jnp.square(x), axis=(0, 1, 2))
    sc1, bi1 = _fold_moments(s1, q1, count, params["bn1_g"], params["bn1_b"])
    y1, st1 = _bn_relu_conv1x1(
        x, sc1, bi1, params["conv1_w"].astype(jnp.bfloat16),
        params["conv1_b"], out_dtype=inter_dtype, emit_stats=True)

    # Stage 2: BN stats came fused out of stage 1 (no HBM re-read of y1).
    tot1 = jnp.sum(st1, axis=(0, 1))                      # (2, mid)
    sc2, bi2 = _fold_moments(tot1[0], tot1[1], count,
                             params["bn2_g"], params["bn2_b"])
    w2 = params["conv2_w"].reshape(3, 3 * mid, mid).astype(jnp.bfloat16)
    y2, st2 = _bn_relu_conv3x3(y1, sc2, bi2, w2, params["conv2_b"],
                               out_dtype=inter_dtype)

    # Stage 3: BN stats fused out of stage 2.
    tot2 = jnp.sum(st2, axis=0)                           # (2, mid)
    sc3, bi3 = _fold_moments(tot2[0], tot2[1], count,
                             params["bn3_g"], params["bn3_b"])
    y3 = _bn_relu_conv1x1(
        y2, sc3, bi3, params["conv3_w"].astype(jnp.bfloat16),
        params["conv3_b"], out_dtype=jnp.float32, emit_stats=False)
    return y3


@jax.jit
def conv_block_forward(x_nchw, params):
    # Module-facing NCHW wrapper (PyTorch layout). Prefer conv_block_forward_nhwc
    # in an NHWC pipeline to skip these two transposes entirely.
    x = jnp.transpose(x_nchw, (0, 2, 3, 1))
    y = conv_block_forward_nhwc(x, params)
    return jnp.transpose(y, (0, 3, 1, 2))


# ----------------------------------------------------------------------------
# Pure-JAX reference (mirrors the same bf16 cast points) + params
# ----------------------------------------------------------------------------
def _reference_forward_nhwc(x, params, inter_dtype=jnp.bfloat16, eps=_BN_EPS):
    def moments(h):
        m = jnp.mean(h, axis=(0, 1, 2))
        v = jnp.maximum(jnp.mean(jnp.square(h), axis=(0, 1, 2)) - m * m, 0.0)
        return m, v

    def bn_relu(h_stored, mean, var, gamma, beta):
        scale = gamma * jax.lax.rsqrt(var + eps)
        bias = beta - mean * scale
        return jnp.maximum(h_stored.astype(jnp.float32) * scale + bias, 0.0)

    def conv1x1(a, w, b):
        n, hh, ww, c = a.shape
        y = jnp.dot(a.reshape(-1, c).astype(jnp.bfloat16),
                    w.astype(jnp.bfloat16),
                    preferred_element_type=jnp.float32)
        return y.reshape(n, hh, ww, -1) + b

    def conv3x3(a, w, b):
        y = jax.lax.conv_general_dilated(
            a.astype(jnp.bfloat16), w.astype(jnp.bfloat16),
            window_strides=(1, 1), padding=((1, 1), (1, 1)),
            dimension_numbers=("NHWC", "HWIO", "NHWC"),
            preferred_element_type=jnp.float32)
        return y + b

    m1, v1 = moments(x)
    a1 = bn_relu(x, m1, v1, params["bn1_g"], params["bn1_b"])
    y1 = conv1x1(a1, params["conv1_w"], params["conv1_b"])
    m2, v2 = moments(y1)
    a2 = bn_relu(y1.astype(inter_dtype), m2, v2,
                 params["bn2_g"], params["bn2_b"])
    y2 = conv3x3(a2, params["conv2_w"], params["conv2_b"])
    m3, v3 = moments(y2)
    a3 = bn_relu(y2.astype(inter_dtype), m3, v3,
                 params["bn3_g"], params["bn3_b"])
    return conv1x1(a3, params["conv3_w"], params["conv3_b"])


def init_params(key, in_channels, out_channels):
    mid = out_channels // 2
    ks = jax.random.split(key, 12)
    return {
        "bn1_g": 1.0 + 0.1 * jax.random.normal(ks[0], (in_channels,), jnp.float32),
        "bn1_b": 0.1 * jax.random.normal(ks[1], (in_channels,), jnp.float32),
        "bn2_g": 1.0 + 0.1 * jax.random.normal(ks[2], (mid,), jnp.float32),
        "bn2_b": 0.1 * jax.random.normal(ks[3], (mid,), jnp.float32),
        "bn3_g": 1.0 + 0.1 * jax.random.normal(ks[4], (mid,), jnp.float32),
        "bn3_b": 0.1 * jax.random.normal(ks[5], (mid,), jnp.float32),
        # Conv weights stored kernel-ready: 1x1 as (Cin, Cout), 3x3 as HWIO.
        "conv1_w": 0.1 * jax.random.normal(ks[6], (in_channels, mid), jnp.float32),
        "conv1_b": 0.1 * jax.random.normal(ks[7], (mid,), jnp.float32),
        "conv2_w": 0.1 * jax.random.normal(ks[8], (3, 3, mid, mid), jnp.float32),
        "conv2_b": 0.1 * jax.random.normal(ks[9], (mid,), jnp.float32),
        "conv3_w": 0.1 * jax.random.normal(ks[10], (mid, out_channels), jnp.float32),
        "conv3_b": 0.1 * jax.random.normal(ks[11], (out_channels,), jnp.float32),
    }


if __name__ == "__main__":
    key = jax.random.PRNGKey(0)
    pkey, xkey = jax.random.split(key)

    N, inC, H, W = 2, 4, 16, 16
    outC = 8

    params = init_params(pkey, inC, outC)
    x = jax.random.normal(xkey, (N, inC, H, W), jnp.float32)

    y = jax.block_until_ready(conv_block_forward(x, params))

    assert y.shape == (N, outC, H, W), y.shape
    assert bool(jnp.all(jnp.isfinite(y)))

    # Correctness vs a pure-JAX reference that mirrors the same bf16 cast points.
    x_nhwc = jnp.transpose(x, (0, 2, 3, 1))
    y_ref = jnp.transpose(_reference_forward_nhwc(x_nhwc, params), (0, 3, 1, 2))
    max_err = float(jnp.max(jnp.abs(y - y_ref)))
    assert bool(jnp.allclose(y, y_ref, atol=5e-2, rtol=5e-2)), max_err

    print("KERNEL_OK")
</pallas_src>

<mosaic_0001>
module attributes {stable_mosaic.version = 11 : i64} {
  func.func @_bnrelu_conv1x1_kernel(%arg0: i32, %arg1: i32, %arg2: memref<1x8x16x4xf32, #tpu.memory_space<vmem>>, %arg3: memref<1x4xf32, #tpu.memory_space<vmem>>, %arg4: memref<1x4xf32, #tpu.memory_space<vmem>>, %arg5: memref<4x4xbf16, #tpu.memory_space<vmem>>, %arg6: memref<1x4xf32, #tpu.memory_space<vmem>>, %arg7: memref<1x8x16x4xbf16, #tpu.memory_space<vmem>>, %arg8: memref<1x1x2x4xf32, #tpu.memory_space<vmem>>) attributes {dimension_semantics = [#tpu.dimension_semantics<parallel>, #tpu.dimension_semantics<parallel>], iteration_bounds = array<i64: 2, 2>, scalar_prefetch = 0 : i64, scratch_operands = 0 : i64, tpu.core_type = #tpu.core_type<tc>, window_params = [{transform_indices = @transform_0, window_bounds = array<i64: 1, 8, 16, 4>}, {pipeline_mode = #tpu.pipeline_mode<synchronous>, transform_indices = @transform_1, window_bounds = array<i64: 1, 4>}, {pipeline_mode = #tpu.pipeline_mode<synchronous>, transform_indices = @transform_2, window_bounds = array<i64: 1, 4>}, {pipeline_mode = #tpu.pipeline_mode<synchronous>, transform_indices = @transform_3, window_bounds = array<i64: 4, 4>}, {pipeline_mode = #tpu.pipeline_mode<synchronous>, transform_indices = @transform_4, window_bounds = array<i64: 1, 4>}, {transform_indices = @transform_5, window_bounds = array<i64: 1, 8, 16, 4>}, {transform_indices = @transform_6, window_bounds = array<i64: 1, 1, 2, 4>}]} {
    %c0 = arith.constant 0 : index
    %c0_0 = arith.constant 0 : index
    %c0_1 = arith.constant 0 : index
    %c0_2 = arith.constant 0 : index
    %0 = vector.load %arg2[%c0, %c0_0, %c0_1, %c0_2] : memref<1x8x16x4xf32, #tpu.memory_space<vmem>>, vector<1x8x16x4xf32>
    %1 = vector.shape_cast %0 : vector<1x8x16x4xf32> to vector<8x16x4xf32>
    %c0_3 = arith.constant 0 : index
    %c0_4 = arith.constant 0 : index
    %2 = vector.load %arg3[%c0_3, %c0_4] : memref<1x4xf32, #tpu.memory_space<vmem>>, vector<1x4xf32>
    %3 = vector.shape_cast %2 : vector<1x4xf32> to vector<4xf32>
    %4 = vector.shape_cast %3 : vector<4xf32> to vector<1x1x4xf32>
    %5 = vector.broadcast %4 : vector<1x1x4xf32> to vector<8x16x4xf32>
    %6 = arith.mulf %1, %5 : vector<8x16x4xf32>
    %c0_5 = arith.constant 0 : index
    %c0_6 = arith.constant 0 : index
    %7 = vector.load %arg4[%c0_5, %c0_6] : memref<1x4xf32, #tpu.memory_space<vmem>>, vector<1x4xf32>
    %8 = vector.shape_cast %7 : vector<1x4xf32> to vector<4xf32>
    %9 = vector.shape_cast %8 : vector<4xf32> to vector<1x1x4xf32>
    %10 = vector.broadcast %9 : vector<1x1x4xf32> to vector<8x16x4xf32>
    %11 = arith.addf %6, %10 : vector<8x16x4xf32>
    %cst = arith.constant 0.000000e+00 : f32
    %12 = vector.broadcast %cst : f32 to vector<8x16x4xf32>
    %13 = arith.maximumf %11, %12 : vector<8x16x4xf32>
    %14 = vector.shape_cast %13 : vector<8x16x4xf32> to vector<128x4xf32>
    %15 = arith.truncf %14 : vector<128x4xf32> to vector<128x4xbf16>
    %c0_7 = arith.constant 0 : index
    %c0_8 = arith.constant 0 : index
    %16 = vector.load %arg5[%c0_7, %c0_8] : memref<4x4xbf16, #tpu.memory_space<vmem>>, vector<4x4xbf16>
    %cst_9 = arith.constant dense<0.000000e+00> : vector<128x4xf32>
    %17 = tpu.matmul %15, %16, %cst_9 {dimension_numbers = #tpu.dot_dimension_numbers<[1], [0], [0], [1], [0, 0, 1, 1], [], []>} : vector<128x4xbf16>, vector<4x4xbf16>, vector<128x4xf32> -> vector<128x4xf32>
    %c0_10 = arith.constant 0 : index
    %c0_11 = arith.constant 0 : index
    %18 = vector.load %arg6[%c0_10, %c0_11] : memref<1x4xf32, #tpu.memory_space<vmem>>, vector<1x4xf32>
    %19 = vector.shape_cast %18 : vector<1x4xf32> to vector<4xf32>
    %20 = vector.shape_cast %19 : vector<4xf32> to vector<1x4xf32>
    %21 = vector.broadcast %20 : vector<1x4xf32> to vector<128x4xf32>
    %22 = arith.addf %17, %21 : vector<128x4xf32>
    %23 = vector.shape_cast %22 : vector<128x4xf32> to vector<8x16x4xf32>
    %24 = arith.truncf %23 : vector<8x16x4xf32> to vector<8x16x4xbf16>
    %c0_12 = arith.constant 0 : index
    %c0_13 = arith.constant 0 : index
    %c0_14 = arith.constant 0 : index
    %c0_15 = arith.constant 0 : index
    %25 = vector.load %arg7[%c0_12, %c0_13, %c0_14, %c0_15] : memref<1x8x16x4xbf16, #tpu.memory_space<vmem>>, vector<1x8x16x4xbf16>
    %26 = vector.shape_cast %25 : vector<1x8x16x4xbf16> to vector<8x16x4xbf16>
    %27 = vector.shape_cast %24 : vector<8x16x4xbf16> to vector<1x8x16x4xbf16>
    tpu.vector_store %arg7[%c0_12, %c0_13, %c0_14, %c0_15], %27 {strides = array<i32>} : memref<1x8x16x4xbf16, #tpu.memory_space<vmem>>, vector<1x8x16x4xbf16>,
    %cst_16 = arith.constant dense<0.000000e+00> : vector<4xf32>
    %28 = vector.multi_reduction <add>, %22, %cst_16 [0] : vector<128x4xf32> to vector<4xf32>
    %29 = vector.shape_cast %28 : vector<4xf32> to vector<1x4xf32>
    %30 = arith.mulf %22, %22 : vector<128x4xf32>
    %cst_17 = arith.constant dense<0.000000e+00> : vector<4xf32>
    %31 = vector.multi_reduction <add>, %30, %cst_17 [0] : vector<128x4xf32> to vector<4xf32>
    %32 = vector.shape_cast %31 : vector<4xf32> to vector<1x4xf32>
    %33 = tpu.concatenate %29, %32 in 0 : vector<1x4xf32>, vector<1x4xf32> -> vector<2x4xf32>
    %c0_18 = arith.constant 0 : index
    %c0_19 = arith.constant 0 : index
    %c0_20 = arith.constant 0 : index
    %c0_21 = arith.constant 0 : index
    %34 = vector.load %arg8[%c0_18, %c0_19, %c0_20, %c0_21] : memref<1x1x2x4xf32, #tpu.memory_space<vmem>>, vector<1x1x2x4xf32>
    %35 = vector.shape_cast %34 : vector<1x1x2x4xf32> to vector<2x4xf32>
    %36 = vector.shape_cast %33 : vector<2x4xf32> to vector<1x1x2x4xf32>
    tpu.vector_store %arg8[%c0_18, %c0_19, %c0_20, %c0_21], %36 {strides = array<i32>} : memref<1x1x2x4xf32, #tpu.memory_space<vmem>>, vector<1x1x2x4xf32>,
    return
  }
  func.func @transform_0(%arg0: i32, %arg1: i32) -> (i32, i32, i32, i32) {
    %c0_i32 = arith.constant 0 : i32
    %c0_i32_0 = arith.constant 0 : i32
    %c0_i32_1 = arith.constant 0 : i32
    return %arg0, %arg1, %c0_i32, %c0_i32_0 : i32, i32, i32, i32
  }
  func.func @transform_1(%arg0: i32, %arg1: i32) -> (i32, i32) {
    %c0_i32 = arith.constant 0 : i32
    %c0_i32_0 = arith.constant 0 : i32
    %c0_i32_1 = arith.constant 0 : i32
    return %c0_i32, %c0_i32_0 : i32, i32
  }
  func.func @transform_2(%arg0: i32, %arg1: i32) -> (i32, i32) {
    %c0_i32 = arith.constant 0 : i32
    %c0_i32_0 = arith.constant 0 : i32
    %c0_i32_1 = arith.constant 0 : i32
    return %c0_i32, %c0_i32_0 : i32, i32
  }
  func.func @transform_3(%arg0: i32, %arg1: i32) -> (i32, i32) {
    %c0_i32 = arith.constant 0 : i32
    %c0_i32_0 = arith.constant 0 : i32
    %c0_i32_1 = arith.constant 0 : i32
    return %c0_i32, %c0_i32_0 : i32, i32
  }
  func.func @transform_4(%arg0: i32, %arg1: i32) -> (i32, i32) {
    %c0_i32 = arith.constant 0 : i32
    %c0_i32_0 = arith.constant 0 : i32
    %c0_i32_1 = arith.constant 0 : i32
    return %c0_i32, %c0_i32_0 : i32, i32
  }
  func.func @transform_5(%arg0: i32, %arg1: i32) -> (i32, i32, i32, i32) {
    %c0_i32 = arith.constant 0 : i32
    %c0_i32_0 = arith.constant 0 : i32
    %c0_i32_1 = arith.constant 0 : i32
    return %arg0, %arg1, %c0_i32, %c0_i32_0 : i32, i32, i32, i32
  }
  func.func @transform_6(%arg0: i32, %arg1: i32) -> (i32, i32, i32, i32) {
    %c0_i32 = arith.constant 0 : i32
    %c0_i32_0 = arith.constant 0 : i32
    %c0_i32_1 = arith.constant 0 : i32
    return %arg0, %arg1, %c0_i32, %c0_i32_0 : i32, i32, i32, i32
  }
}

module attributes {stable_mosaic.version = 11 : i64} {
  func.func @_bnrelu_conv1x1_kernel(%arg0: i32, %arg1: i32, %arg2: memref<1x8x16x4xbf16, #tpu.memory_space<vmem>>, %arg3: memref<1x4xf32, #tpu.memory_space<vmem>>, %arg4: memref<1x4xf32, #tpu.memory_space<vmem>>, %arg5: memref<4x8xbf16, #tpu.memory_space<vmem>>, %arg6: memref<1x8xf32, #tpu.memory_space<vmem>>, %arg7: memref<1x8x16x8xf32, #tpu.memory_space<vmem>>) attributes {dimension_semantics = [#tpu.dimension_semantics<parallel>, #tpu.dimension_semantics<parallel>], iteration_bounds = array<i64: 2, 2>, scalar_prefetch = 0 : i64, scratch_operands = 0 : i64, tpu.core_type = #tpu.core_type<tc>, window_params = [{transform_indices = @transform_0, window_bounds = array<i64: 1, 8, 16, 4>}, {pipeline_mode = #tpu.pipeline_mode<synchronous>, transform_indices = @transform_1, window_bounds = array<i64: 1, 4>}, {pipeline_mode = #tpu.pipeline_mode<synchronous>, transform_indices = @transform_2, window_bounds = array<i64: 1, 4>}, {pipeline_mode = #tpu.pipeline_mode<synchronous>, transform_indices = @transform_3, window_bounds = array<i64: 4, 8>}, {pipeline_mode = #tpu.pipeline_mode<synchronous>, transform_indices = @transform_4, window_bounds = array<i64: 1, 8>}, {transform_indices = @transform_5, window_bounds = array<i64: 1, 8, 16, 8>}]} {
    %c0 = arith.constant 0 : index
    %c0_0 = arith.constant 0 : index
    %c0_1 = arith.constant 0 : index
    %c0_2 = arith.constant 0 : index
    %0 = vector.load %arg2[%c0, %c0_0, %c0_1, %c0_2] : memref<1x8x16x4xbf16, #tpu.memory_space<vmem>>, vector<1x8x16x4xbf16>
    %1 = vector.shape_cast %0 : vector<1x8x16x4xbf16> to vector<8x16x4xbf16>
    %2 = arith.extf %1 : vector<8x16x4xbf16> to vector<8x16x4xf32>
    %c0_3 = arith.constant 0 : index
    %c0_4 = arith.constant 0 : index
    %3 = vector.load %arg3[%c0_3, %c0_4] : memref<1x4xf32, #tpu.memory_space<vmem>>, vector<1x4xf32>
    %4 = vector.shape_cast %3 : vector<1x4xf32> to vector<4xf32>
    %5 = vector.shape_cast %4 : vector<4xf32> to vector<1x1x4xf32>
    %6 = vector.broadcast %5 : vector<1x1x4xf32> to vector<8x16x4xf32>
    %7 = arith.mulf %2, %6 : vector<8x16x4xf32>
    %c0_5 = arith.constant 0 : index
    %c0_6 = arith.constant 0 : index
    %8 = vector.load %arg4[%c0_5, %c0_6] : memref<1x4xf32, #tpu.memory_space<vmem>>, vector<1x4xf32>
    %9 = vector.shape_cast %8 : vector<1x4xf32> to vector<4xf32>
    %10 = vector.shape_cast %9 : vector<4xf32> to vector<1x1x4xf32>
    %11 = vector.broadcast %10 : vector<1x1x4xf32> to vector<8x16x4xf32>
    %12 = arith.addf %7, %11 : vector<8x16x4xf32>
    %cst = arith.constant 0.000000e+00 : f32
    %13 = vector.broadcast %cst : f32 to vector<8x16x4xf32>
    %14 = arith.maximumf %12, %13 : vector<8x16x4xf32>
    %15 = vector.shape_cast %14 : vector<8x16x4xf32> to vector<128x4xf32>
    %16 = arith.truncf %15 : vector<128x4xf32> to vector<128x4xbf16>
    %c0_7 = arith.constant 0 : index
    %c0_8 = arith.constant 0 : index
    %17 = vector.load %arg5[%c0_7, %c0_8] : memref<4x8xbf16, #tpu.memory_space<vmem>>, vector<4x8xbf16>
    %cst_9 = arith.constant dense<0.000000e+00> : vector<128x8xf32>
    %18 = tpu.matmul %16, %17, %cst_9 {dimension_numbers = #tpu.dot_dimension_numbers<[1], [0], [0], [1], [0, 0, 1, 1], [], []>} : vector<128x4xbf16>, vector<4x8xbf16>, vector<128x8xf32> -> vector<128x8xf32>
    %c0_10 = arith.constant 0 : index
    %c0_11 = arith.constant 0 : index
    %19 = vector.load %arg6[%c0_10, %c0_11] : memref<1x8xf32, #tpu.memory_space<vmem>>, vector<1x8xf32>
    %20 = vector.shape_cast %19 : vector<1x8xf32> to vector<8xf32>
    %21 = vector.shape_cast %20 : vector<8xf32> to vector<1x8xf32>
    %22 = vector.broadcast %21 : vector<1x8xf32> to vector<128x8xf32>
    %23 = arith.addf %18, %22 : vector<128x8xf32>
    %24 = vector.shape_cast %23 : vector<128x8xf32> to vector<8x16x8xf32>
    %c0_12 = arith.constant 0 : index
    %c0_13 = arith.constant 0 : index
    %c0_14 = arith.constant 0 : index
    %c0_15 = arith.constant 0 : index
    %25 = vector.load %arg7[%c0_12, %c0_13, %c0_14, %c0_15] : memref<1x8x16x8xf32, #tpu.memory_space<vmem>>, vector<1x8x16x8xf32>
    %26 = vector.shape_cast %25 : vector<1x8x16x8xf32> to vector<8x16x8xf32>
    %27 = vector.shape_cast %24 : vector<8x16x8xf32> to vector<1x8x16x8xf32>
    tpu.vector_store %arg7[%c0_12, %c0_13, %c0_14, %c0_15], %27 {strides = array<i32>} : memref<1x8x16x8xf32, #tpu.memory_space<vmem>>, vector<1x8x16x8xf32>,
    return
  }
  func.func @transform_0(%arg0: i32, %arg1: i32) -> (i32, i32, i32, i32) {
    %c0_i32 = arith.constant 0 : i32
    %c0_i32_0 = arith.constant 0 : i32
    %c0_i32_1 = arith.constant 0 : i32
    return %arg0, %arg1, %c0_i32, %c0_i32_0 : i32, i32, i32, i32
  }
  func.func @transform_1(%arg0: i32, %arg1: i32) -> (i32, i32) {
    %c0_i32 = arith.constant 0 : i32
    %c0_i32_0 = arith.constant 0 : i32
    %c0_i32_1 = arith.constant 0 : i32
    return %c0_i32, %c0_i32_0 : i32, i32
  }
  func.func @transform_2(%arg0: i32, %arg1: i32) -> (i32, i32) {
    %c0_i32 = arith.constant 0 : i32
    %c0_i32_0 = arith.constant 0 : i32
    %c0_i32_1 = arith.constant 0 : i32
    return %c0_i32, %c0_i32_0 : i32, i32
  }
  func.func @transform_3(%arg0: i32, %arg1: i32) -> (i32, i32) {
    %c0_i32 = arith.constant 0 : i32
    %c0_i32_0 = arith.constant 0 : i32
    %c0_i32_1 = arith.constant 0 : i32
    return %c0_i32, %c0_i32_0 : i32, i32
  }
  func.func @transform_4(%arg0: i32, %arg1: i32) -> (i32, i32) {
    %c0_i32 = arith.constant 0 : i32
    %c0_i32_0 = arith.constant 0 : i32
    %c0_i32_1 = arith.constant 0 : i32
    return %c0_i32, %c0_i32_0 : i32, i32
  }
  func.func @transform_5(%arg0: i32, %arg1: i32) -> (i32, i32, i32, i32) {
    %c0_i32 = arith.constant 0 : i32
    %c0_i32_0 = arith.constant 0 : i32
    %c0_i32_1 = arith.constant 0 : i32
    return %arg0, %arg1, %c0_i32, %c0_i32_0 : i32, i32, i32, i32
  }
}

module attributes {stable_mosaic.version = 11 : i64} {
  func.func @_bnrelu_conv3x3_kernel(%arg0: i32, %arg1: memref<1x16x16x4xbf16, #tpu.memory_space<vmem>>, %arg2: memref<1x4xf32, #tpu.memory_space<vmem>>, %arg3: memref<1x4xf32, #tpu.memory_space<vmem>>, %arg4: memref<3x12x4xbf16, #tpu.memory_space<vmem>>, %arg5: memref<1x4xf32, #tpu.memory_space<vmem>>, %arg6: memref<1x16x16x4xbf16, #tpu.memory_space<vmem>>, %arg7: memref<1x2x4xf32, #tpu.memory_space<vmem>>) attributes {dimension_semantics = [#tpu.dimension_semantics<parallel>], iteration_bounds = array<i64: 2>, scalar_prefetch = 0 : i64, scratch_operands = 0 : i64, tpu.core_type = #tpu.core_type<tc>, window_params = [{transform_indices = @transform_0, window_bounds = array<i64: 1, 16, 16, 4>}, {pipeline_mode = #tpu.pipeline_mode<synchronous>, transform_indices = @transform_1, window_bounds = array<i64: 1, 4>}, {pipeline_mode = #tpu.pipeline_mode<synchronous>, transform_indices = @transform_2, window_bounds = array<i64: 1, 4>}, {pipeline_mode = #tpu.pipeline_mode<synchronous>, transform_indices = @transform_3, window_bounds = array<i64: 3, 12, 4>}, {pipeline_mode = #tpu.pipeline_mode<synchronous>, transform_indices = @transform_4, window_bounds = array<i64: 1, 4>}, {transform_indices = @transform_5, window_bounds = array<i64: 1, 16, 16, 4>}, {transform_indices = @transform_6, window_bounds = array<i64: 1, 2, 4>}]} {
    %c0 = arith.constant 0 : index
    %c0_0 = arith.constant 0 : index
    %0 = vector.load %arg2[%c0, %c0_0] : memref<1x4xf32, #tpu.memory_space<vmem>>, vector<1x4xf32>
    %1 = vector.shape_cast %0 : vector<1x4xf32> to vector<4xf32>
    %c0_1 = arith.constant 0 : index
    %c0_2 = arith.constant 0 : index
    %2 = vector.load %arg3[%c0_1, %c0_2] : memref<1x4xf32, #tpu.memory_space<vmem>>, vector<1x4xf32>
    %3 = vector.shape_cast %2 : vector<1x4xf32> to vector<4xf32>
    %cst = arith.constant 0.000000e+00 : f32
    %4 = vector.broadcast %cst : f32 to vector<1x4xf32>
    %cst_3 = arith.constant 0.000000e+00 : f32
    %5 = vector.broadcast %cst_3 : f32 to vector<1x4xf32>
    %c0_4 = arith.constant 0 : index
    %c0_5 = arith.constant 0 : index
    %c0_6 = arith.constant 0 : index
    %c0_7 = arith.constant 0 : index
    %6 = vector.load %arg1[%c0_4, %c0_5, %c0_6, %c0_7] : memref<1x16x16x4xbf16, #tpu.memory_space<vmem>>, vector<1x9x16x4xbf16>
    %7 = vector.shape_cast %6 : vector<1x9x16x4xbf16> to vector<9x16x4xbf16>
    %8 = arith.extf %7 : vector<9x16x4xbf16> to vector<9x16x4xf32>
    %9 = vector.shape_cast %1 : vector<4xf32> to vector<1x1x4xf32>
    %10 = vector.broadcast %9 : vector<1x1x4xf32> to vector<9x16x4xf32>
    %11 = arith.mulf %8, %10 : vector<9x16x4xf32>
    %12 = vector.shape_cast %3 : vector<4xf32> to vector<1x1x4xf32>
    %13 = vector.broadcast %12 : vector<1x1x4xf32> to vector<9x16x4xf32>
    %14 = arith.addf %11, %13 : vector<9x16x4xf32>
    %cst_8 = arith.constant 0.000000e+00 : f32
    %15 = vector.broadcast %cst_8 : f32 to vector<9x16x4xf32>
    %16 = arith.maximumf %14, %15 : vector<9x16x4xf32>
    %cst_9 = arith.constant 0.000000e+00 : f32
    %17 = vector.broadcast %cst_9 : f32 to vector<1x16x4xf32>
    %18 = tpu.concatenate %17, %16 in 0 : vector<1x16x4xf32>, vector<9x16x4xf32> -> vector<10x16x4xf32>
    %19 = tpu.iota {dimensions = array<i32: 1>} : vector<10x16x4xi32>
    %c0_i32 = arith.constant 0 : i32
    %20 = vector.broadcast %c0_i32 : i32 to vector<10x16x4xi32>
    %21 = arith.cmpi eq, %19, %20 : vector<10x16x4xi32>
    %c1_i32 = arith.constant 1 : i32
    %22 = tpu.dynamic_rotate %18 by %c1_i32 dim 1 : vector<10x16x4xf32>, i32 -> vector<10x16x4xf32>
    %cst_10 = arith.constant 0.000000e+00 : f32
    %23 = vector.broadcast %cst_10 : f32 to vector<10x16x4xf32>
    %24 = arith.select %21, %23, %22 : vector<10x16x4xi1>, vector<10x16x4xf32>
    %c15_i32 = arith.constant 15 : i32
    %25 = vector.broadcast %c15_i32 : i32 to vector<10x16x4xi32>
    %26 = arith.cmpi eq, %19, %25 : vector<10x16x4xi32>
    %c15_i32_11 = arith.constant 15 : i32
    %27 = tpu.dynamic_rotate %18 by %c15_i32_11 dim 1 : vector<10x16x4xf32>, i32 -> vector<10x16x4xf32>
    %cst_12 = arith.constant 0.000000e+00 : f32
    %28 = vector.broadcast %cst_12 : f32 to vector<10x16x4xf32>
    %29 = arith.select %26, %28, %27 : vector<10x16x4xi1>, vector<10x16x4xf32>
    %30 = tpu.concatenate %24, %18, %29 in 2 : vector<10x16x4xf32>, vector<10x16x4xf32>, vector<10x16x4xf32> -> vector<10x16x12xf32>
    %31 = arith.truncf %30 : vector<10x16x12xf32> to vector<10x16x12xbf16>
    %cst_13 = arith.constant 0.000000e+00 : f32
    %32 = vector.broadcast %cst_13 : f32 to vector<128x4xf32>
    %33 = vector.extract_strided_slice %31 {offsets = [0, 0, 0], sizes = [8, 16, 12], strides = [1, 1, 1]} : vector<10x16x12xbf16> to vector<8x16x12xbf16>
    %34 = vector.shape_cast %33 : vector<8x16x12xbf16> to vector<128x12xbf16>
    %c0_14 = arith.constant 0 : index
    %c0_15 = arith.constant 0 : index
    %c0_16 = arith.constant 0 : index
    %35 = vector.load %arg4[%c0_14, %c0_15, %c0_16] : memref<3x12x4xbf16, #tpu.memory_space<vmem>>, vector<1x12x4xbf16>
    %36 = vector.shape_cast %35 : vector<1x12x4xbf16> to vector<12x4xbf16>
    %cst_17 = arith.constant dense<0.000000e+00> : vector<128x4xf32>
    %37 = tpu.matmul %34, %36, %cst_17 {dimension_numbers = #tpu.dot_dimension_numbers<[1], [0], [0], [1], [0, 0, 1, 1], [], []>} : vector<128x12xbf16>, vector<12x4xbf16>, vector<128x4xf32> -> vector<128x4xf32>
    %38 = arith.addf %32, %37 : vector<128x4xf32>
    %39 = vector.extract_strided_slice %31 {offsets = [1, 0, 0], sizes = [8, 16, 12], strides = [1, 1, 1]} : vector<10x16x12xbf16> to vector<8x16x12xbf16>
    %40 = vector.shape_cast %39 : vector<8x16x12xbf16> to vector<128x12xbf16>
    %c1 = arith.constant 1 : index
    %c0_18 = arith.constant 0 : index
    %c0_19 = arith.constant 0 : index
    %41 = vector.load %arg4[%c1, %c0_18, %c0_19] : memref<3x12x4xbf16, #tpu.memory_space<vmem>>, vector<1x12x4xbf16>
    %42 = vector.shape_cast %41 : vector<1x12x4xbf16> to vector<12x4xbf16>
    %cst_20 = arith.constant dense<0.000000e+00> : vector<128x4xf32>
    %43 = tpu.matmul %40, %42, %cst_20 {dimension_numbers = #tpu.dot_dimension_numbers<[1], [0], [0], [1], [0, 0, 1, 1], [], []>} : vector<128x12xbf16>, vector<12x4xbf16>, vector<128x4xf32> -> vector<128x4xf32>
    %44 = arith.addf %38, %43 : vector<128x4xf32>
    %45 = vector.extract_strided_slice %31 {offsets = [2, 0, 0], sizes = [8, 16, 12], strides = [1, 1, 1]} : vector<10x16x12xbf16> to vector<8x16x12xbf16>
    %46 = vector.shape_cast %45 : vector<8x16x12xbf16> to vector<128x12xbf16>
    %c2 = arith.constant 2 : index
    %c0_21 = arith.constant 0 : index
    %c0_22 = arith.constant 0 : index
    %47 = vector.load %arg4[%c2, %c0_21, %c0_22] : memref<3x12x4xbf16, #tpu.memory_space<vmem>>, vector<1x12x4xbf16>
    %48 = vector.shape_cast %47 : vector<1x12x4xbf16> to vector<12x4xbf16>
    %cst_23 = arith.constant dense<0.000000e+00> : vector<128x4xf32>
    %49 = tpu.matmul %46, %48, %cst_23 {dimension_numbers = #tpu.dot_dimension_numbers<[1], [0], [0], [1], [0, 0, 1, 1], [], []>} : vector<128x12xbf16>, vector<12x4xbf16>, vector<128x4xf32> -> vector<128x4xf32>
    %50 = arith.addf %44, %49 : vector<128x4xf32>
    %c0_24 = arith.constant 0 : index
    %c0_25 = arith.constant 0 : index
    %51 = vector.load %arg5[%c0_24, %c0_25] : memref<1x4xf32, #tpu.memory_space<vmem>>, vector<1x4xf32>
    %52 = vector.shape_cast %51 : vector<1x4xf32> to vector<4xf32>
    %53 = vector.shape_cast %52 : vector<4xf32> to vector<1x4xf32>
    %54 = vector.broadcast %53 : vector<1x4xf32> to vector<128x4xf32>
    %55 = arith.addf %50, %54 : vector<128x4xf32>
    %56 = vector.shape_cast %55 : vector<128x4xf32> to vector<8x16x4xf32>
    %57 = arith.truncf %56 : vector<8x16x4xf32> to vector<8x16x4xbf16>
    %c0_26 = arith.constant 0 : index
    %c0_27 = arith.constant 0 : index
    %c0_28 = arith.constant 0 : index
    %c0_29 = arith.constant 0 : index
    %58 = vector.load %arg6[%c0_26, %c0_27, %c0_28, %c0_29] : memref<1x16x16x4xbf16, #tpu.memory_space<vmem>>, vector<1x8x16x4xbf16>
    %59 = vector.shape_cast %58 : vector<1x8x16x4xbf16> to vector<8x16x4xbf16>
    %60 = vector.shape_cast %57 : vector<8x16x4xbf16> to vector<1x8x16x4xbf16>
    tpu.vector_store %arg6[%c0_26, %c0_27, %c0_28, %c0_29], %60 {strides = array<i32>} : memref<1x16x16x4xbf16, #tpu.memory_space<vmem>>, vector<1x8x16x4xbf16>,
    %cst_30 = arith.constant dense<0.000000e+00> : vector<4xf32>
    %61 = vector.multi_reduction <add>, %55, %cst_30 [0] : vector<128x4xf32> to vector<4xf32>
    %62 = vector.shape_cast %61 : vector<4xf32> to vector<1x4xf32>
    %63 = arith.addf %4, %62 : vector<1x4xf32>
    %64 = arith.mulf %55, %55 : vector<128x4xf32>
    %cst_31 = arith.constant dense<0.000000e+00> : vector<4xf32>
    %65 = vector.multi_reduction <add>, %64, %cst_31 [0] : vector<128x4xf32> to vector<4xf32>
    %66 = vector.shape_cast %65 : vector<4xf32> to vector<1x4xf32>
    %67 = arith.addf %5, %66 : vector<1x4xf32>
    %c0_32 = arith.constant 0 : index
    %c7 = arith.constant 7 : index
    %c0_33 = arith.constant 0 : index
    %c0_34 = arith.constant 0 : index
    %68 = vector.load %arg1[%c0_32, %c7, %c0_33, %c0_34] : memref<1x16x16x4xbf16, #tpu.memory_space<vmem>>, vector<1x9x16x4xbf16>
    %69 = vector.shape_cast %68 : vector<1x9x16x4xbf16> to vector<9x16x4xbf16>
    %70 = arith.extf %69 : vector<9x16x4xbf16> to vector<9x16x4xf32>
    %71 = vector.shape_cast %1 : vector<4xf32> to vector<1x1x4xf32>
    %72 = vector.broadcast %71 : vector<1x1x4xf32> to vector<9x16x4xf32>
    %73 = arith.mulf %70, %72 : vector<9x16x4xf32>
    %74 = vector.shape_cast %3 : vector<4xf32> to vector<1x1x4xf32>
    %75 = vector.broadcast %74 : vector<1x1x4xf32> to vector<9x16x4xf32>
    %76 = arith.addf %73, %75 : vector<9x16x4xf32>
    %cst_35 = arith.constant 0.000000e+00 : f32
    %77 = vector.broadcast %cst_35 : f32 to vector<9x16x4xf32>
    %78 = arith.maximumf %76, %77 : vector<9x16x4xf32>
    %cst_36 = arith.constant 0.000000e+00 : f32
    %79 = vector.broadcast %cst_36 : f32 to vector<1x16x4xf32>
    %80 = tpu.concatenate %78, %79 in 0 : vector<9x16x4xf32>, vector<1x16x4xf32> -> vector<10x16x4xf32>
    %81 = tpu.iota {dimensions = array<i32: 1>} : vector<10x16x4xi32>
    %c0_i32_37 = arith.constant 0 : i32
    %82 = vector.broadcast %c0_i32_37 : i32 to vector<10x16x4xi32>
    %83 = arith.cmpi eq, %81, %82 : vector<10x16x4xi32>
    %c1_i32_38 = arith.constant 1 : i32
    %84 = tpu.dynamic_rotate %80 by %c1_i32_38 dim 1 : vector<10x16x4xf32>, i32 -> vector<10x16x4xf32>
    %cst_39 = arith.constant 0.000000e+00 : f32
    %85 = vector.broadcast %cst_39 : f32 to vector<10x16x4xf32>
    %86 = arith.select %83, %85, %84 : vector<10x16x4xi1>, vector<10x16x4xf32>
    %c15_i32_40 = arith.constant 15 : i32
    %87 = vector.broadcast %c15_i32_40 : i32 to vector<10x16x4xi32>
    %88 = arith.cmpi eq, %81, %87 : vector<10x16x4xi32>
    %c15_i32_41 = arith.constant 15 : i32
    %89 = tpu.dynamic_rotate %80 by %c15_i32_41 dim 1 : vector<10x16x4xf32>, i32 -> vector<10x16x4xf32>
    %cst_42 = arith.constant 0.000000e+00 : f32
    %90 = vector.broadcast %cst_42 : f32 to vector<10x16x4xf32>
    %91 = arith.select %88, %90, %89 : vector<10x16x4xi1>, vector<10x16x4xf32>
    %92 = tpu.concatenate %86, %80, %91 in 2 : vector<10x16x4xf32>, vector<10x16x4xf32>, vector<10x16x4xf32> -> vector<10x16x12xf32>
    %93 = arith.truncf %92 : vector<10x16x12xf32> to vector<10x16x12xbf16>
    %cst_43 = arith.constant 0.000000e+00 : f32
    %94 = vector.broadcast %cst_43 : f32 to vector<128x4xf32>
    %95 = vector.extract_strided_slice %93 {offsets = [0, 0, 0], sizes = [8, 16, 12], strides = [1, 1, 1]} : vector<10x16x12xbf16> to vector<8x16x12xbf16>
    %96 = vector.shape_cast %95 : vector<8x16x12xbf16> to vector<128x12xbf16>
    %c0_44 = arith.constant 0 : index
    %c0_45 = arith.constant 0 : index
    %c0_46 = arith.constant 0 : index
    %97 = vector.load %arg4[%c0_44, %c0_45, %c0_46] : memref<3x12x4xbf16, #tpu.memory_space<vmem>>, vector<1x12x4xbf16>
    %98 = vector.shape_cast %97 : vector<1x12x4xbf16> to vector<12x4xbf16>
    %cst_47 = arith.constant dense<0.000000e+00> : vector<128x4xf32>
    %99 = tpu.matmul %96, %98, %cst_47 {dimension_numbers = #tpu.dot_dimension_numbers<[1], [0], [0], [1], [0, 0, 1, 1], [], []>} : vector<128x12xbf16>, vector<12x4xbf16>, vector<128x4xf32> -> vector<128x4xf32>
    %100 = arith.addf %94, %99 : vector<128x4xf32>
    %101 = vector.extract_strided_slice %93 {offsets = [1, 0, 0], sizes = [8, 16, 12], strides = [1, 1, 1]} : vector<10x16x12xbf16> to vector<8x16x12xbf16>
    %102 = vector.shape_cast %101 : vector<8x16x12xbf16> to vector<128x12xbf16>
    %c1_48 = arith.constant 1 : index
    %c0_49 = arith.constant 0 : index
    %c0_50 = arith.constant 0 : index
    %103 = vector.load %arg4[%c1_48, %c0_49, %c0_50] : memref<3x12x4xbf16, #tpu.memory_space<vmem>>, vector<1x12x4xbf16>
    %104 = vector.shape_cast %103 : vector<1x12x4xbf16> to vector<12x4xbf16>
    %cst_51 = arith.constant dense<0.000000e+00> : vector<128x4xf32>
    %105 = tpu.matmul %102, %104, %cst_51 {dimension_numbers = #tpu.dot_dimension_numbers<[1], [0], [0], [1], [0, 0, 1, 1], [], []>} : vector<128x12xbf16>, vector<12x4xbf16>, vector<128x4xf32> -> vector<128x4xf32>
    %106 = arith.addf %100, %105 : vector<128x4xf32>
    %107 = vector.extract_strided_slice %93 {offsets = [2, 0, 0], sizes = [8, 16, 12], strides = [1, 1, 1]} : vector<10x16x12xbf16> to vector<8x16x12xbf16>
    %108 = vector.shape_cast %107 : vector<8x16x12xbf16> to vector<128x12xbf16>
    %c2_52 = arith.constant 2 : index
    %c0_53 = arith.constant 0 : index
    %c0_54 = arith.constant 0 : index
    %109 = vector.load %arg4[%c2_52, %c0_53, %c0_54] : memref<3x12x4xbf16, #tpu.memory_space<vmem>>, vector<1x12x4xbf16>
    %110 = vector.shape_cast %109 : vector<1x12x4xbf16> to vector<12x4xbf16>
    %cst_55 = arith.constant dense<0.000000e+00> : vector<128x4xf32>
    %111 = tpu.matmul %108, %110, %cst_55 {dimension_numbers = #tpu.dot_dimension_numbers<[1], [0], [0], [1], [0, 0, 1, 1], [], []>} : vector<128x12xbf16>, vector<12x4xbf16>, vector<128x4xf32> -> vector<128x4xf32>
    %112 = arith.addf %106, %111 : vector<128x4xf32>
    %c0_56 = arith.constant 0 : index
    %c0_57 = arith.constant 0 : index
    %113 = vector.load %arg5[%c0_56, %c0_57] : memref<1x4xf32, #tpu.memory_space<vmem>>, vector<1x4xf32>
    %114 = vector.shape_cast %113 : vector<1x4xf32> to vector<4xf32>
    %115 = vector.shape_cast %114 : vector<4xf32> to vector<1x4xf32>
    %116 = vector.broadcast %115 : vector<1x4xf32> to vector<128x4xf32>
    %117 = arith.addf %112, %116 : vector<128x4xf32>
    %118 = vector.shape_cast %117 : vector<128x4xf32> to vector<8x16x4xf32>
    %119 = arith.truncf %118 : vector<8x16x4xf32> to vector<8x16x4xbf16>
    %c0_58 = arith.constant 0 : index
    %c8 = arith.constant 8 : index
    %c0_59 = arith.constant 0 : index
    %c0_60 = arith.constant 0 : index
    %120 = vector.load %arg6[%c0_58, %c8, %c0_59, %c0_60] : memref<1x16x16x4xbf16, #tpu.memory_space<vmem>>, vector<1x8x16x4xbf16>
    %121 = vector.shape_cast %120 : vector<1x8x16x4xbf16> to vector<8x16x4xbf16>
    %122 = vector.shape_cast %119 : vector<8x16x4xbf16> to vector<1x8x16x4xbf16>
    tpu.vector_store %arg6[%c0_58, %c8, %c0_59, %c0_60], %122 {strides = array<i32>} : memref<1x16x16x4xbf16, #tpu.memory_space<vmem>>, vector<1x8x16x4xbf16>,
    %cst_61 = arith.constant dense<0.000000e+00> : vector<4xf32>
    %123 = vector.multi_reduction <add>, %117, %cst_61 [0] : vector<128x4xf32> to vector<4xf32>
    %124 = vector.shape_cast %123 : vector<4xf32> to vector<1x4xf32>
    %125 = arith.addf %63, %124 : vector<1x4xf32>
    %126 = arith.mulf %117, %117 : vector<128x4xf32>
    %cst_62 = arith.constant dense<0.000000e+00> : vector<4xf32>
    %127 = vector.multi_reduction <add>, %126, %cst_62 [0] : vector<128x4xf32> to vector<4xf32>
    %128 = vector.shape_cast %127 : vector<4xf32> to vector<1x4xf32>
    %129 = arith.addf %67, %128 : vector<1x4xf32>
    %130 = tpu.concatenate %125, %129 in 0 : vector<1x4xf32>, vector<1x4xf32> -> vector<2x4xf32>
    %c0_63 = arith.constant 0 : index
    %c0_64 = arith.constant 0 : index
    %c0_65 = arith.constant 0 : index
    %131 = vector.load %arg7[%c0_63, %c0_64, %c0_65] : memref<1x2x4xf32, #tpu.memory_space<vmem>>, vector<1x2x4xf32>
    %132 = vector.shape_cast %131 : vector<1x2x4xf32> to vector<2x4xf32>
    %133 = vector.shape_cast %130 : vector<2x4xf32> to vector<1x2x4xf32>
    tpu.vector_store %arg7[%c0_63, %c0_64, %c0_65], %133 {strides = array<i32>} : memref<1x2x4xf32, #tpu.memory_space<vmem>>, vector<1x2x4xf32>,
    return
  }
  func.func @transform_0(%arg0: i32) -> (i32, i32, i32, i32) {
    %c0_i32 = arith.constant 0 : i32
    %c0_i32_0 = arith.constant 0 : i32
    %c0_i32_1 = arith.constant 0 : i32
    %c0_i32_2 = arith.constant 0 : i32
    return %arg0, %c0_i32, %c0_i32_0, %c0_i32_1 : i32, i32, i32, i32
  }
  func.func @transform_1(%arg0: i32) -> (i32, i32) {
    %c0_i32 = arith.constant 0 : i32
    %c0_i32_0 = arith.constant 0 : i32
    %c0_i32_1 = arith.constant 0 : i32
    return %c0_i32, %c0_i32_0 : i32, i32
  }
  func.func @transform_2(%arg0: i32) -> (i32, i32) {
    %c0_i32 = arith.constant 0 : i32
    %c0_i32_0 = arith.constant 0 : i32
    %c0_i32_1 = arith.constant 0 : i32
    return %c0_i32, %c0_i32_0 : i32, i32
  }
  func.func @transform_3(%arg0: i32) -> (i32, i32, i32) {
    %c0_i32 = arith.constant 0 : i32
    %c0_i32_0 = arith.constant 0 : i32
    %c0_i32_1 = arith.constant 0 : i32
    %c0_i32_2 = arith.constant 0 : i32
    return %c0_i32, %c0_i32_0, %c0_i32_1 : i32, i32, i32
  }
  func.func @transform_4(%arg0: i32) -> (i32, i32) {
    %c0_i32 = arith.constant 0 : i32
    %c0_i32_0 = arith.constant 0 : i32
    %c0_i32_1 = arith.constant 0 : i32
    return %c0_i32, %c0_i32_0 : i32, i32
  }
  func.func @transform_5(%arg0: i32) -> (i32, i32, i32, i32) {
    %c0_i32 = arith.constant 0 : i32
    %c0_i32_0 = arith.constant 0 : i32
    %c0_i32_1 = arith.constant 0 : i32
    %c0_i32_2 = arith.constant 0 : i32
    return %arg0, %c0_i32, %c0_i32_0, %c0_i32_1 : i32, i32, i32, i32
  }
  func.func @transform_6(%arg0: i32) -> (i32, i32, i32) {
    %c0_i32 = arith.constant 0 : i32
    %c0_i32_0 = arith.constant 0 : i32
    %c0_i32_1 = arith.constant 0 : i32
    return %arg0, %c0_i32, %c0_i32_0 : i32, i32, i32
  }
}

</mosaic_0001>

<llo_original>
// kernel: conv_block_forward.3
$region0: #{conv_block_forward.3}
  #allocation0 [shape = 'u32[]', space=smem, size = 0x4, offset = 0x4, fixed_abs, tag = 'smem constant byte address 0x4 - core index']
  #allocation1 [shape = 'u32[144,128]{1,0:T(1,128)}', space=vmem, size = 0x12000, scoped, tag = 'internal scratch']
  %s0 = inlined_call_operand.vmem [shape: f32[2,16,16,4], index: 0, kind: input, shape index: {}]
  %s1 = inlined_call_operand.vmem [shape: f32[1,4], index: 1, kind: input, shape index: {}]
  %s2 = inlined_call_operand.vmem [shape: f32[1,4], index: 2, kind: input, shape index: {}]
  %s3 = inlined_call_operand.vmem [shape: bf16[4,4], index: 3, kind: input, shape index: {}]
  %s4 = inlined_call_operand.vmem [shape: f32[1,4], index: 4, kind: input, shape index: {}]
  %s5 = inlined_call_operand.vmem [shape: bf16[2,16,16,4], index: 5, kind: output, shape index: {0}]
  %s6 = inlined_call_operand.vmem [shape: f32[2,2,2,4], index: 6, kind: output, shape index: {1}]
  %7 = xla_tuple %s5, %s6
  %s8 = sld [smem:[#allocation0]]
  $region61: #{conv_block_forward.3} parent=0
    _
  %s10 = ssub.s32 1, %s8
  %s11 = scalar_select 0, %s10, %s8
  loop: start=0, step=1, limit=6
  $region2: #{conv_block_forward.3} parent=0 // loop_pre_header
    _
  $region3: #{conv_block_forward.3} parent=0 // loop_header
    %s13 = sphi 0, %s17
    %p14 = scmp.ge.s32.totalorder %s13, 6
    %s20 = sphi 0, %s32
    %s21 = sphi 0, %s28
    %s22 = sphi 0, %s20
    %s23 = sphi 0, %s21
    %s24 = sphi 0, %s22
    %s25 = sphi 0, %s23
    %s37 = sphi 0, %s39
    %s40 = sphi 0, %s37
    %s41 = sphi 0, %s40
    %s57 = sphi 0, %s41
    %s61 = sphi 0, %s61
    %s63 = sphi 0, %s61
    %s64 = sphi 0, %s63
    %s78 = sphi 0, %s64
    %s82 = sphi 0, %s82
    %s84 = sphi 0, %s82
    %s85 = sphi 0, %s84
    %s99 = sphi 0, %s85
    %s103 = sphi 0, %s103
    %s105 = sphi 0, %s103
    %s106 = sphi 0, %s105
    %s120 = sphi 0, %s106
    %s124 = sphi 0, %s124
    %s126 = sphi 0, %s124
    %s127 = sphi 0, %s126
    %s141 = sphi 0, %s127
    %s149 = sphi 0, %s151
    %s152 = sphi 0, %s149
    %s153 = sphi 0, %s152
    %s169 = sphi 0, %s153
    %s177 = sphi 0, %s179
    %s180 = sphi 0, %s177
    %s181 = sphi 0, %s180
    %s197 = sphi 0, %s181
  $region4: #{conv_block_forward.3} parent=0 // loop_header_branch
    %16 = sbr.rel (%p14) target = $region8
  $region5: #{conv_block_forward.3} parent=0 // loop_body
    %s18 = ssub.s32 %s13, 1
    %s19 = ssub.s32 %s13, 2
    %s26 = sadd.s32 1, %s21
    %p27 = scmp.ge.s32.totalorder %s26, 2
    %s28 = scalar_select %p27, 0, %s26
    %s29 = sadd.s32 1, %s20
    %s30 = scalar_select %p27, %s29, %s20
    %p31 = scmp.ge.s32.totalorder %s30, 2
    %s32 = scalar_select %p31, 0, %s30
    %s33 = ssub.s32 %s20, %s32
    %s34 = ssub.s32 %s21, %s28
    %s35 = sor.u32 %s33, %s34
    %p36 = scmp.eq.s32.totalorder %s35, 0
    %s38 = sadd.s32 %s37, 1
    %s39 = scalar_select %p36, %s37, %s38
    %p42 = pneg %p36
    %p43 = scmp.eq.s32.totalorder %s13, 3
    %p44 = por %p42, %p43
    %p45 = scmp.ne.s32.totalorder %s37, %s40
    %p46 = scmp.eq.s32.totalorder %s13, 0
    %p47 = por %p45, %p46
    %p48 = scmp.ne.s32.totalorder %s37, %s40
    %p49 = scmp.eq.s32.totalorder %s18, 3
    %p50 = por %p48, %p49
    %p51 = scmp.ne.s32.totalorder %s40, %s41
    %p52 = scmp.eq.s32.totalorder %s18, 0
    %p53 = por %p51, %p52
    %p54 = scmp.ne.s32.totalorder %s40, %s41
    %p55 = scmp.eq.s32.totalorder %s19, 3
    %p56 = por %p54, %p55
    %p58 = scmp.ne.s32.totalorder %s41, %s57
    %p59 = scmp.eq.s32.totalorder %s19, 0
    %p60 = por %p58, %p59
    %s62 = sadd.s32 %s61, 1
    %p65 = scmp.eq.s32.totalorder %s13, 3
    %p66 = scmp.ne.s32.totalorder %s61, %s63
    %p67 = scmp.eq.s32.totalorder %s13, 0
    %p68 = por %p66, %p67
    %p69 = scmp.ne.s32.totalorder %s61, %s63
    %p70 = scmp.eq.s32.totalorder %s18, 3
    %p71 = por %p69, %p70
    %p72 = scmp.ne.s32.totalorder %s63, %s64
    %p73 = scmp.eq.s32.totalorder %s18, 0
    %p74 = por %p72, %p73
    %p75 = scmp.ne.s32.totalorder %s63, %s64
    %p76 = scmp.eq.s32.totalorder %s19, 3
    %p77 = por %p75, %p76
    %p79 = scmp.ne.s32.totalorder %s64, %s78
    %p80 = scmp.eq.s32.totalorder %s19, 0
    %p81 = por %p79, %p80
    %s83 = sadd.s32 %s82, 1
    %p86 = scmp.eq.s32.totalorder %s13, 3
    %p87 = scmp.ne.s32.totalorder %s82, %s84
    %p88 = scmp.eq.s32.totalorder %s13, 0
    %p89 = por %p87, %p88
    %p90 = scmp.ne.s32.totalorder %s82, %s84
    %p91 = scmp.eq.s32.totalorder %s18, 3
    %p92 = por %p90, %p91
    %p93 = scmp.ne.s32.totalorder %s84, %s85
    %p94 = scmp.eq.s32.totalorder %s18, 0
    %p95 = por %p93, %p94
    %p96 = scmp.ne.s32.totalorder %s84, %s85
    %p97 = scmp.eq.s32.totalorder %s19, 3
    %p98 = por %p96, %p97
    %p100 = scmp.ne.s32.totalorder %s85, %s99
    %p101 = scmp.eq.s32.totalorder %s19, 0
    %p102 = por %p100, %p101
    %s104 = sadd.s32 %s103, 1
    %p107 = scmp.eq.s32.totalorder %s13, 3
    %p108 = scmp.ne.s32.totalorder %s103, %s105
    %p109 = scmp.eq.s32.totalorder %s13, 0
    %p110 = por %p108, %p109
    %p111 = scmp.ne.s32.totalorder %s103, %s105
    %p112 = scmp.eq.s32.totalorder %s18, 3
    %p113 = por %p111, %p112
    %p114 = scmp.ne.s32.totalorder %s105, %s106
    %p115 = scmp.eq.s32.totalorder %s18, 0
    %p116 = por %p114, %p115
    %p117 = scmp.ne.s32.totalorder %s105, %s106
    %p118 = scmp.eq.s32.totalorder %s19, 3
    %p119 = por %p117, %p118
    %p121 = scmp.ne.s32.totalorder %s106, %s120
    %p122 = scmp.eq.s32.totalorder %s19, 0
    %p123 = por %p121, %p122
    %s125 = sadd.s32 %s124, 1
    %p128 = scmp.eq.s32.totalorder %s13, 3
    %p129 = scmp.ne.s32.totalorder %s124, %s126
    %p130 = scmp.eq.s32.totalorder %s13, 0
    %p131 = por %p129, %p130
    %p132 = scmp.ne.s32.totalorder %s124, %s126
    %p133 = scmp.eq.s32.totalorder %s18, 3
    %p134 = por %p132, %p133
    %p135 = scmp.ne.s32.totalorder %s126, %s127
    %p136 = scmp.eq.s32.totalorder %s18, 0
    %p137 = por %p135, %p136
    %p138 = scmp.ne.s32.totalorder %s126, %s127
    %p139 = scmp.eq.s32.totalorder %s19, 3
    %p140 = por %p138, %p139
    %p142 = scmp.ne.s32.totalorder %s127, %s141
    %p143 = scmp.eq.s32.totalorder %s19, 0
    %p144 = por %p142, %p143
    %s145 = ssub.s32 %s20, %s32
    %s146 = ssub.s32 %s21, %s28
    %s147 = sor.u32 %s145, %s146
    %p148 = scmp.eq.s32.totalorder %s147, 0
    %s150 = sadd.s32 %s149, 1
    %s151 = scalar_select %p148, %s149, %s150
    %p154 = pneg %p148
    %p155 = scmp.eq.s32.totalorder %s13, 3
    %p156 = por %p154, %p155
    %p157 = scmp.ne.s32.totalorder %s149, %s152
    %p158 = scmp.eq.s32.totalorder %s13, 0
    %p159 = por %p157, %p158
    %p160 = scmp.ne.s32.totalorder %s149, %s152
    %p161 = scmp.eq.s32.totalorder %s18, 3
    %p162 = por %p160, %p161
    %p163 = scmp.ne.s32.totalorder %s152, %s153
    %p164 = scmp.eq.s32.totalorder %s18, 0
    %p165 = por %p163, %p164
    %p166 = scmp.ne.s32.totalorder %s152, %s153
    %p167 = scmp.eq.s32.totalorder %s19, 3
    %p168 = por %p166, %p167
    %p170 = scmp.ne.s32.totalorder %s153, %s169
    %p171 = scmp.eq.s32.totalorder %s19, 0
    %p172 = por %p170, %p171
    %s173 = ssub.s32 %s20, %s32
    %s174 = ssub.s32 %s21, %s28
    %s175 = sor.u32 %s173, %s174
    %p176 = scmp.eq.s32.totalorder %s175, 0
    %s178 = sadd.s32 %s177, 1
    %s179 = scalar_select %p176, %s177, %s178
    %p182 = pneg %p176
    %p183 = scmp.eq.s32.totalorder %s13, 3
    %p184 = por %p182, %p183
    %p185 = scmp.ne.s32.totalorder %s177, %s180
    %p186 = scmp.eq.s32.totalorder %s13, 0
    %p187 = por %p185, %p186
    %p188 = scmp.ne.s32.totalorder %s177, %s180
    %p189 = scmp.eq.s32.totalorder %s18, 3
    %p190 = por %p188, %p189
    %p191 = scmp.ne.s32.totalorder %s180, %s181
    %p192 = scmp.eq.s32.totalorder %s18, 0
    %p193 = por %p191, %p192
    %p194 = scmp.ne.s32.totalorder %s180, %s181
    %p195 = scmp.eq.s32.totalorder %s19, 3
    %p196 = por %p194, %p195
    %p198 = scmp.ne.s32.totalorder %s181, %s197
    %p199 = scmp.eq.s32.totalorder %s19, 0
    %p200 = por %p198, %p199
    %p201 = scmp.le.s32.totalorder 1, %s13
    %p202 = scmp.lt.s32.totalorder %s13, 5
    %p203 = pnand %p201, %p202
    %p204 = pneg %p203
    // Predicated region
    $region9: #{conv_block_forward.3} parent=5 // pred_check
      _
    $region10: #{conv_block_forward.3} parent=5 // pred_check_branch
      %206 = sbr.rel (%p203) target = $region12
    $region11: #{conv_block_forward.3} parent=5 // pred_region
      %s207 = ssub.s32 %s13, 1
      // Predicated region
      $region13: #{conv_block_forward.3} parent=11 // pred_check
        %p208 = pneg %p74
      $region14: #{conv_block_forward.3} parent=11 // pred_check_branch
        %210 = sbr.rel (%p208) target = $region16
      $region15: #{conv_block_forward.3} parent=11 // pred_region
        _
      $region16: #{conv_block_forward.3} parent=11 // pred_fallthru
        _
      // Predicated region
      $region17: #{conv_block_forward.3} parent=11 // pred_check
        %p211 = pneg %p95
      $region18: #{conv_block_forward.3} parent=11 // pred_check_branch
        %213 = sbr.rel (%p211) target = $region20
      $region19: #{conv_block_forward.3} parent=11 // pred_region
        _
      $region20: #{conv_block_forward.3} parent=11 // pred_fallthru
        _
      // Predicated region
      $region21: #{conv_block_forward.3} parent=11 // pred_check
        %p214 = pneg %p116
      $region22: #{conv_block_forward.3} parent=11 // pred_check_branch
        %216 = sbr.rel (%p214) target = $region24
      $region23: #{conv_block_forward.3} parent=11 // pred_region
        _
      $region24: #{conv_block_forward.3} parent=11 // pred_fallthru
        _
      // Predicated region
      $region25: #{conv_block_forward.3} parent=11 // pred_check
        %p217 = pneg %p137
      $region26: #{conv_block_forward.3} parent=11 // pred_check_branch
        %219 = sbr.rel (%p217) target = $region28
      $region27: #{conv_block_forward.3} parent=11 // pred_region
        _
      $region28: #{conv_block_forward.3} parent=11 // pred_fallthru
        _
    $region12: #{conv_block_forward.3} parent=5 // pred_fallthru
      _
    %p220 = scmp.lt.s32.totalorder %s13, 4
    // Predicated region
    $region29: #{conv_block_forward.3} parent=5 // pred_check
      %p221 = pneg %p220
    $region30: #{conv_block_forward.3} parent=5 // pred_check_branch
      %223 = sbr.rel (%p221) target = $region32
    $region31: #{conv_block_forward.3} parent=5 // pred_region
      // Predicated region
      $region33: #{conv_block_forward.3} parent=31 // pred_check
        %p224 = pneg %p47
      $region34: #{conv_block_forward.3} parent=31 // pred_check_branch
        %226 = sbr.rel (%p224) target = $region36
      $region35: #{conv_block_forward.3} parent=31 // pred_region
        %s227 = smul.u32 8, %s21
        %p228 = scmp.lt.s32.totalorder %s20, 1
        %s229 = scalar_select %p228, %s20, 1
        %p230 = scmp.lt.s32.totalorder %s227, 15
        %s231 = scalar_select %p230, %s227, 15
        %s232 = smul.addr %s231, 2
        %s233 = smul.addr %s229, 32
        %s234 = sadd.s32 %s232, %s233
        %s235 = smul.addr %s234, 8
        %s236 = scalar_lea.vmem %s0, %s235
        %s237 = smul.u32 8, %s21
      $region36: #{conv_block_forward.3} parent=31 // pred_fallthru
        _
    $region32: #{conv_block_forward.3} parent=5 // pred_fallthru
      _
    %p238 = scmp.le.s32.totalorder 1, %s13
    %p239 = scmp.lt.s32.totalorder %s13, 5
    %p240 = pnand %p238, %p239
    %p241 = pneg %p240
    // Predicated region
    $region37: #{conv_block_forward.3} parent=5 // pred_check
      _
    $region38: #{conv_block_forward.3} parent=5 // pred_check_branch
      %243 = sbr.rel (%p240) target = $region40
    $region39: #{conv_block_forward.3} parent=5 // pred_region
      %s244 = ssub.s32 %s13, 1
      %s245 = smul.u32 8, %s23
      %p246 = scmp.lt.s32.totalorder %s22, 1
      %s247 = scalar_select %p246, %s22, 1
      %p248 = scmp.lt.s32.totalorder %s245, 15
      %s249 = scalar_select %p248, %s245, 15
      %s250 = smul.addr %s249, 2
      %s251 = smul.addr %s247, 32
      %s252 = sadd.s32 %s250, %s251
      %s253 = smul.addr %s252, 8
      %s254 = scalar_lea.vmem %s0, %s253
      %p255 = pneg %p53
      %p256 = pneg %p50
      %p257 = pneg %p74
      %p258 = pneg %p71
      %p259 = pneg %p95
      %p260 = pneg %p92
      %p261 = pneg %p116
      %p262 = pneg %p113
      %p263 = pneg %p137
      %p264 = pneg %p134
      %p265 = pneg %p165
      %p266 = pneg %p162
      %s267 = smul.u32 8, %s23
      %p268 = scmp.lt.s32.totalorder %s22, 1
      %s269 = scalar_select %p268, %s22, 1
      %p270 = scmp.lt.s32.totalorder %s267, 15
      %s271 = scalar_select %p270, %s267, 15
      %s272 = smul.addr %s271, 2
      %s273 = smul.addr %s269, 32
      %s274 = sadd.s32 %s272, %s273
      %s275 = smul.addr %s274, 4
      %s276 = scalar_lea.vmem %s5, %s275
      %p277 = pneg %p193
      %p278 = pneg %p190
      %p279 = scmp.lt.s32.totalorder %s22, 1
      %s280 = scalar_select %p279, %s22, 1
      %p281 = scmp.lt.s32.totalorder %s23, 1
      %s282 = scalar_select %p281, %s23, 1
      %s283 = smul.addr %s280, 2
      %s284 = sadd.s32 %s282, %s283
      %s285 = smul.addr %s284, 2
      %s286 = scalar_lea.vmem %s6, %s285
      %s287 = smul.u32 8, %s23
      %p288 = scmp.lt.s32.totalorder %s22, 1
      %s289 = scalar_select %p288, %s22, 1
      %p290 = scmp.lt.s32.totalorder %s287, 15
      %s291 = scalar_select %p290, %s287, 15
      %s292 = smul.addr %s291, 2
      %s293 = smul.addr %s289, 32
      %s294 = sadd.s32 %s292, %s293
      %s295 = smul.addr %s294, 8
      %s296 = scalar_lea.vmem %s0, %s295
      %s297 = smul.u32 8, %s23
      %s298 = smul.u32 8, %s23
      %p299 = scmp.lt.s32.totalorder %s22, 1
      %s300 = scalar_select %p299, %s22, 1
      %p301 = scmp.lt.s32.totalorder %s298, 15
      %s302 = scalar_select %p301, %s298, 15
      %s303 = smul.addr %s302, 2
      %s304 = smul.addr %s300, 32
      %s305 = sadd.s32 %s303, %s304
      %s306 = smul.addr %s305, 4
      %s307 = scalar_lea.vmem %s5, %s306
      %s308 = smul.u32 8, %s23
      %p309 = scmp.lt.s32.totalorder %s22, 1
      %s310 = scalar_select %p309, %s22, 1
      %p311 = scmp.lt.s32.totalorder %s23, 1
      %s312 = scalar_select %p311, %s23, 1
      %s313 = smul.addr %s310, 2
      %s314 = sadd.s32 %s312, %s313
      %s315 = smul.addr %s314, 2
      %s316 = scalar_lea.vmem %s6, %s315
      %v318 = vld [vmem:[%s296] sm:$0xff]
      %v319 = vld [vmem:[%s296 + $0x8] sm:$0xff]
      %v320 = vld [vmem:[%s296 + $0x10] sm:$0xff]
      %v321 = vld [vmem:[%s296 + $0x18] sm:$0xff]
      %v322 = vld [vmem:[%s296 + $0x20] sm:$0xff]
      %v323 = vld [vmem:[%s296 + $0x28] sm:$0xff]
      %v324 = vld [vmem:[%s296 + $0x30] sm:$0xff]
      %v325 = vld [vmem:[%s296 + $0x38] sm:$0xff]
      %v326 = vld [vmem:[%s296 + $0x40] sm:$0xff]
      %v327 = vld [vmem:[%s296 + $0x48] sm:$0xff]
      %v328 = vld [vmem:[%s296 + $0x50] sm:$0xff]
      %v329 = vld [vmem:[%s296 + $0x58] sm:$0xff]
      %v330 = vld [vmem:[%s296 + $0x60] sm:$0xff]
      %v331 = vld [vmem:[%s296 + $0x68] sm:$0xff]
      %v332 = vld [vmem:[%s296 + $0x70] sm:$0xff]
      %v333 = vld [vmem:[%s296 + $0x78] sm:$0xff]
      %v334 = vld [vmem:[%s1] sm:$0x1]
      %v336 = vlaneseq
      %v337 = vshrl.u32 %v336, 7
      %v338 = vsub.s32 0, %v337
      %v339 = vrot.slane %v334, %v338
      %v341 = vmul.f32 %v318, %v339
      %v342 = vmul.f32 %v319, %v339
      %v343 = vmul.f32 %v320, %v339
      %v344 = vmul.f32 %v321, %v339
      %v345 = vmul.f32 %v322, %v339
      %v346 = vmul.f32 %v323, %v339
      %v347 = vmul.f32 %v324, %v339
      %v348 = vmul.f32 %v325, %v339
      %v349 = vmul.f32 %v326, %v339
      %v350 = vmul.f32 %v327, %v339
      %v351 = vmul.f32 %v328, %v339
      %v352 = vmul.f32 %v329, %v339
      %v353 = vmul.f32 %v330, %v339
      %v354 = vmul.f32 %v331, %v339
      %v355 = vmul.f32 %v332, %v339
      %v356 = vmul.f32 %v333, %v339
      %v357 = vld [vmem:[%s2] sm:$0x1]
      %v359 = vlaneseq
      %v360 = vshrl.u32 %v359, 7
      %v361 = vsub.s32 0, %v360
      %v362 = vrot.slane %v357, %v361
      %v364 = vadd.f32 %v341, %v362
      %v365 = vadd.f32 %v342, %v362
      %v366 = vadd.f32 %v343, %v362
      %v367 = vadd.f32 %v344, %v362
      %v368 = vadd.f32 %v345, %v362
      %v369 = vadd.f32 %v346, %v362
      %v370 = vadd.f32 %v347, %v362
      %v371 = vadd.f32 %v348, %v362
      %v372 = vadd.f32 %v349, %v362
      %v373 = vadd.f32 %v350, %v362
      %v374 = vadd.f32 %v351, %v362
      %v375 = vadd.f32 %v352, %v362
      %v376 = vadd.f32 %v353, %v362
      %v377 = vadd.f32 %v354, %v362
      %v378 = vadd.f32 %v355, %v362
      %v379 = vadd.f32 %v356, %v362
      %v380 = vmax.f32 %v364, 0.0
      %v381 = vmax.f32 %v365, 0.0
      %v382 = vmax.f32 %v366, 0.0
      %v383 = vmax.f32 %v367, 0.0
      %v384 = vmax.f32 %v368, 0.0
      %v385 = vmax.f32 %v369, 0.0
      %v386 = vmax.f32 %v370, 0.0
      %v387 = vmax.f32 %v371, 0.0
      %v388 = vmax.f32 %v372, 0.0
      %v389 = vmax.f32 %v373, 0.0
      %v390 = vmax.f32 %v374, 0.0
      %v391 = vmax.f32 %v375, 0.0
      %v392 = vmax.f32 %v376, 0.0
      %v393 = vmax.f32 %v377, 0.0
      %v394 = vmax.f32 %v378, 0.0
      %v395 = vmax.f32 %v379, 0.0
      %v396 = vpack.c.bf16 %v381, %v380
      %v397 = vpack.c.bf16 %v383, %v382
      %v398 = vpack.c.bf16 %v385, %v384
      %v399 = vpack.c.bf16 %v387, %v386
      %v400 = vpack.c.bf16 %v389, %v388
      %v401 = vpack.c.bf16 %v391, %v390
      %v402 = vpack.c.bf16 %v393, %v392
      %v403 = vpack.c.bf16 %v395, %v394
      %v404 = vld [vmem:[%s3] sm:$0x3]
      %v405 = vld [vmem:[%s4] sm:$0x1]
      %v407 = vlaneseq
      %v408 = vshrl.u32 %v407, 7
      %v409 = vsub.s32 0, %v408
      %v410 = vrot.slane %v405, %v409
      %vm412 = vcmask 31744
      %v414 = vsel %vm412, %v396, 0
      %v417 = vsel %vm412, %v397, 0
      %v420 = vsel %vm412, %v398, 0
      %v423 = vsel %vm412, %v399, 0
      %v426 = vsel %vm412, %v400, 0
      %v429 = vsel %vm412, %v401, 0
      %v432 = vsel %vm412, %v402, 0
      %v435 = vsel %vm412, %v403, 0
      %vm437 = vcmask 1041408
      %v439 = vsel %vm437, %v404, 0
      %441 = vmatprep.subr.bf16.mxu0 0
      %442 = vmatpush1.bf16.msra.mxu0 %v439
      %443 = vmatprep.subr.bf16.mxu0 0
      %444 = vmatpush1.bf16.msra.mxu0 0
      %445 = vmatprep.subr.bf16.mxu0 0
      %446 = vmatpush1.bf16.msra.mxu0 0
      %447 = vmatprep.subr.bf16.mxu0 0
      %448 = vmatpush1.bf16.msra.mxu0 0
      %449 = vmatprep.subr.bf16.mxu0 0
      %450 = vmatpush1.bf16.msra.mxu0 0
      %451 = vmatprep.subr.bf16.mxu0 0
      %452 = vmatpush1.bf16.msra.mxu0 0
      %453 = vmatprep.subr.bf16.mxu0 0
      %454 = vmatpush1.bf16.msra.mxu0 0
      %455 = vmatprep.subr.bf16.mxu0 0
      %456 = vmatpush1.bf16.msra.mxu0 0
      %457 = vmatprep.subr.bf16.mxu0 0
      %458 = vmatpush1.bf16.msra.mxu0 0
      %459 = vmatprep.subr.bf16.mxu0 0
      %460 = vmatpush1.bf16.msra.mxu0 0
      %461 = vmatprep.subr.bf16.mxu0 0
      %462 = vmatpush1.bf16.msra.mxu0 0
      %463 = vmatprep.subr.bf16.mxu0 0
      %464 = vmatpush1.bf16.msra.mxu0 0
      %465 = vmatprep.subr.bf16.mxu0 0
      %466 = vmatpush1.bf16.msra.mxu0 0
      %467 = vmatprep.subr.bf16.mxu0 0
      %468 = vmatpush1.bf16.msra.mxu0 0
      %469 = vmatprep.subr.bf16.mxu0 0
      %470 = vmatpush1.bf16.msra.mxu0 0
      %471 = vmatprep.subr.bf16.mxu0 0
      %472 = vmatpush1.bf16.msra.mxu0 0
      %473 = vmatprep.mubr.bf16.mxu0 0
      %474 = vmatmul.mubr.bf16.gmra.mrb[0].mxu0 %v414
      %v475 = vpop.f32.mrb[0].mxu0
      %v476 = vadd.f32 %v410, %v475
      %v477 = vpop.f32.mrb[0].mxu0
      %v478 = vpop.f32.mrb[0].mxu0
      %v479 = vadd.f32 %v410, %v478
      %v480 = vpop.f32.mrb[0].mxu0
      %481 = vmatprep.mubr.bf16.mxu0 0
      %482 = vmatmul.mubr.bf16.gmra.mrb[0].mxu0 %v417
      %v483 = vpop.f32.mrb[0].mxu0
      %v484 = vadd.f32 %v410, %v483
      %v485 = vpop.f32.mrb[0].mxu0
      %v486 = vpop.f32.mrb[0].mxu0
      %v487 = vadd.f32 %v410, %v486
      %v488 = vpop.f32.mrb[0].mxu0
      %489 = vmatprep.mubr.bf16.mxu0 0
      %490 = vmatmul.mubr.bf16.gmra.mrb[0].mxu0 %v420
      %v491 = vpop.f32.mrb[0].mxu0
      %v492 = vadd.f32 %v410, %v491
      %v493 = vpop.f32.mrb[0].mxu0
      %v494 = vpop.f32.mrb[0].mxu0
      %v495 = vadd.f32 %v410, %v494
      %v496 = vpop.f32.mrb[0].mxu0
      %497 = vmatprep.mubr.bf16.mxu0 0
      %498 = vmatmul.mubr.bf16.gmra.mrb[0].mxu0 %v423
      %v499 = vpop.f32.mrb[0].mxu0
      %v500 = vadd.f32 %v410, %v499
      %v501 = vpop.f32.mrb[0].mxu0
      %v502 = vpop.f32.mrb[0].mxu0
      %v503 = vadd.f32 %v410, %v502
      %v504 = vpop.f32.mrb[0].mxu0
      %505 = vmatprep.mubr.bf16.mxu0 0
      %506 = vmatmul.mubr.bf16.gmra.mrb[0].mxu0 %v426
      %v507 = vpop.f32.mrb[0].mxu0
      %v508 = vadd.f32 %v410, %v507
      %v509 = vpop.f32.mrb[0].mxu0
      %v510 = vpop.f32.mrb[0].mxu0
      %v511 = vadd.f32 %v410, %v510
      %v512 = vpop.f32.mrb[0].mxu0
      %513 = vmatprep.mubr.bf16.mxu0 0
      %514 = vmatmul.mubr.bf16.gmra.mrb[0].mxu0 %v429
      %v515 = vpop.f32.mrb[0].mxu0
      %v516 = vadd.f32 %v410, %v515
      %v517 = vpop.f32.mrb[0].mxu0
      %v518 = vpop.f32.mrb[0].mxu0
      %v519 = vadd.f32 %v410, %v518
      %v520 = vpop.f32.mrb[0].mxu0
      %521 = vmatprep.mubr.bf16.mxu0 0
      %522 = vmatmul.mubr.bf16.gmra.mrb[0].mxu0 %v432
      %v523 = vpop.f32.mrb[0].mxu0
      %v524 = vadd.f32 %v410, %v523
      %v525 = vpop.f32.mrb[0].mxu0
      %v526 = vpop.f32.mrb[0].mxu0
      %v527 = vadd.f32 %v410, %v526
      %v528 = vpop.f32.mrb[0].mxu0
      %529 = vmatprep.mubr.bf16.mxu0 0
      %530 = vmatmul.mubr.bf16.gmra.mrb[0].mxu0 %v435
      %v531 = vpop.f32.mrb[0].mxu0
      %v532 = vadd.f32 %v410, %v531
      %v533 = vpop.f32.mrb[0].mxu0
      %v534 = vpop.f32.mrb[0].mxu0
      %v535 = vadd.f32 %v410, %v534
      %v536 = vpop.f32.mrb[0].mxu0
      %537 = vdwg.mxu0
      %v538 = vpack.c.bf16 %v479, %v476
      %v539 = vpack.c.bf16 %v487, %v484
      %v540 = vpack.c.bf16 %v495, %v492
      %v541 = vpack.c.bf16 %v503, %v500
      %v542 = vpack.c.bf16 %v511, %v508
      %v543 = vpack.c.bf16 %v519, %v516
      %v544 = vpack.c.bf16 %v527, %v524
      %v545 = vpack.c.bf16 %v535, %v532
      %v554 = vunpack.c.l.b16 %v538
      %v555 = vunpack.c.h.b16 %v538
      %v556 = vunpack.c.l.b16 %v539
      %v557 = vunpack.c.h.b16 %v539
      %v558 = vunpack.c.l.b16 %v540
      %v559 = vunpack.c.h.b16 %v540
      %v560 = vunpack.c.l.b16 %v541
      %v561 = vunpack.c.h.b16 %v541
      %v562 = vunpack.c.l.b16 %v542
      %v563 = vunpack.c.h.b16 %v542
      %v564 = vunpack.c.l.b16 %v543
      %v565 = vunpack.c.h.b16 %v543
      %v566 = vunpack.c.l.b16 %v544
      %v567 = vunpack.c.h.b16 %v544
      %v568 = vunpack.c.l.b16 %v545
      %v569 = vunpack.c.h.b16 %v545
      %v570 = vpack.c.b16 %v554, %v554
      %v571 = vpack.c.b16 %v555, %v555
      %v572 = vpack.c.b16 %v556, %v556
      %v573 = vpack.c.b16 %v557, %v557
      %v574 = vpack.c.b16 %v558, %v558
      %v575 = vpack.c.b16 %v559, %v559
      %v576 = vpack.c.b16 %v560, %v560
      %v577 = vpack.c.b16 %v561, %v561
      %v578 = vpack.c.b16 %v562, %v562
      %v579 = vpack.c.b16 %v563, %v563
      %v580 = vpack.c.b16 %v564, %v564
      %v581 = vpack.c.b16 %v565, %v565
      %v582 = vpack.c.b16 %v566, %v566
      %v583 = vpack.c.b16 %v567, %v567
      %v584 = vpack.c.b16 %v568, %v568
      %v585 = vpack.c.b16 %v569, %v569
      %vm602 = vcmask 27648
      %603 = vst.msk [vmem:[%s307] sm:$0xf] %vm602, %v570
      %604 = vst.msk [vmem:[%s307 + $0x4] sm:$0xf] %vm602, %v571
      %605 = vst.msk [vmem:[%s307 + $0x8] sm:$0xf] %vm602, %v572
      %606 = vst.msk [vmem:[%s307 + $0xc] sm:$0xf] %vm602, %v573
      %607 = vst.msk [vmem:[%s307 + $0x10] sm:$0xf] %vm602, %v574
      %608 = vst.msk [vmem:[%s307 + $0x14] sm:$0xf] %vm602, %v575
      %609 = vst.msk [vmem:[%s307 + $0x18] sm:$0xf] %vm602, %v576
      %610 = vst.msk [vmem:[%s307 + $0x1c] sm:$0xf] %vm602, %v577
      %611 = vst.msk [vmem:[%s307 + $0x20] sm:$0xf] %vm602, %v578
      %612 = vst.msk [vmem:[%s307 + $0x24] sm:$0xf] %vm602, %v579
      %613 = vst.msk [vmem:[%s307 + $0x28] sm:$0xf] %vm602, %v580
      %614 = vst.msk [vmem:[%s307 + $0x2c] sm:$0xf] %vm602, %v581
      %615 = vst.msk [vmem:[%s307 + $0x30] sm:$0xf] %vm602, %v582
      %616 = vst.msk [vmem:[%s307 + $0x34] sm:$0xf] %vm602, %v583
      %617 = vst.msk [vmem:[%s307 + $0x38] sm:$0xf] %vm602, %v584
      %618 = vst.msk [vmem:[%s307 + $0x3c] sm:$0xf] %vm602, %v585
      %v619 = vsel %vm412, %v476, 0.0
      %v620 = vsel %vm412, %v479, 0.0
      %v621 = vadd.f32 %v619, %v620
      %v622 = vsel %vm412, %v484, 0.0
      %v623 = vadd.f32 %v621, %v622
      %v624 = vsel %vm412, %v487, 0.0
      %v625 = vadd.f32 %v623, %v624
      %v626 = vsel %vm412, %v492, 0.0
      %v627 = vadd.f32 %v625, %v626
      %v628 = vsel %vm412, %v495, 0.0
      %v629 = vadd.f32 %v627, %v628
      %v630 = vsel %vm412, %v500, 0.0
      %v631 = vadd.f32 %v629, %v630
      %v632 = vsel %vm412, %v503, 0.0
      %v633 = vadd.f32 %v631, %v632
      %v634 = vsel %vm412, %v508, 0.0
      %v635 = vadd.f32 %v633, %v634
      %v636 = vsel %vm412, %v511, 0.0
      %v637 = vadd.f32 %v635, %v636
      %v638 = vsel %vm412, %v516, 0.0
      %v639 = vadd.f32 %v637, %v638
      %v640 = vsel %vm412, %v519, 0.0
      %v641 = vadd.f32 %v639, %v640
      %v642 = vsel %vm412, %v524, 0.0
      %v643 = vadd.f32 %v641, %v642
      %v644 = vsel %vm412, %v527, 0.0
      %v645 = vadd.f32 %v643, %v644
      %v646 = vsel %vm412, %v532, 0.0
      %v647 = vadd.f32 %v645, %v646
      %v648 = vsel %vm412, %v535, 0.0
      %v649 = vadd.f32 %v647, %v648
      %v650 = vrot.slane %v649, 4
      %v651 = vadd.f32 %v649, %v650
      %v652 = vrot.slane %v651, 2
      %v653 = vadd.f32 %v651, %v652
      %v654 = vrot.slane %v653, 1
      %v655 = vadd.f32 %v653, %v654
      %v656 = vmul.f32 %v476, %v476
      %v657 = vmul.f32 %v479, %v479
      %v658 = vmul.f32 %v484, %v484
      %v659 = vmul.f32 %v487, %v487
      %v660 = vmul.f32 %v492, %v492
      %v661 = vmul.f32 %v495, %v495
      %v662 = vmul.f32 %v500, %v500
      %v663 = vmul.f32 %v503, %v503
      %v664 = vmul.f32 %v508, %v508
      %v665 = vmul.f32 %v511, %v511
      %v666 = vmul.f32 %v516, %v516
      %v667 = vmul.f32 %v519, %v519
      %v668 = vmul.f32 %v524, %v524
      %v669 = vmul.f32 %v527, %v527
      %v670 = vmul.f32 %v532, %v532
      %v671 = vmul.f32 %v535, %v535
      %v672 = vsel %vm412, %v656, 0.0
      %v673 = vsel %vm412, %v657, 0.0
      %v674 = vadd.f32 %v672, %v673
      %v675 = vsel %vm412, %v658, 0.0
      %v676 = vadd.f32 %v674, %v675
      %v677 = vsel %vm412, %v659, 0.0
      %v678 = vadd.f32 %v676, %v677
      %v679 = vsel %vm412, %v660, 0.0
      %v680 = vadd.f32 %v678, %v679
      %v681 = vsel %vm412, %v661, 0.0
      %v682 = vadd.f32 %v680, %v681
      %v683 = vsel %vm412, %v662, 0.0
      %v684 = vadd.f32 %v682, %v683
      %v685 = vsel %vm412, %v663, 0.0
      %v686 = vadd.f32 %v684, %v685
      %v687 = vsel %vm412, %v664, 0.0
      %v688 = vadd.f32 %v686, %v687
      %v689 = vsel %vm412, %v665, 0.0
      %v690 = vadd.f32 %v688, %v689
      %v691 = vsel %vm412, %v666, 0.0
      %v692 = vadd.f32 %v690, %v691
      %v693 = vsel %vm412, %v667, 0.0
      %v694 = vadd.f32 %v692, %v693
      %v695 = vsel %vm412, %v668, 0.0
      %v696 = vadd.f32 %v694, %v695
      %v697 = vsel %vm412, %v669, 0.0
      %v698 = vadd.f32 %v696, %v697
      %v699 = vsel %vm412, %v670, 0.0
      %v700 = vadd.f32 %v698, %v699
      %v701 = vsel %vm412, %v671, 0.0
      %v702 = vadd.f32 %v700, %v701
      %v703 = vrot.slane %v702, 4
      %v704 = vadd.f32 %v702, %v703
      %v705 = vrot.slane %v704, 2
      %v706 = vadd.f32 %v704, %v705
      %v707 = vrot.slane %v706, 1
      %v708 = vadd.f32 %v706, %v707
      %vm709 = vcmask 1040384
      %v710 = vsel %vm709, %v655, %v708
      %vm711 = vcmask 25600
      %712 = vst.msk [vmem:[%s316] sm:$0x3] %vm711, %v710
      %s713 = smul.u32 8, %s23
      %p714 = scmp.lt.s32.totalorder %s22, 1
      %s715 = scalar_select %p714, %s22, 1
      %p716 = scmp.lt.s32.totalorder %s713, 15
      %s717 = scalar_select %p716, %s713, 15
      %s718 = smul.addr %s717, 2
      %s719 = smul.addr %s715, 32
      %s720 = sadd.s32 %s718, %s719
      %s721 = smul.addr %s720, 4
      %s722 = scalar_lea.vmem %s5, %s721
      %p723 = scmp.lt.s32.totalorder %s22, 1
      %s724 = scalar_select %p723, %s22, 1
      %p725 = scmp.lt.s32.totalorder %s23, 1
      %s726 = scalar_select %p725, %s23, 1
      %s727 = smul.addr %s724, 2
      %s728 = sadd.s32 %s726, %s727
      %s729 = smul.addr %s728, 2
      %s730 = scalar_lea.vmem %s6, %s729
      // Predicated region
      $region41: #{conv_block_forward.3} parent=39 // pred_check
        %p731 = pneg %p162
      $region42: #{conv_block_forward.3} parent=39 // pred_check_branch
        %733 = sbr.rel (%p731) target = $region44
      $region43: #{conv_block_forward.3} parent=39 // pred_region
        %s734 = smul.u32 8, %s23
      $region44: #{conv_block_forward.3} parent=39 // pred_fallthru
        _
      // Predicated region
      $region45: #{conv_block_forward.3} parent=39 // pred_check
        %p735 = pneg %p190
      $region46: #{conv_block_forward.3} parent=39 // pred_check_branch
        %737 = sbr.rel (%p735) target = $region48
      $region47: #{conv_block_forward.3} parent=39 // pred_region
        _
      $region48: #{conv_block_forward.3} parent=39 // pred_fallthru
        _
    $region40: #{conv_block_forward.3} parent=5 // pred_fallthru
      _
    %p738 = scmp.le.s32.totalorder 2, %s13
    // Predicated region
    $region49: #{conv_block_forward.3} parent=5 // pred_check
      %p739 = pneg %p738
    $region50: #{conv_block_forward.3} parent=5 // pred_check_branch
      %741 = sbr.rel (%p739) target = $region52
    $region51: #{conv_block_forward.3} parent=5 // pred_region
      %s742 = ssub.s32 %s13, 2
      // Predicated region
      $region53: #{conv_block_forward.3} parent=51 // pred_check
        %p743 = pneg %p168
      $region54: #{conv_block_forward.3} parent=51 // pred_check_branch
        %745 = sbr.rel (%p743) target = $region56
      $region55: #{conv_block_forward.3} parent=51 // pred_region
        %s746 = smul.u32 8, %s25
        %p747 = scmp.lt.s32.totalorder %s24, 1
        %s748 = scalar_select %p747, %s24, 1
        %p749 = scmp.lt.s32.totalorder %s746, 15
        %s750 = scalar_select %p749, %s746, 15
        %s751 = smul.addr %s750, 2
        %s752 = smul.addr %s748, 32
        %s753 = sadd.s32 %s751, %s752
        %s754 = smul.addr %s753, 4
        %s755 = scalar_lea.vmem %s5, %s754
      $region56: #{conv_block_forward.3} parent=51 // pred_fallthru
        _
      // Predicated region
      $region57: #{conv_block_forward.3} parent=51 // pred_check
        %p756 = pneg %p196
      $region58: #{conv_block_forward.3} parent=51 // pred_check_branch
        %758 = sbr.rel (%p756) target = $region60
      $region59: #{conv_block_forward.3} parent=51 // pred_region
        %p759 = scmp.lt.s32.totalorder %s24, 1
        %s760 = scalar_select %p759, %s24, 1
        %p761 = scmp.lt.s32.totalorder %s25, 1
        %s762 = scalar_select %p761, %s25, 1
        %s763 = smul.addr %s760, 2
        %s764 = sadd.s32 %s762, %s763
        %s765 = smul.addr %s764, 2
        %s766 = scalar_lea.vmem %s6, %s765
      $region60: #{conv_block_forward.3} parent=51 // pred_fallthru
        _
    $region52: #{conv_block_forward.3} parent=5 // pred_fallthru
      _
  $region6: #{conv_block_forward.3} parent=0 // loop_footer
    %s17 = sadd.s32 1, %s13
  $region7: #{conv_block_forward.3} parent=0 // loop_footer_branch
    %12 = sbr.rel target = $region3
  $region8: #{conv_block_forward.3} parent=0 // loop_exit
    _

// kernel: conv_block_forward.5
$region0: #{conv_block_forward.5}
  #allocation0 [shape = 'u32[]', space=smem, size = 0x4, offset = 0x4, fixed_abs, tag = 'smem constant byte address 0x4 - core index']
  #allocation1 [shape = 'u32[144,128]{1,0:T(1,128)}', space=vmem, size = 0x12000, scoped, tag = 'internal scratch']
  %s0 = inlined_call_operand.vmem [shape: bf16[2,16,16,4], index: 0, kind: input, shape index: {}]
  %s1 = inlined_call_operand.vmem [shape: f32[1,4], index: 1, kind: input, shape index: {}]
  %s2 = inlined_call_operand.vmem [shape: f32[1,4], index: 2, kind: input, shape index: {}]
  %s3 = inlined_call_operand.vmem [shape: bf16[4,8], index: 3, kind: input, shape index: {}]
  %s4 = inlined_call_operand.vmem [shape: f32[1,8], index: 4, kind: input, shape index: {}]
  %s5 = inlined_call_operand.vmem [shape: f32[2,16,16,8], index: 5, kind: output, shape index: {}]
  %s6 = sld [smem:[#allocation0]]
  $region53: #{conv_block_forward.5} parent=0
    _
  %s8 = ssub.s32 1, %s6
  %s9 = scalar_select 0, %s8, %s6
  loop: start=0, step=1, limit=6
  $region2: #{conv_block_forward.5} parent=0 // loop_pre_header
    _
  $region3: #{conv_block_forward.5} parent=0 // loop_header
    %s11 = sphi 0, %s15
    %p12 = scmp.ge.s32.totalorder %s11, 6
    %s18 = sphi 0, %s30
    %s19 = sphi 0, %s26
    %s20 = sphi 0, %s18
    %s21 = sphi 0, %s19
    %s22 = sphi 0, %s20
    %s23 = sphi 0, %s21
    %s35 = sphi 0, %s37
    %s38 = sphi 0, %s35
    %s39 = sphi 0, %s38
    %s55 = sphi 0, %s39
    %s59 = sphi 0, %s59
    %s61 = sphi 0, %s59
    %s62 = sphi 0, %s61
    %s76 = sphi 0, %s62
    %s80 = sphi 0, %s80
    %s82 = sphi 0, %s80
    %s83 = sphi 0, %s82
    %s97 = sphi 0, %s83
    %s101 = sphi 0, %s101
    %s103 = sphi 0, %s101
    %s104 = sphi 0, %s103
    %s118 = sphi 0, %s104
    %s122 = sphi 0, %s122
    %s124 = sphi 0, %s122
    %s125 = sphi 0, %s124
    %s139 = sphi 0, %s125
    %s147 = sphi 0, %s149
    %s150 = sphi 0, %s147
    %s151 = sphi 0, %s150
    %s167 = sphi 0, %s151
  $region4: #{conv_block_forward.5} parent=0 // loop_header_branch
    %14 = sbr.rel (%p12) target = $region8
  $region5: #{conv_block_forward.5} parent=0 // loop_body
    %s16 = ssub.s32 %s11, 1
    %s17 = ssub.s32 %s11, 2
    %s24 = sadd.s32 1, %s19
    %p25 = scmp.ge.s32.totalorder %s24, 2
    %s26 = scalar_select %p25, 0, %s24
    %s27 = sadd.s32 1, %s18
    %s28 = scalar_select %p25, %s27, %s18
    %p29 = scmp.ge.s32.totalorder %s28, 2
    %s30 = scalar_select %p29, 0, %s28
    %s31 = ssub.s32 %s18, %s30
    %s32 = ssub.s32 %s19, %s26
    %s33 = sor.u32 %s31, %s32
    %p34 = scmp.eq.s32.totalorder %s33, 0
    %s36 = sadd.s32 %s35, 1
    %s37 = scalar_select %p34, %s35, %s36
    %p40 = pneg %p34
    %p41 = scmp.eq.s32.totalorder %s11, 3
    %p42 = por %p40, %p41
    %p43 = scmp.ne.s32.totalorder %s35, %s38
    %p44 = scmp.eq.s32.totalorder %s11, 0
    %p45 = por %p43, %p44
    %p46 = scmp.ne.s32.totalorder %s35, %s38
    %p47 = scmp.eq.s32.totalorder %s16, 3
    %p48 = por %p46, %p47
    %p49 = scmp.ne.s32.totalorder %s38, %s39
    %p50 = scmp.eq.s32.totalorder %s16, 0
    %p51 = por %p49, %p50
    %p52 = scmp.ne.s32.totalorder %s38, %s39
    %p53 = scmp.eq.s32.totalorder %s17, 3
    %p54 = por %p52, %p53
    %p56 = scmp.ne.s32.totalorder %s39, %s55
    %p57 = scmp.eq.s32.totalorder %s17, 0
    %p58 = por %p56, %p57
    %s60 = sadd.s32 %s59, 1
    %p63 = scmp.eq.s32.totalorder %s11, 3
    %p64 = scmp.ne.s32.totalorder %s59, %s61
    %p65 = scmp.eq.s32.totalorder %s11, 0
    %p66 = por %p64, %p65
    %p67 = scmp.ne.s32.totalorder %s59, %s61
    %p68 = scmp.eq.s32.totalorder %s16, 3
    %p69 = por %p67, %p68
    %p70 = scmp.ne.s32.totalorder %s61, %s62
    %p71 = scmp.eq.s32.totalorder %s16, 0
    %p72 = por %p70, %p71
    %p73 = scmp.ne.s32.totalorder %s61, %s62
    %p74 = scmp.eq.s32.totalorder %s17, 3
    %p75 = por %p73, %p74
    %p77 = scmp.ne.s32.totalorder %s62, %s76
    %p78 = scmp.eq.s32.totalorder %s17, 0
    %p79 = por %p77, %p78
    %s81 = sadd.s32 %s80, 1
    %p84 = scmp.eq.s32.totalorder %s11, 3
    %p85 = scmp.ne.s32.totalorder %s80, %s82
    %p86 = scmp.eq.s32.totalorder %s11, 0
    %p87 = por %p85, %p86
    %p88 = scmp.ne.s32.totalorder %s80, %s82
    %p89 = scmp.eq.s32.totalorder %s16, 3
    %p90 = por %p88, %p89
    %p91 = scmp.ne.s32.totalorder %s82, %s83
    %p92 = scmp.eq.s32.totalorder %s16, 0
    %p93 = por %p91, %p92
    %p94 = scmp.ne.s32.totalorder %s82, %s83
    %p95 = scmp.eq.s32.totalorder %s17, 3
    %p96 = por %p94, %p95
    %p98 = scmp.ne.s32.totalorder %s83, %s97
    %p99 = scmp.eq.s32.totalorder %s17, 0
    %p100 = por %p98, %p99
    %s102 = sadd.s32 %s101, 1
    %p105 = scmp.eq.s32.totalorder %s11, 3
    %p106 = scmp.ne.s32.totalorder %s101, %s103
    %p107 = scmp.eq.s32.totalorder %s11, 0
    %p108 = por %p106, %p107
    %p109 = scmp.ne.s32.totalorder %s101, %s103
    %p110 = scmp.eq.s32.totalorder %s16, 3
    %p111 = por %p109, %p110
    %p112 = scmp.ne.s32.totalorder %s103, %s104
    %p113 = scmp.eq.s32.totalorder %s16, 0
    %p114 = por %p112, %p113
    %p115 = scmp.ne.s32.totalorder %s103, %s104
    %p116 = scmp.eq.s32.totalorder %s17, 3
    %p117 = por %p115, %p116
    %p119 = scmp.ne.s32.totalorder %s104, %s118
    %p120 = scmp.eq.s32.totalorder %s17, 0
    %p121 = por %p119, %p120
    %s123 = sadd.s32 %s122, 1
    %p126 = scmp.eq.s32.totalorder %s11, 3
    %p127 = scmp.ne.s32.totalorder %s122, %s124
    %p128 = scmp.eq.s32.totalorder %s11, 0
    %p129 = por %p127, %p128
    %p130 = scmp.ne.s32.totalorder %s122, %s124
    %p131 = scmp.eq.s32.totalorder %s16, 3
    %p132 = por %p130, %p131
    %p133 = scmp.ne.s32.totalorder %s124, %s125
    %p134 = scmp.eq.s32.totalorder %s16, 0
    %p135 = por %p133, %p134
    %p136 = scmp.ne.s32.totalorder %s124, %s125
    %p137 = scmp.eq.s32.totalorder %s17, 3
    %p138 = por %p136, %p137
    %p140 = scmp.ne.s32.totalorder %s125, %s139
    %p141 = scmp.eq.s32.totalorder %s17, 0
    %p142 = por %p140, %p141
    %s143 = ssub.s32 %s18, %s30
    %s144 = ssub.s32 %s19, %s26
    %s145 = sor.u32 %s143, %s144
    %p146 = scmp.eq.s32.totalorder %s145, 0
    %s148 = sadd.s32 %s147, 1
    %s149 = scalar_select %p146, %s147, %s148
    %p152 = pneg %p146
    %p153 = scmp.eq.s32.totalorder %s11, 3
    %p154 = por %p152, %p153
    %p155 = scmp.ne.s32.totalorder %s147, %s150
    %p156 = scmp.eq.s32.totalorder %s11, 0
    %p157 = por %p155, %p156
    %p158 = scmp.ne.s32.totalorder %s147, %s150
    %p159 = scmp.eq.s32.totalorder %s16, 3
    %p160 = por %p158, %p159
    %p161 = scmp.ne.s32.totalorder %s150, %s151
    %p162 = scmp.eq.s32.totalorder %s16, 0
    %p163 = por %p161, %p162
    %p164 = scmp.ne.s32.totalorder %s150, %s151
    %p165 = scmp.eq.s32.totalorder %s17, 3
    %p166 = por %p164, %p165
    %p168 = scmp.ne.s32.totalorder %s151, %s167
    %p169 = scmp.eq.s32.totalorder %s17, 0
    %p170 = por %p168, %p169
    %p171 = scmp.le.s32.totalorder 1, %s11
    %p172 = scmp.lt.s32.totalorder %s11, 5
    %p173 = pnand %p171, %p172
    %p174 = pneg %p173
    // Predicated region
    $region9: #{conv_block_forward.5} parent=5 // pred_check
      _
    $region10: #{conv_block_forward.5} parent=5 // pred_check_branch
      %176 = sbr.rel (%p173) target = $region12
    $region11: #{conv_block_forward.5} parent=5 // pred_region
      %s177 = ssub.s32 %s11, 1
      // Predicated region
      $region13: #{conv_block_forward.5} parent=11 // pred_check
        %p178 = pneg %p72
      $region14: #{conv_block_forward.5} parent=11 // pred_check_branch
        %180 = sbr.rel (%p178) target = $region16
      $region15: #{conv_block_forward.5} parent=11 // pred_region
        _
      $region16: #{conv_block_forward.5} parent=11 // pred_fallthru
        _
      // Predicated region
      $region17: #{conv_block_forward.5} parent=11 // pred_check
        %p181 = pneg %p93
      $region18: #{conv_block_forward.5} parent=11 // pred_check_branch
        %183 = sbr.rel (%p181) target = $region20
      $region19: #{conv_block_forward.5} parent=11 // pred_region
        _
      $region20: #{conv_block_forward.5} parent=11 // pred_fallthru
        _
      // Predicated region
      $region21: #{conv_block_forward.5} parent=11 // pred_check
        %p184 = pneg %p114
      $region22: #{conv_block_forward.5} parent=11 // pred_check_branch
        %186 = sbr.rel (%p184) target = $region24
      $region23: #{conv_block_forward.5} parent=11 // pred_region
        _
      $region24: #{conv_block_forward.5} parent=11 // pred_fallthru
        _
      // Predicated region
      $region25: #{conv_block_forward.5} parent=11 // pred_check
        %p187 = pneg %p135
      $region26: #{conv_block_forward.5} parent=11 // pred_check_branch
        %189 = sbr.rel (%p187) target = $region28
      $region27: #{conv_block_forward.5} parent=11 // pred_region
        _
      $region28: #{conv_block_forward.5} parent=11 // pred_fallthru
        _
    $region12: #{conv_block_forward.5} parent=5 // pred_fallthru
      _
    %p190 = scmp.lt.s32.totalorder %s11, 4
    // Predicated region
    $region29: #{conv_block_forward.5} parent=5 // pred_check
      %p191 = pneg %p190
    $region30: #{conv_block_forward.5} parent=5 // pred_check_branch
      %193 = sbr.rel (%p191) target = $region32
    $region31: #{conv_block_forward.5} parent=5 // pred_region
      // Predicated region
      $region33: #{conv_block_forward.5} parent=31 // pred_check
        %p194 = pneg %p45
      $region34: #{conv_block_forward.5} parent=31 // pred_check_branch
        %196 = sbr.rel (%p194) target = $region36
      $region35: #{conv_block_forward.5} parent=31 // pred_region
        %s197 = smul.u32 8, %s19
        %p198 = scmp.lt.s32.totalorder %s18, 1
        %s199 = scalar_select %p198, %s18, 1
        %p200 = scmp.lt.s32.totalorder %s197, 15
        %s201 = scalar_select %p200, %s197, 15
        %s202 = smul.addr %s201, 2
        %s203 = smul.addr %s199, 32
        %s204 = sadd.s32 %s202, %s203
        %s205 = smul.addr %s204, 4
        %s206 = scalar_lea.vmem %s0, %s205
        %s207 = smul.u32 8, %s19
      $region36: #{conv_block_forward.5} parent=31 // pred_fallthru
        _
    $region32: #{conv_block_forward.5} parent=5 // pred_fallthru
      _
    %p208 = scmp.le.s32.totalorder 1, %s11
    %p209 = scmp.lt.s32.totalorder %s11, 5
    %p210 = pnand %p208, %p209
    %p211 = pneg %p210
    // Predicated region
    $region37: #{conv_block_forward.5} parent=5 // pred_check
      _
    $region38: #{conv_block_forward.5} parent=5 // pred_check_branch
      %213 = sbr.rel (%p210) target = $region40
    $region39: #{conv_block_forward.5} parent=5 // pred_region
      %s214 = ssub.s32 %s11, 1
      %s215 = smul.u32 8, %s21
      %p216 = scmp.lt.s32.totalorder %s20, 1
      %s217 = scalar_select %p216, %s20, 1
      %p218 = scmp.lt.s32.totalorder %s215, 15
      %s219 = scalar_select %p218, %s215, 15
      %s220 = smul.addr %s219, 2
      %s221 = smul.addr %s217, 32
      %s222 = sadd.s32 %s220, %s221
      %s223 = smul.addr %s222, 4
      %s224 = scalar_lea.vmem %s0, %s223
      %p225 = pneg %p51
      %p226 = pneg %p48
      %p227 = pneg %p72
      %p228 = pneg %p69
      %p229 = pneg %p93
      %p230 = pneg %p90
      %p231 = pneg %p114
      %p232 = pneg %p111
      %p233 = pneg %p135
      %p234 = pneg %p132
      %p235 = pneg %p163
      %p236 = pneg %p160
      %s237 = smul.u32 8, %s21
      %p238 = scmp.lt.s32.totalorder %s20, 1
      %s239 = scalar_select %p238, %s20, 1
      %p240 = scmp.lt.s32.totalorder %s237, 15
      %s241 = scalar_select %p240, %s237, 15
      %s242 = smul.addr %s241, 2
      %s243 = smul.addr %s239, 32
      %s244 = sadd.s32 %s242, %s243
      %s245 = smul.addr %s244, 8
      %s246 = scalar_lea.vmem %s5, %s245
      %s247 = smul.u32 8, %s21
      %p248 = scmp.lt.s32.totalorder %s20, 1
      %s249 = scalar_select %p248, %s20, 1
      %p250 = scmp.lt.s32.totalorder %s247, 15
      %s251 = scalar_select %p250, %s247, 15
      %s252 = smul.addr %s251, 2
      %s253 = smul.addr %s249, 32
      %s254 = sadd.s32 %s252, %s253
      %s255 = smul.addr %s254, 4
      %s256 = scalar_lea.vmem %s0, %s255
      %s257 = smul.u32 8, %s21
      %s258 = smul.u32 8, %s21
      %p259 = scmp.lt.s32.totalorder %s20, 1
      %s260 = scalar_select %p259, %s20, 1
      %p261 = scmp.lt.s32.totalorder %s258, 15
      %s262 = scalar_select %p261, %s258, 15
      %s263 = smul.addr %s262, 2
      %s264 = smul.addr %s260, 32
      %s265 = sadd.s32 %s263, %s264
      %s266 = smul.addr %s265, 8
      %s267 = scalar_lea.vmem %s5, %s266
      %s268 = smul.u32 8, %s21
      %v270 = vld [vmem:[%s256] sm:$0xf]
      %v271 = vld [vmem:[%s256 + $0x4] sm:$0xf]
      %v272 = vld [vmem:[%s256 + $0x8] sm:$0xf]
      %v273 = vld [vmem:[%s256 + $0xc] sm:$0xf]
      %v274 = vld [vmem:[%s256 + $0x10] sm:$0xf]
      %v275 = vld [vmem:[%s256 + $0x14] sm:$0xf]
      %v276 = vld [vmem:[%s256 + $0x18] sm:$0xf]
      %v277 = vld [vmem:[%s256 + $0x1c] sm:$0xf]
      %v278 = vld [vmem:[%s256 + $0x20] sm:$0xf]
      %v279 = vld [vmem:[%s256 + $0x24] sm:$0xf]
      %v280 = vld [vmem:[%s256 + $0x28] sm:$0xf]
      %v281 = vld [vmem:[%s256 + $0x2c] sm:$0xf]
      %v282 = vld [vmem:[%s256 + $0x30] sm:$0xf]
      %v283 = vld [vmem:[%s256 + $0x34] sm:$0xf]
      %v284 = vld [vmem:[%s256 + $0x38] sm:$0xf]
      %v285 = vld [vmem:[%s256 + $0x3c] sm:$0xf]
      %v286 = vunpack.c.l.bf16 %v270
      %v287 = vunpack.c.l.bf16 %v271
      %v288 = vunpack.c.l.bf16 %v272
      %v289 = vunpack.c.l.bf16 %v273
      %v290 = vunpack.c.l.bf16 %v274
      %v291 = vunpack.c.l.bf16 %v275
      %v292 = vunpack.c.l.bf16 %v276
      %v293 = vunpack.c.l.bf16 %v277
      %v294 = vunpack.c.l.bf16 %v278
      %v295 = vunpack.c.l.bf16 %v279
      %v296 = vunpack.c.l.bf16 %v280
      %v297 = vunpack.c.l.bf16 %v281
      %v298 = vunpack.c.l.bf16 %v282
      %v299 = vunpack.c.l.bf16 %v283
      %v300 = vunpack.c.l.bf16 %v284
      %v301 = vunpack.c.l.bf16 %v285
      %v302 = vld [vmem:[%s1] sm:$0x1]
      %v304 = vlaneseq
      %v305 = vshrl.u32 %v304, 7
      %v306 = vsub.s32 0, %v305
      %v307 = vrot.slane %v302, %v306
      %v309 = vmul.f32 %v286, %v307
      %v310 = vmul.f32 %v287, %v307
      %v311 = vmul.f32 %v288, %v307
      %v312 = vmul.f32 %v289, %v307
      %v313 = vmul.f32 %v290, %v307
      %v314 = vmul.f32 %v291, %v307
      %v315 = vmul.f32 %v292, %v307
      %v316 = vmul.f32 %v293, %v307
      %v317 = vmul.f32 %v294, %v307
      %v318 = vmul.f32 %v295, %v307
      %v319 = vmul.f32 %v296, %v307
      %v320 = vmul.f32 %v297, %v307
      %v321 = vmul.f32 %v298, %v307
      %v322 = vmul.f32 %v299, %v307
      %v323 = vmul.f32 %v300, %v307
      %v324 = vmul.f32 %v301, %v307
      %v325 = vld [vmem:[%s2] sm:$0x1]
      %v327 = vlaneseq
      %v328 = vshrl.u32 %v327, 7
      %v329 = vsub.s32 0, %v328
      %v330 = vrot.slane %v325, %v329
      %v332 = vadd.f32 %v309, %v330
      %v333 = vadd.f32 %v310, %v330
      %v334 = vadd.f32 %v311, %v330
      %v335 = vadd.f32 %v312, %v330
      %v336 = vadd.f32 %v313, %v330
      %v337 = vadd.f32 %v314, %v330
      %v338 = vadd.f32 %v315, %v330
      %v339 = vadd.f32 %v316, %v330
      %v340 = vadd.f32 %v317, %v330
      %v341 = vadd.f32 %v318, %v330
      %v342 = vadd.f32 %v319, %v330
      %v343 = vadd.f32 %v320, %v330
      %v344 = vadd.f32 %v321, %v330
      %v345 = vadd.f32 %v322, %v330
      %v346 = vadd.f32 %v323, %v330
      %v347 = vadd.f32 %v324, %v330
      %v348 = vmax.f32 %v332, 0.0
      %v349 = vmax.f32 %v333, 0.0
      %v350 = vmax.f32 %v334, 0.0
      %v351 = vmax.f32 %v335, 0.0
      %v352 = vmax.f32 %v336, 0.0
      %v353 = vmax.f32 %v337, 0.0
      %v354 = vmax.f32 %v338, 0.0
      %v355 = vmax.f32 %v339, 0.0
      %v356 = vmax.f32 %v340, 0.0
      %v357 = vmax.f32 %v341, 0.0
      %v358 = vmax.f32 %v342, 0.0
      %v359 = vmax.f32 %v343, 0.0
      %v360 = vmax.f32 %v344, 0.0
      %v361 = vmax.f32 %v345, 0.0
      %v362 = vmax.f32 %v346, 0.0
      %v363 = vmax.f32 %v347, 0.0
      %v364 = vpack.c.bf16 %v349, %v348
      %v365 = vpack.c.bf16 %v351, %v350
      %v366 = vpack.c.bf16 %v353, %v352
      %v367 = vpack.c.bf16 %v355, %v354
      %v368 = vpack.c.bf16 %v357, %v356
      %v369 = vpack.c.bf16 %v359, %v358
      %v370 = vpack.c.bf16 %v361, %v360
      %v371 = vpack.c.bf16 %v363, %v362
      %v372 = vld [vmem:[%s3] sm:$0x3]
      %v373 = vld [vmem:[%s4] sm:$0x1]
      %v375 = vlaneseq
      %v376 = vshrl.u32 %v375, 7
      %v377 = vsub.s32 0, %v376
      %v378 = vrot.slane %v373, %v377
      %vm380 = vcmask 31744
      %v382 = vsel %vm380, %v364, 0
      %v385 = vsel %vm380, %v365, 0
      %v388 = vsel %vm380, %v366, 0
      %v391 = vsel %vm380, %v367, 0
      %v394 = vsel %vm380, %v368, 0
      %v397 = vsel %vm380, %v369, 0
      %v400 = vsel %vm380, %v370, 0
      %v403 = vsel %vm380, %v371, 0
      %vm405 = vcmask 1041408
      %v407 = vsel %vm405, %v372, 0
      %409 = vmatprep.subr.bf16.mxu0 0
      %410 = vmatpush1.bf16.msra.mxu0 %v407
      %411 = vmatprep.subr.bf16.mxu0 0
      %412 = vmatpush1.bf16.msra.mxu0 0
      %413 = vmatprep.subr.bf16.mxu0 0
      %414 = vmatpush1.bf16.msra.mxu0 0
      %415 = vmatprep.subr.bf16.mxu0 0
      %416 = vmatpush1.bf16.msra.mxu0 0
      %417 = vmatprep.subr.bf16.mxu0 0
      %418 = vmatpush1.bf16.msra.mxu0 0
      %419 = vmatprep.subr.bf16.mxu0 0
      %420 = vmatpush1.bf16.msra.mxu0 0
      %421 = vmatprep.subr.bf16.mxu0 0
      %422 = vmatpush1.bf16.msra.mxu0 0
      %423 = vmatprep.subr.bf16.mxu0 0
      %424 = vmatpush1.bf16.msra.mxu0 0
      %425 = vmatprep.subr.bf16.mxu0 0
      %426 = vmatpush1.bf16.msra.mxu0 0
      %427 = vmatprep.subr.bf16.mxu0 0
      %428 = vmatpush1.bf16.msra.mxu0 0
      %429 = vmatprep.subr.bf16.mxu0 0
      %430 = vmatpush1.bf16.msra.mxu0 0
      %431 = vmatprep.subr.bf16.mxu0 0
      %432 = vmatpush1.bf16.msra.mxu0 0
      %433 = vmatprep.subr.bf16.mxu0 0
      %434 = vmatpush1.bf16.msra.mxu0 0
      %435 = vmatprep.subr.bf16.mxu0 0
      %436 = vmatpush1.bf16.msra.mxu0 0
      %437 = vmatprep.subr.bf16.mxu0 0
      %438 = vmatpush1.bf16.msra.mxu0 0
      %439 = vmatprep.subr.bf16.mxu0 0
      %440 = vmatpush1.bf16.msra.mxu0 0
      %441 = vmatprep.mubr.bf16.mxu0 0
      %442 = vmatmul.mubr.bf16.gmra.mrb[0].mxu0 %v382
      %v443 = vpop.f32.mrb[0].mxu0
      %v444 = vadd.f32 %v378, %v443
      %v445 = vpop.f32.mrb[0].mxu0
      %v446 = vpop.f32.mrb[0].mxu0
      %v447 = vadd.f32 %v378, %v446
      %v448 = vpop.f32.mrb[0].mxu0
      %449 = vmatprep.mubr.bf16.mxu0 0
      %450 = vmatmul.mubr.bf16.gmra.mrb[0].mxu0 %v385
      %v451 = vpop.f32.mrb[0].mxu0
      %v452 = vadd.f32 %v378, %v451
      %v453 = vpop.f32.mrb[0].mxu0
      %v454 = vpop.f32.mrb[0].mxu0
      %v455 = vadd.f32 %v378, %v454
      %v456 = vpop.f32.mrb[0].mxu0
      %457 = vmatprep.mubr.bf16.mxu0 0
      %458 = vmatmul.mubr.bf16.gmra.mrb[0].mxu0 %v388
      %v459 = vpop.f32.mrb[0].mxu0
      %v460 = vadd.f32 %v378, %v459
      %v461 = vpop.f32.mrb[0].mxu0
      %v462 = vpop.f32.mrb[0].mxu0
      %v463 = vadd.f32 %v378, %v462
      %v464 = vpop.f32.mrb[0].mxu0
      %465 = vmatprep.mubr.bf16.mxu0 0
      %466 = vmatmul.mubr.bf16.gmra.mrb[0].mxu0 %v391
      %v467 = vpop.f32.mrb[0].mxu0
      %v468 = vadd.f32 %v378, %v467
      %v469 = vpop.f32.mrb[0].mxu0
      %v470 = vpop.f32.mrb[0].mxu0
      %v471 = vadd.f32 %v378, %v470
      %v472 = vpop.f32.mrb[0].mxu0
      %473 = vmatprep.mubr.bf16.mxu0 0
      %474 = vmatmul.mubr.bf16.gmra.mrb[0].mxu0 %v394
      %v475 = vpop.f32.mrb[0].mxu0
      %v476 = vadd.f32 %v378, %v475
      %v477 = vpop.f32.mrb[0].mxu0
      %v478 = vpop.f32.mrb[0].mxu0
      %v479 = vadd.f32 %v378, %v478
      %v480 = vpop.f32.mrb[0].mxu0
      %481 = vmatprep.mubr.bf16.mxu0 0
      %482 = vmatmul.mubr.bf16.gmra.mrb[0].mxu0 %v397
      %v483 = vpop.f32.mrb[0].mxu0
      %v484 = vadd.f32 %v378, %v483
      %v485 = vpop.f32.mrb[0].mxu0
      %v486 = vpop.f32.mrb[0].mxu0
      %v487 = vadd.f32 %v378, %v486
      %v488 = vpop.f32.mrb[0].mxu0
      %489 = vmatprep.mubr.bf16.mxu0 0
      %490 = vmatmul.mubr.bf16.gmra.mrb[0].mxu0 %v400
      %v491 = vpop.f32.mrb[0].mxu0
      %v492 = vadd.f32 %v378, %v491
      %v493 = vpop.f32.mrb[0].mxu0
      %v494 = vpop.f32.mrb[0].mxu0
      %v495 = vadd.f32 %v378, %v494
      %v496 = vpop.f32.mrb[0].mxu0
      %497 = vmatprep.mubr.bf16.mxu0 0
      %498 = vmatmul.mubr.bf16.gmra.mrb[0].mxu0 %v403
      %v499 = vpop.f32.mrb[0].mxu0
      %v500 = vadd.f32 %v378, %v499
      %v501 = vpop.f32.mrb[0].mxu0
      %v502 = vpop.f32.mrb[0].mxu0
      %v503 = vadd.f32 %v378, %v502
      %v504 = vpop.f32.mrb[0].mxu0
      %505 = vdwg.mxu0
      %vm506 = vcmask 64512
      %507 = vst.msk [vmem:[%s267] sm:$0xff] %vm506, %v444
      %508 = vst.msk [vmem:[%s267 + $0x8] sm:$0xff] %vm506, %v447
      %509 = vst.msk [vmem:[%s267 + $0x10] sm:$0xff] %vm506, %v452
      %510 = vst.msk [vmem:[%s267 + $0x18] sm:$0xff] %vm506, %v455
      %511 = vst.msk [vmem:[%s267 + $0x20] sm:$0xff] %vm506, %v460
      %512 = vst.msk [vmem:[%s267 + $0x28] sm:$0xff] %vm506, %v463
      %513 = vst.msk [vmem:[%s267 + $0x30] sm:$0xff] %vm506, %v468
      %514 = vst.msk [vmem:[%s267 + $0x38] sm:$0xff] %vm506, %v471
      %515 = vst.msk [vmem:[%s267 + $0x40] sm:$0xff] %vm506, %v476
      %516 = vst.msk [vmem:[%s267 + $0x48] sm:$0xff] %vm506, %v479
      %517 = vst.msk [vmem:[%s267 + $0x50] sm:$0xff] %vm506, %v484
      %518 = vst.msk [vmem:[%s267 + $0x58] sm:$0xff] %vm506, %v487
      %519 = vst.msk [vmem:[%s267 + $0x60] sm:$0xff] %vm506, %v492
      %520 = vst.msk [vmem:[%s267 + $0x68] sm:$0xff] %vm506, %v495
      %521 = vst.msk [vmem:[%s267 + $0x70] sm:$0xff] %vm506, %v500
      %522 = vst.msk [vmem:[%s267 + $0x78] sm:$0xff] %vm506, %v503
      %s523 = smul.u32 8, %s21
      %p524 = scmp.lt.s32.totalorder %s20, 1
      %s525 = scalar_select %p524, %s20, 1
      %p526 = scmp.lt.s32.totalorder %s523, 15
      %s527 = scalar_select %p526, %s523, 15
      %s528 = smul.addr %s527, 2
      %s529 = smul.addr %s525, 32
      %s530 = sadd.s32 %s528, %s529
      %s531 = smul.addr %s530, 8
      %s532 = scalar_lea.vmem %s5, %s531
      // Predicated region
      $region41: #{conv_block_forward.5} parent=39 // pred_check
        %p533 = pneg %p160
      $region42: #{conv_block_forward.5} parent=39 // pred_check_branch
        %535 = sbr.rel (%p533) target = $region44
      $region43: #{conv_block_forward.5} parent=39 // pred_region
        %s536 = smul.u32 8, %s21
      $region44: #{conv_block_forward.5} parent=39 // pred_fallthru
        _
    $region40: #{conv_block_forward.5} parent=5 // pred_fallthru
      _
    %p537 = scmp.le.s32.totalorder 2, %s11
    // Predicated region
    $region45: #{conv_block_forward.5} parent=5 // pred_check
      %p538 = pneg %p537
    $region46: #{conv_block_forward.5} parent=5 // pred_check_branch
      %540 = sbr.rel (%p538) target = $region48
    $region47: #{conv_block_forward.5} parent=5 // pred_region
      %s541 = ssub.s32 %s11, 2
      // Predicated region
      $region49: #{conv_block_forward.5} parent=47 // pred_check
        %p542 = pneg %p166
      $region50: #{conv_block_forward.5} parent=47 // pred_check_branch
        %544 = sbr.rel (%p542) target = $region52
      $region51: #{conv_block_forward.5} parent=47 // pred_region
        %s545 = smul.u32 8, %s23
        %p546 = scmp.lt.s32.totalorder %s22, 1
        %s547 = scalar_select %p546, %s22, 1
        %p548 = scmp.lt.s32.totalorder %s545, 15
        %s549 = scalar_select %p548, %s545, 15
        %s550 = smul.addr %s549, 2
        %s551 = smul.addr %s547, 32
        %s552 = sadd.s32 %s550, %s551
        %s553 = smul.addr %s552, 8
        %s554 = scalar_lea.vmem %s5, %s553
      $region52: #{conv_block_forward.5} parent=47 // pred_fallthru
        _
    $region48: #{conv_block_forward.5} parent=5 // pred_fallthru
      _
  $region6: #{conv_block_forward.5} parent=0 // loop_footer
    %s15 = sadd.s32 1, %s11
  $region7: #{conv_block_forward.5} parent=0 // loop_footer_branch
    %10 = sbr.rel target = $region3
  $region8: #{conv_block_forward.5} parent=0 // loop_exit
    _

// kernel: conv_block_forward.4
$region0: #{conv_block_forward.4}
  #allocation0 [shape = 'u32[]', space=smem, size = 0x4, offset = 0x4, fixed_abs, tag = 'smem constant byte address 0x4 - core index']
  #allocation1 [shape = 'u32[144,128]{1,0:T(1,128)}', space=vmem, size = 0x12000, scoped, tag = 'internal scratch']
  %s0 = inlined_call_operand.vmem [shape: bf16[2,16,16,4], index: 0, kind: input, shape index: {}]
  %s1 = inlined_call_operand.vmem [shape: f32[1,4], index: 1, kind: input, shape index: {}]
  %s2 = inlined_call_operand.vmem [shape: f32[1,4], index: 2, kind: input, shape index: {}]
  %s3 = inlined_call_operand.vmem [shape: bf16[3,12,4], index: 3, kind: input, shape index: {}]
  %s4 = inlined_call_operand.vmem [shape: f32[1,4], index: 4, kind: input, shape index: {}]
  %s5 = inlined_call_operand.vmem [shape: bf16[2,16,16,4], index: 5, kind: output, shape index: {0}]
  %s6 = inlined_call_operand.vmem [shape: f32[2,2,4], index: 6, kind: output, shape index: {1}]
  %7 = xla_tuple %s5, %s6
  %s8 = sld [smem:[#allocation0]]
  $region61: #{conv_block_forward.4} parent=0
    _
  %s10 = ssub.s32 1, %s8
  %s11 = scalar_select 0, %s10, %s8
  loop: start=0, step=1, limit=4
  $region2: #{conv_block_forward.4} parent=0 // loop_pre_header
    _
  $region3: #{conv_block_forward.4} parent=0 // loop_header
    %s13 = sphi 0, %s17
    %p14 = scmp.ge.s32.totalorder %s13, 4
    %s23 = sphi 0, %s25
    %s26 = sphi 0, %s23
    %s27 = sphi 0, %s26
    %s43 = sphi 0, %s27
    %s47 = sphi 0, %s47
    %s49 = sphi 0, %s47
    %s50 = sphi 0, %s49
    %s64 = sphi 0, %s50
    %s68 = sphi 0, %s68
    %s70 = sphi 0, %s68
    %s71 = sphi 0, %s70
    %s85 = sphi 0, %s71
    %s89 = sphi 0, %s89
    %s91 = sphi 0, %s89
    %s92 = sphi 0, %s91
    %s106 = sphi 0, %s92
    %s110 = sphi 0, %s110
    %s112 = sphi 0, %s110
    %s113 = sphi 0, %s112
    %s127 = sphi 0, %s113
    %s133 = sphi 0, %s135
    %s136 = sphi 0, %s133
    %s137 = sphi 0, %s136
    %s153 = sphi 0, %s137
    %s159 = sphi 0, %s161
    %s162 = sphi 0, %s159
    %s163 = sphi 0, %s162
    %s179 = sphi 0, %s163
  $region4: #{conv_block_forward.4} parent=0 // loop_header_branch
    %16 = sbr.rel (%p14) target = $region8
  $region5: #{conv_block_forward.4} parent=0 // loop_body
    %s18 = ssub.s32 %s13, 1
    %s19 = ssub.s32 %s13, 2
    %s20 = sadd.s32 %s13, 1
    %s21 = ssub.s32 %s13, %s20
    %p22 = scmp.eq.s32.totalorder %s21, 0
    %s24 = sadd.s32 %s23, 1
    %s25 = scalar_select %p22, %s23, %s24
    %p28 = pneg %p22
    %p29 = scmp.eq.s32.totalorder %s13, 1
    %p30 = por %p28, %p29
    %p31 = scmp.ne.s32.totalorder %s23, %s26
    %p32 = scmp.eq.s32.totalorder %s13, 0
    %p33 = por %p31, %p32
    %p34 = scmp.ne.s32.totalorder %s23, %s26
    %p35 = scmp.eq.s32.totalorder %s18, 1
    %p36 = por %p34, %p35
    %p37 = scmp.ne.s32.totalorder %s26, %s27
    %p38 = scmp.eq.s32.totalorder %s18, 0
    %p39 = por %p37, %p38
    %p40 = scmp.ne.s32.totalorder %s26, %s27
    %p41 = scmp.eq.s32.totalorder %s19, 1
    %p42 = por %p40, %p41
    %p44 = scmp.ne.s32.totalorder %s27, %s43
    %p45 = scmp.eq.s32.totalorder %s19, 0
    %p46 = por %p44, %p45
    %s48 = sadd.s32 %s47, 1
    %p51 = scmp.eq.s32.totalorder %s13, 1
    %p52 = scmp.ne.s32.totalorder %s47, %s49
    %p53 = scmp.eq.s32.totalorder %s13, 0
    %p54 = por %p52, %p53
    %p55 = scmp.ne.s32.totalorder %s47, %s49
    %p56 = scmp.eq.s32.totalorder %s18, 1
    %p57 = por %p55, %p56
    %p58 = scmp.ne.s32.totalorder %s49, %s50
    %p59 = scmp.eq.s32.totalorder %s18, 0
    %p60 = por %p58, %p59
    %p61 = scmp.ne.s32.totalorder %s49, %s50
    %p62 = scmp.eq.s32.totalorder %s19, 1
    %p63 = por %p61, %p62
    %p65 = scmp.ne.s32.totalorder %s50, %s64
    %p66 = scmp.eq.s32.totalorder %s19, 0
    %p67 = por %p65, %p66
    %s69 = sadd.s32 %s68, 1
    %p72 = scmp.eq.s32.totalorder %s13, 1
    %p73 = scmp.ne.s32.totalorder %s68, %s70
    %p74 = scmp.eq.s32.totalorder %s13, 0
    %p75 = por %p73, %p74
    %p76 = scmp.ne.s32.totalorder %s68, %s70
    %p77 = scmp.eq.s32.totalorder %s18, 1
    %p78 = por %p76, %p77
    %p79 = scmp.ne.s32.totalorder %s70, %s71
    %p80 = scmp.eq.s32.totalorder %s18, 0
    %p81 = por %p79, %p80
    %p82 = scmp.ne.s32.totalorder %s70, %s71
    %p83 = scmp.eq.s32.totalorder %s19, 1
    %p84 = por %p82, %p83
    %p86 = scmp.ne.s32.totalorder %s71, %s85
    %p87 = scmp.eq.s32.totalorder %s19, 0
    %p88 = por %p86, %p87
    %s90 = sadd.s32 %s89, 1
    %p93 = scmp.eq.s32.totalorder %s13, 1
    %p94 = scmp.ne.s32.totalorder %s89, %s91
    %p95 = scmp.eq.s32.totalorder %s13, 0
    %p96 = por %p94, %p95
    %p97 = scmp.ne.s32.totalorder %s89, %s91
    %p98 = scmp.eq.s32.totalorder %s18, 1
    %p99 = por %p97, %p98
    %p100 = scmp.ne.s32.totalorder %s91, %s92
    %p101 = scmp.eq.s32.totalorder %s18, 0
    %p102 = por %p100, %p101
    %p103 = scmp.ne.s32.totalorder %s91, %s92
    %p104 = scmp.eq.s32.totalorder %s19, 1
    %p105 = por %p103, %p104
    %p107 = scmp.ne.s32.totalorder %s92, %s106
    %p108 = scmp.eq.s32.totalorder %s19, 0
    %p109 = por %p107, %p108
    %s111 = sadd.s32 %s110, 1
    %p114 = scmp.eq.s32.totalorder %s13, 1
    %p115 = scmp.ne.s32.totalorder %s110, %s112
    %p116 = scmp.eq.s32.totalorder %s13, 0
    %p117 = por %p115, %p116
    %p118 = scmp.ne.s32.totalorder %s110, %s112
    %p119 = scmp.eq.s32.totalorder %s18, 1
    %p120 = por %p118, %p119
    %p121 = scmp.ne.s32.totalorder %s112, %s113
    %p122 = scmp.eq.s32.totalorder %s18, 0
    %p123 = por %p121, %p122
    %p124 = scmp.ne.s32.totalorder %s112, %s113
    %p125 = scmp.eq.s32.totalorder %s19, 1
    %p126 = por %p124, %p125
    %p128 = scmp.ne.s32.totalorder %s113, %s127
    %p129 = scmp.eq.s32.totalorder %s19, 0
    %p130 = por %p128, %p129
    %s131 = ssub.s32 %s13, %s20
    %p132 = scmp.eq.s32.totalorder %s131, 0
    %s134 = sadd.s32 %s133, 1
    %s135 = scalar_select %p132, %s133, %s134
    %p138 = pneg %p132
    %p139 = scmp.eq.s32.totalorder %s13, 1
    %p140 = por %p138, %p139
    %p141 = scmp.ne.s32.totalorder %s133, %s136
    %p142 = scmp.eq.s32.totalorder %s13, 0
    %p143 = por %p141, %p142
    %p144 = scmp.ne.s32.totalorder %s133, %s136
    %p145 = scmp.eq.s32.totalorder %s18, 1
    %p146 = por %p144, %p145
    %p147 = scmp.ne.s32.totalorder %s136, %s137
    %p148 = scmp.eq.s32.totalorder %s18, 0
    %p149 = por %p147, %p148
    %p150 = scmp.ne.s32.totalorder %s136, %s137
    %p151 = scmp.eq.s32.totalorder %s19, 1
    %p152 = por %p150, %p151
    %p154 = scmp.ne.s32.totalorder %s137, %s153
    %p155 = scmp.eq.s32.totalorder %s19, 0
    %p156 = por %p154, %p155
    %s157 = ssub.s32 %s13, %s20
    %p158 = scmp.eq.s32.totalorder %s157, 0
    %s160 = sadd.s32 %s159, 1
    %s161 = scalar_select %p158, %s159, %s160
    %p164 = pneg %p158
    %p165 = scmp.eq.s32.totalorder %s13, 1
    %p166 = por %p164, %p165
    %p167 = scmp.ne.s32.totalorder %s159, %s162
    %p168 = scmp.eq.s32.totalorder %s13, 0
    %p169 = por %p167, %p168
    %p170 = scmp.ne.s32.totalorder %s159, %s162
    %p171 = scmp.eq.s32.totalorder %s18, 1
    %p172 = por %p170, %p171
    %p173 = scmp.ne.s32.totalorder %s162, %s163
    %p174 = scmp.eq.s32.totalorder %s18, 0
    %p175 = por %p173, %p174
    %p176 = scmp.ne.s32.totalorder %s162, %s163
    %p177 = scmp.eq.s32.totalorder %s19, 1
    %p178 = por %p176, %p177
    %p180 = scmp.ne.s32.totalorder %s163, %s179
    %p181 = scmp.eq.s32.totalorder %s19, 0
    %p182 = por %p180, %p181
    %p183 = scmp.le.s32.totalorder 1, %s13
    %p184 = scmp.lt.s32.totalorder %s13, 3
    %p185 = pnand %p183, %p184
    %p186 = pneg %p185
    // Predicated region
    $region9: #{conv_block_forward.4} parent=5 // pred_check
      _
    $region10: #{conv_block_forward.4} parent=5 // pred_check_branch
      %188 = sbr.rel (%p185) target = $region12
    $region11: #{conv_block_forward.4} parent=5 // pred_region
      %s189 = ssub.s32 %s13, 1
      // Predicated region
      $region13: #{conv_block_forward.4} parent=11 // pred_check
        %p190 = pneg %p60
      $region14: #{conv_block_forward.4} parent=11 // pred_check_branch
        %192 = sbr.rel (%p190) target = $region16
      $region15: #{conv_block_forward.4} parent=11 // pred_region
        _
      $region16: #{conv_block_forward.4} parent=11 // pred_fallthru
        _
      // Predicated region
      $region17: #{conv_block_forward.4} parent=11 // pred_check
        %p193 = pneg %p81
      $region18: #{conv_block_forward.4} parent=11 // pred_check_branch
        %195 = sbr.rel (%p193) target = $region20
      $region19: #{conv_block_forward.4} parent=11 // pred_region
        _
      $region20: #{conv_block_forward.4} parent=11 // pred_fallthru
        _
      // Predicated region
      $region21: #{conv_block_forward.4} parent=11 // pred_check
        %p196 = pneg %p102
      $region22: #{conv_block_forward.4} parent=11 // pred_check_branch
        %198 = sbr.rel (%p196) target = $region24
      $region23: #{conv_block_forward.4} parent=11 // pred_region
        _
      $region24: #{conv_block_forward.4} parent=11 // pred_fallthru
        _
      // Predicated region
      $region25: #{conv_block_forward.4} parent=11 // pred_check
        %p199 = pneg %p123
      $region26: #{conv_block_forward.4} parent=11 // pred_check_branch
        %201 = sbr.rel (%p199) target = $region28
      $region27: #{conv_block_forward.4} parent=11 // pred_region
        _
      $region28: #{conv_block_forward.4} parent=11 // pred_fallthru
        _
    $region12: #{conv_block_forward.4} parent=5 // pred_fallthru
      _
    %p202 = scmp.lt.s32.totalorder %s13, 2
    // Predicated region
    $region29: #{conv_block_forward.4} parent=5 // pred_check
      %p203 = pneg %p202
    $region30: #{conv_block_forward.4} parent=5 // pred_check_branch
      %205 = sbr.rel (%p203) target = $region32
    $region31: #{conv_block_forward.4} parent=5 // pred_region
      // Predicated region
      $region33: #{conv_block_forward.4} parent=31 // pred_check
        %p206 = pneg %p33
      $region34: #{conv_block_forward.4} parent=31 // pred_check_branch
        %208 = sbr.rel (%p206) target = $region36
      $region35: #{conv_block_forward.4} parent=31 // pred_region
        %p209 = scmp.lt.s32.totalorder %s13, 1
        %s210 = scalar_select %p209, %s13, 1
        %s211 = smul.addr %s210, 32
        %s212 = smul.addr %s211, 4
        %s213 = scalar_lea.vmem %s0, %s212
      $region36: #{conv_block_forward.4} parent=31 // pred_fallthru
        _
    $region32: #{conv_block_forward.4} parent=5 // pred_fallthru
      _
    %p214 = scmp.le.s32.totalorder 1, %s13
    %p215 = scmp.lt.s32.totalorder %s13, 3
    %p216 = pnand %p214, %p215
    %p217 = pneg %p216
    // Predicated region
    $region37: #{conv_block_forward.4} parent=5 // pred_check
      _
    $region38: #{conv_block_forward.4} parent=5 // pred_check_branch
      %219 = sbr.rel (%p216) target = $region40
    $region39: #{conv_block_forward.4} parent=5 // pred_region
      %s220 = ssub.s32 %s13, 1
      %p221 = scmp.lt.s32.totalorder %s18, 1
      %s222 = scalar_select %p221, %s18, 1
      %s223 = smul.addr %s222, 32
      %s224 = smul.addr %s223, 4
      %s225 = scalar_lea.vmem %s0, %s224
      %p226 = pneg %p39
      %p227 = pneg %p36
      %p228 = pneg %p60
      %p229 = pneg %p57
      %p230 = pneg %p81
      %p231 = pneg %p78
      %p232 = pneg %p102
      %p233 = pneg %p99
      %p234 = pneg %p123
      %p235 = pneg %p120
      %p236 = pneg %p149
      %p237 = pneg %p146
      %p238 = scmp.lt.s32.totalorder %s18, 1
      %s239 = scalar_select %p238, %s18, 1
      %s240 = smul.addr %s239, 32
      %s241 = smul.addr %s240, 4
      %s242 = scalar_lea.vmem %s5, %s241
      %p243 = pneg %p175
      %p244 = pneg %p172
      %p245 = scmp.lt.s32.totalorder %s18, 1
      %s246 = scalar_select %p245, %s18, 1
      %s247 = smul.addr %s246, 2
      %s248 = scalar_lea.vmem %s6, %s247
      %p249 = scmp.lt.s32.totalorder %s18, 1
      %s250 = scalar_select %p249, %s18, 1
      %s251 = smul.addr %s250, 32
      %s252 = smul.addr %s251, 4
      %s253 = scalar_lea.vmem %s0, %s252
      %p254 = scmp.lt.s32.totalorder %s18, 1
      %s255 = scalar_select %p254, %s18, 1
      %s256 = smul.addr %s255, 32
      %s257 = smul.addr %s256, 4
      %s258 = scalar_lea.vmem %s5, %s257
      %p259 = scmp.lt.s32.totalorder %s18, 1
      %s260 = scalar_select %p259, %s18, 1
      %s261 = smul.addr %s260, 2
      %s262 = scalar_lea.vmem %s6, %s261
      %v264 = vld [vmem:[%s1] sm:$0x1]
      %v265 = vld [vmem:[%s2] sm:$0x1]
      %v266 = vld [vmem:[%s253] sm:$0xf]
      %v267 = vld [vmem:[%s253 + $0x4] sm:$0xf]
      %v268 = vld [vmem:[%s253 + $0x8] sm:$0xf]
      %v269 = vld [vmem:[%s253 + $0xc] sm:$0xf]
      %v270 = vld [vmem:[%s253 + $0x10] sm:$0xf]
      %v271 = vld [vmem:[%s253 + $0x14] sm:$0xf]
      %v272 = vld [vmem:[%s253 + $0x18] sm:$0xf]
      %v273 = vld [vmem:[%s253 + $0x1c] sm:$0xf]
      %v274 = vld [vmem:[%s253 + $0x20] sm:$0xf]
      %v275 = vld [vmem:[%s253 + $0x24] sm:$0xf]
      %v276 = vld [vmem:[%s253 + $0x28] sm:$0xf]
      %v277 = vld [vmem:[%s253 + $0x2c] sm:$0xf]
      %v278 = vld [vmem:[%s253 + $0x30] sm:$0xf]
      %v279 = vld [vmem:[%s253 + $0x34] sm:$0xf]
      %v280 = vld [vmem:[%s253 + $0x38] sm:$0xf]
      %v281 = vld [vmem:[%s253 + $0x3c] sm:$0xf]
      %v282 = vld [vmem:[%s253 + $0x40] sm:$0xf]
      %v283 = vld [vmem:[%s253 + $0x44] sm:$0xf]
      %v284 = vunpack.c.l.bf16 %v266
      %v285 = vunpack.c.l.bf16 %v267
      %v286 = vunpack.c.l.bf16 %v268
      %v287 = vunpack.c.l.bf16 %v269
      %v288 = vunpack.c.l.bf16 %v270
      %v289 = vunpack.c.l.bf16 %v271
      %v290 = vunpack.c.l.bf16 %v272
      %v291 = vunpack.c.l.bf16 %v273
      %v292 = vunpack.c.l.bf16 %v274
      %v293 = vunpack.c.l.bf16 %v275
      %v294 = vunpack.c.l.bf16 %v276
      %v295 = vunpack.c.l.bf16 %v277
      %v296 = vunpack.c.l.bf16 %v278
      %v297 = vunpack.c.l.bf16 %v279
      %v298 = vunpack.c.l.bf16 %v280
      %v299 = vunpack.c.l.bf16 %v281
      %v300 = vunpack.c.l.bf16 %v282
      %v301 = vunpack.c.l.bf16 %v283
      %v303 = vlaneseq
      %v304 = vshrl.u32 %v303, 7
      %v305 = vsub.s32 0, %v304
      %v306 = vrot.slane %v264, %v305
      %v308 = vmul.f32 %v284, %v306
      %v309 = vmul.f32 %v285, %v306
      %v310 = vmul.f32 %v286, %v306
      %v311 = vmul.f32 %v287, %v306
      %v312 = vmul.f32 %v288, %v306
      %v313 = vmul.f32 %v289, %v306
      %v314 = vmul.f32 %v290, %v306
      %v315 = vmul.f32 %v291, %v306
      %v316 = vmul.f32 %v292, %v306
      %v317 = vmul.f32 %v293, %v306
      %v318 = vmul.f32 %v294, %v306
      %v319 = vmul.f32 %v295, %v306
      %v320 = vmul.f32 %v296, %v306
      %v321 = vmul.f32 %v297, %v306
      %v322 = vmul.f32 %v298, %v306
      %v323 = vmul.f32 %v299, %v306
      %v324 = vmul.f32 %v300, %v306
      %v325 = vmul.f32 %v301, %v306
      %v327 = vlaneseq
      %v328 = vshrl.u32 %v327, 7
      %v329 = vsub.s32 0, %v328
      %v330 = vrot.slane %v265, %v329
      %v332 = vadd.f32 %v308, %v330
      %v333 = vadd.f32 %v309, %v330
      %v334 = vadd.f32 %v310, %v330
      %v335 = vadd.f32 %v311, %v330
      %v336 = vadd.f32 %v312, %v330
      %v337 = vadd.f32 %v313, %v330
      %v338 = vadd.f32 %v314, %v330
      %v339 = vadd.f32 %v315, %v330
      %v340 = vadd.f32 %v316, %v330
      %v341 = vadd.f32 %v317, %v330
      %v342 = vadd.f32 %v318, %v330
      %v343 = vadd.f32 %v319, %v330
      %v344 = vadd.f32 %v320, %v330
      %v345 = vadd.f32 %v321, %v330
      %v346 = vadd.f32 %v322, %v330
      %v347 = vadd.f32 %v323, %v330
      %v348 = vadd.f32 %v324, %v330
      %v349 = vadd.f32 %v325, %v330
      %v350 = vmax.f32 %v332, 0.0
      %v351 = vmax.f32 %v333, 0.0
      %v352 = vmax.f32 %v334, 0.0
      %v353 = vmax.f32 %v335, 0.0
      %v354 = vmax.f32 %v336, 0.0
      %v355 = vmax.f32 %v337, 0.0
      %v356 = vmax.f32 %v338, 0.0
      %v357 = vmax.f32 %v339, 0.0
      %v358 = vmax.f32 %v340, 0.0
      %v359 = vmax.f32 %v341, 0.0
      %v360 = vmax.f32 %v342, 0.0
      %v361 = vmax.f32 %v343, 0.0
      %v362 = vmax.f32 %v344, 0.0
      %v363 = vmax.f32 %v345, 0.0
      %v364 = vmax.f32 %v346, 0.0
      %v365 = vmax.f32 %v347, 0.0
      %v366 = vmax.f32 %v348, 0.0
      %v367 = vmax.f32 %v349, 0.0
      %v368 = vlaneseq
      %v369 = vshrl.u32 %v368, 7
      %v370 = vadd.s32 %v369, 8
      %vm371 = vcmp.eq.s32.totalorder %v369, 0
      %vm372 = vcmp.eq.s32.totalorder %v370, 0
      %v373 = vrot.slane %v350, 7
      %v374 = vrot.slane %v352, 7
      %v375 = vrot.slane %v354, 7
      %v376 = vrot.slane %v356, 7
      %v377 = vrot.slane %v358, 7
      %v378 = vrot.slane %v360, 7
      %v379 = vrot.slane %v362, 7
      %v380 = vrot.slane %v364, 7
      %v381 = vrot.slane %v366, 7
      %v382 = vrot.slane %v351, 7
      %v383 = vrot.slane %v353, 7
      %v384 = vrot.slane %v355, 7
      %v385 = vrot.slane %v357, 7
      %v386 = vrot.slane %v359, 7
      %v387 = vrot.slane %v361, 7
      %v388 = vrot.slane %v363, 7
      %v389 = vrot.slane %v365, 7
      %v390 = vrot.slane %v367, 7
      %vm391 = vcmp.lt.s32.totalorder %v369, 1
      %v392 = vsel %vm391, %v373, %v382
      %v393 = vsel %vm391, %v374, %v383
      %v394 = vsel %vm391, %v375, %v384
      %v395 = vsel %vm391, %v376, %v385
      %v396 = vsel %vm391, %v377, %v386
      %v397 = vsel %vm391, %v378, %v387
      %v398 = vsel %vm391, %v379, %v388
      %v399 = vsel %vm391, %v380, %v389
      %v400 = vsel %vm391, %v381, %v390
      %v401 = vsel %vm391, %v382, %v373
      %v402 = vsel %vm391, %v383, %v374
      %v403 = vsel %vm391, %v384, %v375
      %v404 = vsel %vm391, %v385, %v376
      %v405 = vsel %vm391, %v386, %v377
      %v406 = vsel %vm391, %v387, %v378
      %v407 = vsel %vm391, %v388, %v379
      %v408 = vsel %vm391, %v389, %v380
      %v409 = vsel %vm391, %v390, %v381
      %v410 = vsel %vm371, 0.0, 0.0
      %v411 = vsel %vm372, 0.0, 0.0
      %v412 = vsel %vm371, 0.0, %v401
      %v413 = vsel %vm372, 0.0, %v392
      %v414 = vsel %vm371, 0.0, %v402
      %v415 = vsel %vm372, 0.0, %v393
      %v416 = vsel %vm371, 0.0, %v403
      %v417 = vsel %vm372, 0.0, %v394
      %v418 = vsel %vm371, 0.0, %v404
      %v419 = vsel %vm372, 0.0, %v395
      %v420 = vsel %vm371, 0.0, %v405
      %v421 = vsel %vm372, 0.0, %v396
      %v422 = vsel %vm371, 0.0, %v406
      %v423 = vsel %vm372, 0.0, %v397
      %v424 = vsel %vm371, 0.0, %v407
      %v425 = vsel %vm372, 0.0, %v398
      %v426 = vsel %vm371, 0.0, %v408
      %v427 = vsel %vm372, 0.0, %v399
      %v428 = vsel %vm371, 0.0, %v409
      %v429 = vsel %vm372, 0.0, %v400
      %vm430 = vcmp.eq.s32.totalorder %v369, 15
      %vm431 = vcmp.eq.s32.totalorder %v370, 15
      %v432 = vrot.slane %v350, 1
      %v433 = vrot.slane %v352, 1
      %v434 = vrot.slane %v354, 1
      %v435 = vrot.slane %v356, 1
      %v436 = vrot.slane %v358, 1
      %v437 = vrot.slane %v360, 1
      %v438 = vrot.slane %v362, 1
      %v439 = vrot.slane %v364, 1
      %v440 = vrot.slane %v366, 1
      %v441 = vrot.slane %v351, 1
      %v442 = vrot.slane %v353, 1
      %v443 = vrot.slane %v355, 1
      %v444 = vrot.slane %v357, 1
      %v445 = vrot.slane %v359, 1
      %v446 = vrot.slane %v361, 1
      %v447 = vrot.slane %v363, 1
      %v448 = vrot.slane %v365, 1
      %v449 = vrot.slane %v367, 1
      %vm450 = vcmp.lt.s32.totalorder %v369, 7
      %v451 = vsel %vm450, %v432, %v441
      %v452 = vsel %vm450, %v433, %v442
      %v453 = vsel %vm450, %v434, %v443
      %v454 = vsel %vm450, %v435, %v444
      %v455 = vsel %vm450, %v436, %v445
      %v456 = vsel %vm450, %v437, %v446
      %v457 = vsel %vm450, %v438, %v447
      %v458 = vsel %vm450, %v439, %v448
      %v459 = vsel %vm450, %v440, %v449
      %v460 = vsel %vm450, %v441, %v432
      %v461 = vsel %vm450, %v442, %v433
      %v462 = vsel %vm450, %v443, %v434
      %v463 = vsel %vm450, %v444, %v435
      %v464 = vsel %vm450, %v445, %v436
      %v465 = vsel %vm450, %v446, %v437
      %v466 = vsel %vm450, %v447, %v438
      %v467 = vsel %vm450, %v448, %v439
      %v468 = vsel %vm450, %v449, %v440
      %v469 = vsel %vm430, 0.0, 0.0
      %v470 = vsel %vm431, 0.0, 0.0
      %v471 = vsel %vm430, 0.0, %v451
      %v472 = vsel %vm431, 0.0, %v460
      %v473 = vsel %vm430, 0.0, %v452
      %v474 = vsel %vm431, 0.0, %v461
      %v475 = vsel %vm430, 0.0, %v453
      %v476 = vsel %vm431, 0.0, %v462
      %v477 = vsel %vm430, 0.0, %v454
      %v478 = vsel %vm431, 0.0, %v463
      %v479 = vsel %vm430, 0.0, %v455
      %v480 = vsel %vm431, 0.0, %v464
      %v481 = vsel %vm430, 0.0, %v456
      %v482 = vsel %vm431, 0.0, %v465
      %v483 = vsel %vm430, 0.0, %v457
      %v484 = vsel %vm431, 0.0, %v466
      %v485 = vsel %vm430, 0.0, %v458
      %v486 = vsel %vm431, 0.0, %v467
      %v487 = vsel %vm430, 0.0, %v459
      %v488 = vsel %vm431, 0.0, %v468
      %508 = vrot.lane.b32.xlu0 0.0, 4
      %v509 = vpop.permute.xlu0 %508
      %510 = vrot.lane.b32.xlu0 %v350, 4
      %v511 = vpop.permute.xlu0 %510
      %512 = vrot.lane.b32.xlu0 %v351, 4
      %v513 = vpop.permute.xlu0 %512
      %514 = vrot.lane.b32.xlu0 %v352, 4
      %v515 = vpop.permute.xlu0 %514
      %516 = vrot.lane.b32.xlu0 %v353, 4
      %v517 = vpop.permute.xlu0 %516
      %518 = vrot.lane.b32.xlu0 %v354, 4
      %v519 = vpop.permute.xlu0 %518
      %520 = vrot.lane.b32.xlu0 %v355, 4
      %v521 = vpop.permute.xlu0 %520
      %522 = vrot.lane.b32.xlu0 %v356, 4
      %v523 = vpop.permute.xlu0 %522
      %524 = vrot.lane.b32.xlu0 %v357, 4
      %v525 = vpop.permute.xlu0 %524
      %526 = vrot.lane.b32.xlu0 %v358, 4
      %v527 = vpop.permute.xlu0 %526
      %528 = vrot.lane.b32.xlu0 %v359, 4
      %v529 = vpop.permute.xlu0 %528
      %530 = vrot.lane.b32.xlu0 %v360, 4
      %v531 = vpop.permute.xlu0 %530
      %532 = vrot.lane.b32.xlu0 %v361, 4
      %v533 = vpop.permute.xlu0 %532
      %534 = vrot.lane.b32.xlu0 %v362, 4
      %v535 = vpop.permute.xlu0 %534
      %536 = vrot.lane.b32.xlu0 %v363, 4
      %v537 = vpop.permute.xlu0 %536
      %538 = vrot.lane.b32.xlu0 %v364, 4
      %v539 = vpop.permute.xlu0 %538
      %540 = vrot.lane.b32.xlu0 %v365, 4
      %v541 = vpop.permute.xlu0 %540
      %542 = vrot.lane.b32.xlu0 %v366, 4
      %v543 = vpop.permute.xlu0 %542
      %544 = vrot.lane.b32.xlu0 %v367, 4
      %v545 = vpop.permute.xlu0 %544
      %585 = vrot.lane.b32.xlu0 %v469, 8
      %v586 = vpop.permute.xlu0 %585
      %587 = vrot.lane.b32.xlu0 %v470, 8
      %v588 = vpop.permute.xlu0 %587
      %589 = vrot.lane.b32.xlu0 %v471, 8
      %v590 = vpop.permute.xlu0 %589
      %591 = vrot.lane.b32.xlu0 %v472, 8
      %v592 = vpop.permute.xlu0 %591
      %593 = vrot.lane.b32.xlu0 %v473, 8
      %v594 = vpop.permute.xlu0 %593
      %595 = vrot.lane.b32.xlu0 %v474, 8
      %v596 = vpop.permute.xlu0 %595
      %597 = vrot.lane.b32.xlu0 %v475, 8
      %v598 = vpop.permute.xlu0 %597
      %599 = vrot.lane.b32.xlu0 %v476, 8
      %v600 = vpop.permute.xlu0 %599
      %601 = vrot.lane.b32.xlu0 %v477, 8
      %v602 = vpop.permute.xlu0 %601
      %603 = vrot.lane.b32.xlu0 %v478, 8
      %v604 = vpop.permute.xlu0 %603
      %605 = vrot.lane.b32.xlu0 %v479, 8
      %v606 = vpop.permute.xlu0 %605
      %607 = vrot.lane.b32.xlu0 %v480, 8
      %v608 = vpop.permute.xlu0 %607
      %609 = vrot.lane.b32.xlu0 %v481, 8
      %v610 = vpop.permute.xlu0 %609
      %611 = vrot.lane.b32.xlu0 %v482, 8
      %v612 = vpop.permute.xlu0 %611
      %613 = vrot.lane.b32.xlu0 %v483, 8
      %v614 = vpop.permute.xlu0 %613
      %615 = vrot.lane.b32.xlu0 %v484, 8
      %v616 = vpop.permute.xlu0 %615
      %617 = vrot.lane.b32.xlu0 %v485, 8
      %v618 = vpop.permute.xlu0 %617
      %619 = vrot.lane.b32.xlu0 %v486, 8
      %v620 = vpop.permute.xlu0 %619
      %621 = vrot.lane.b32.xlu0 %v487, 8
      %v622 = vpop.permute.xlu0 %621
      %623 = vrot.lane.b32.xlu0 %v488, 8
      %v624 = vpop.permute.xlu0 %623
      %vm645 = vcmask 31744
      %v646 = vsel %vm645, %v410, %v509
      %v647 = vsel %vm645, %v411, %v509
      %v648 = vsel %vm645, %v412, %v511
      %v649 = vsel %vm645, %v413, %v513
      %v650 = vsel %vm645, %v414, %v515
      %v651 = vsel %vm645, %v415, %v517
      %v652 = vsel %vm645, %v416, %v519
      %v653 = vsel %vm645, %v417, %v521
      %v654 = vsel %vm645, %v418, %v523
      %v655 = vsel %vm645, %v419, %v525
      %v656 = vsel %vm645, %v420, %v527
      %v657 = vsel %vm645, %v421, %v529
      %v658 = vsel %vm645, %v422, %v531
      %v659 = vsel %vm645, %v423, %v533
      %v660 = vsel %vm645, %v424, %v535
      %v661 = vsel %vm645, %v425, %v537
      %v662 = vsel %vm645, %v426, %v539
      %v663 = vsel %vm645, %v427, %v541
      %v664 = vsel %vm645, %v428, %v543
      %v665 = vsel %vm645, %v429, %v545
      %vm666 = vcmask 64512
      %v667 = vsel %vm666, %v646, %v586
      %v668 = vsel %vm666, %v647, %v588
      %v669 = vsel %vm666, %v648, %v590
      %v670 = vsel %vm666, %v649, %v592
      %v671 = vsel %vm666, %v650, %v594
      %v672 = vsel %vm666, %v651, %v596
      %v673 = vsel %vm666, %v652, %v598
      %v674 = vsel %vm666, %v653, %v600
      %v675 = vsel %vm666, %v654, %v602
      %v676 = vsel %vm666, %v655, %v604
      %v677 = vsel %vm666, %v656, %v606
      %v678 = vsel %vm666, %v657, %v608
      %v679 = vsel %vm666, %v658, %v610
      %v680 = vsel %vm666, %v659, %v612
      %v681 = vsel %vm666, %v660, %v614
      %v682 = vsel %vm666, %v661, %v616
      %v683 = vsel %vm666, %v662, %v618
      %v684 = vsel %vm666, %v663, %v620
      %v685 = vsel %vm666, %v664, %v622
      %v686 = vsel %vm666, %v665, %v624
      %v687 = vpack.c.bf16 %v668, %v667
      %v688 = vpack.c.bf16 %v670, %v669
      %v689 = vpack.c.bf16 %v672, %v671
      %v690 = vpack.c.bf16 %v674, %v673
      %v691 = vpack.c.bf16 %v676, %v675
      %v692 = vpack.c.bf16 %v678, %v677
      %v693 = vpack.c.bf16 %v680, %v679
      %v694 = vpack.c.bf16 %v682, %v681
      %v695 = vpack.c.bf16 %v684, %v683
      %v696 = vpack.c.bf16 %v686, %v685
      %v697 = vld [vmem:[%s3] sm:$0xf]
      %v698 = vld [vmem:[%s3 + $0x4] sm:$0x3]
      %s699 = scalar_lea.vmem %s3, 8
      %v700 = vld [vmem:[%s699] sm:$0xf]
      %v701 = vld [vmem:[%s699 + $0x4] sm:$0x3]
      %v704 = vunpack.c.l.b16 %v700
      %v705 = vunpack.c.l.b16 %v701
      %v706 = vpack.c.b16 %v705, %v704
      %vm707 = vcmask 97280
      %v709 = vsel %vm707, %v688, 0
      %v712 = vsel %vm707, %v689, 0
      %v715 = vsel %vm707, %v690, 0
      %v718 = vsel %vm707, %v691, 0
      %v721 = vsel %vm707, %v692, 0
      %v724 = vsel %vm707, %v693, 0
      %v727 = vsel %vm707, %v694, 0
      %v730 = vsel %vm707, %v695, 0
      %vm732 = vcmask 1045504
      %v734 = vsel %vm732, %v706, 0
      %736 = vmatprep.subr.bf16.mxu0 0
      %737 = vmatpush1.bf16.msra.mxu0 %v734
      %738 = vmatprep.subr.bf16.mxu0 0
      %739 = vmatpush1.bf16.msra.mxu0 0
      %740 = vmatprep.subr.bf16.mxu0 0
      %741 = vmatpush1.bf16.msra.mxu0 0
      %742 = vmatprep.subr.bf16.mxu0 0
      %743 = vmatpush1.bf16.msra.mxu0 0
      %744 = vmatprep.subr.bf16.mxu0 0
      %745 = vmatpush1.bf16.msra.mxu0 0
      %746 = vmatprep.subr.bf16.mxu0 0
      %747 = vmatpush1.bf16.msra.mxu0 0
      %748 = vmatprep.subr.bf16.mxu0 0
      %749 = vmatpush1.bf16.msra.mxu0 0
      %750 = vmatprep.subr.bf16.mxu0 0
      %751 = vmatpush1.bf16.msra.mxu0 0
      %752 = vmatprep.subr.bf16.mxu0 0
      %753 = vmatpush1.bf16.msra.mxu0 0
      %754 = vmatprep.subr.bf16.mxu0 0
      %755 = vmatpush1.bf16.msra.mxu0 0
      %756 = vmatprep.subr.bf16.mxu0 0
      %757 = vmatpush1.bf16.msra.mxu0 0
      %758 = vmatprep.subr.bf16.mxu0 0
      %759 = vmatpush1.bf16.msra.mxu0 0
      %760 = vmatprep.subr.bf16.mxu0 0
      %761 = vmatpush1.bf16.msra.mxu0 0
      %762 = vmatprep.subr.bf16.mxu0 0
      %763 = vmatpush1.bf16.msra.mxu0 0
      %764 = vmatprep.subr.bf16.mxu0 0
      %765 = vmatpush1.bf16.msra.mxu0 0
      %766 = vmatprep.subr.bf16.mxu0 0
      %767 = vmatpush1.bf16.msra.mxu0 0
      %768 = vmatprep.mubr.bf16.mxu0 0
      %769 = vmatmul.mubr.bf16.gmra.mrb[0].mxu0 %v709
      %v770 = vpop.f32.mrb[0].mxu0
      %v771 = vadd.f32 0.0, %v770
      %v772 = vpop.f32.mrb[0].mxu0
      %v773 = vpop.f32.mrb[0].mxu0
      %v774 = vadd.f32 0.0, %v773
      %v775 = vpop.f32.mrb[0].mxu0
      %776 = vmatprep.mubr.bf16.mxu0 0
      %777 = vmatmul.mubr.bf16.gmra.mrb[0].mxu0 %v712
      %v778 = vpop.f32.mrb[0].mxu0
      %v779 = vadd.f32 0.0, %v778
      %v780 = vpop.f32.mrb[0].mxu0
      %v781 = vpop.f32.mrb[0].mxu0
      %v782 = vadd.f32 0.0, %v781
      %v783 = vpop.f32.mrb[0].mxu0
      %784 = vmatprep.mubr.bf16.mxu0 0
      %785 = vmatmul.mubr.bf16.gmra.mrb[0].mxu0 %v715
      %v786 = vpop.f32.mrb[0].mxu0
      %v787 = vadd.f32 0.0, %v786
      %v788 = vpop.f32.mrb[0].mxu0
      %v789 = vpop.f32.mrb[0].mxu0
      %v790 = vadd.f32 0.0, %v789
      %v791 = vpop.f32.mrb[0].mxu0
      %792 = vmatprep.mubr.bf16.mxu0 0
      %793 = vmatmul.mubr.bf16.gmra.mrb[0].mxu0 %v718
      %v794 = vpop.f32.mrb[0].mxu0
      %v795 = vadd.f32 0.0, %v794
      %v796 = vpop.f32.mrb[0].mxu0
      %v797 = vpop.f32.mrb[0].mxu0
      %v798 = vadd.f32 0.0, %v797
      %v799 = vpop.f32.mrb[0].mxu0
      %800 = vmatprep.mubr.bf16.mxu0 0
      %801 = vmatmul.mubr.bf16.gmra.mrb[0].mxu0 %v721
      %v802 = vpop.f32.mrb[0].mxu0
      %v803 = vadd.f32 0.0, %v802
      %v804 = vpop.f32.mrb[0].mxu0
      %v805 = vpop.f32.mrb[0].mxu0
      %v806 = vadd.f32 0.0, %v805
      %v807 = vpop.f32.mrb[0].mxu0
      %808 = vmatprep.mubr.bf16.mxu0 0
      %809 = vmatmul.mubr.bf16.gmra.mrb[0].mxu0 %v724
      %v810 = vpop.f32.mrb[0].mxu0
      %v811 = vadd.f32 0.0, %v810
      %v812 = vpop.f32.mrb[0].mxu0
      %v813 = vpop.f32.mrb[0].mxu0
      %v814 = vadd.f32 0.0, %v813
      %v815 = vpop.f32.mrb[0].mxu0
      %816 = vmatprep.mubr.bf16.mxu0 0
      %817 = vmatmul.mubr.bf16.gmra.mrb[0].mxu0 %v727
      %v818 = vpop.f32.mrb[0].mxu0
      %v819 = vadd.f32 0.0, %v818
      %v820 = vpop.f32.mrb[0].mxu0
      %v821 = vpop.f32.mrb[0].mxu0
      %v822 = vadd.f32 0.0, %v821
      %v823 = vpop.f32.mrb[0].mxu0
      %824 = vmatprep.mubr.bf16.mxu0 0
      %825 = vmatmul.mubr.bf16.gmra.mrb[0].mxu0 %v730
      %v826 = vpop.f32.mrb[0].mxu0
      %v827 = vadd.f32 0.0, %v826
      %v828 = vpop.f32.mrb[0].mxu0
      %v829 = vpop.f32.mrb[0].mxu0
      %v830 = vadd.f32 0.0, %v829
      %v831 = vpop.f32.mrb[0].mxu0
      %832 = vdwg.mxu0
      %v835 = vunpack.c.l.b16 %v697
      %v836 = vunpack.c.l.b16 %v698
      %v837 = vpack.c.b16 %v836, %v835
      %v839 = vsel %vm707, %v687, 0
      %v842 = vsel %vm732, %v837, 0
      %844 = vmatprep.subr.bf16.mxu0 0
      %845 = vmatpush1.bf16.msra.mxu0 %v842
      %846 = vmatprep.subr.bf16.mxu0 0
      %847 = vmatpush1.bf16.msra.mxu0 0
      %848 = vmatprep.subr.bf16.mxu0 0
      %849 = vmatpush1.bf16.msra.mxu0 0
      %850 = vmatprep.subr.bf16.mxu0 0
      %851 = vmatpush1.bf16.msra.mxu0 0
      %852 = vmatprep.subr.bf16.mxu0 0
      %853 = vmatpush1.bf16.msra.mxu0 0
      %854 = vmatprep.subr.bf16.mxu0 0
      %855 = vmatpush1.bf16.msra.mxu0 0
      %856 = vmatprep.subr.bf16.mxu0 0
      %857 = vmatpush1.bf16.msra.mxu0 0
      %858 = vmatprep.subr.bf16.mxu0 0
      %859 = vmatpush1.bf16.msra.mxu0 0
      %860 = vmatprep.subr.bf16.mxu0 0
      %861 = vmatpush1.bf16.msra.mxu0 0
      %862 = vmatprep.subr.bf16.mxu0 0
      %863 = vmatpush1.bf16.msra.mxu0 0
      %864 = vmatprep.subr.bf16.mxu0 0
      %865 = vmatpush1.bf16.msra.mxu0 0
      %866 = vmatprep.subr.bf16.mxu0 0
      %867 = vmatpush1.bf16.msra.mxu0 0
      %868 = vmatprep.subr.bf16.mxu0 0
      %869 = vmatpush1.bf16.msra.mxu0 0
      %870 = vmatprep.subr.bf16.mxu0 0
      %871 = vmatpush1.bf16.msra.mxu0 0
      %872 = vmatprep.subr.bf16.mxu0 0
      %873 = vmatpush1.bf16.msra.mxu0 0
      %874 = vmatprep.subr.bf16.mxu0 0
      %875 = vmatpush1.bf16.msra.mxu0 0
      %876 = vmatprep.mubr.bf16.mxu0 0
      %877 = vmatmul.mubr.bf16.gmra.mrb[0].mxu0 %v839
      %v878 = vpop.f32.mrb[0].mxu0
      %v879 = vadd.f32 %v771, %v878
      %v880 = vpop.f32.mrb[0].mxu0
      %v881 = vpop.f32.mrb[0].mxu0
      %v882 = vadd.f32 %v774, %v881
      %v883 = vpop.f32.mrb[0].mxu0
      %884 = vmatprep.mubr.bf16.mxu0 0
      %885 = vmatmul.mubr.bf16.gmra.mrb[0].mxu0 %v709
      %v886 = vpop.f32.mrb[0].mxu0
      %v887 = vadd.f32 %v779, %v886
      %v888 = vpop.f32.mrb[0].mxu0
      %v889 = vpop.f32.mrb[0].mxu0
      %v890 = vadd.f32 %v782, %v889
      %v891 = vpop.f32.mrb[0].mxu0
      %892 = vmatprep.mubr.bf16.mxu0 0
      %893 = vmatmul.mubr.bf16.gmra.mrb[0].mxu0 %v712
      %v894 = vpop.f32.mrb[0].mxu0
      %v895 = vadd.f32 %v787, %v894
      %v896 = vpop.f32.mrb[0].mxu0
      %v897 = vpop.f32.mrb[0].mxu0
      %v898 = vadd.f32 %v790, %v897
      %v899 = vpop.f32.mrb[0].mxu0
      %900 = vmatprep.mubr.bf16.mxu0 0
      %901 = vmatmul.mubr.bf16.gmra.mrb[0].mxu0 %v715
      %v902 = vpop.f32.mrb[0].mxu0
      %v903 = vadd.f32 %v795, %v902
      %v904 = vpop.f32.mrb[0].mxu0
      %v905 = vpop.f32.mrb[0].mxu0
      %v906 = vadd.f32 %v798, %v905
      %v907 = vpop.f32.mrb[0].mxu0
      %908 = vmatprep.mubr.bf16.mxu0 0
      %909 = vmatmul.mubr.bf16.gmra.mrb[0].mxu0 %v718
      %v910 = vpop.f32.mrb[0].mxu0
      %v911 = vadd.f32 %v803, %v910
      %v912 = vpop.f32.mrb[0].mxu0
      %v913 = vpop.f32.mrb[0].mxu0
      %v914 = vadd.f32 %v806, %v913
      %v915 = vpop.f32.mrb[0].mxu0
      %916 = vmatprep.mubr.bf16.mxu0 0
      %917 = vmatmul.mubr.bf16.gmra.mrb[0].mxu0 %v721
      %v918 = vpop.f32.mrb[0].mxu0
      %v919 = vadd.f32 %v811, %v918
      %v920 = vpop.f32.mrb[0].mxu0
      %v921 = vpop.f32.mrb[0].mxu0
      %v922 = vadd.f32 %v814, %v921
      %v923 = vpop.f32.mrb[0].mxu0
      %924 = vmatprep.mubr.bf16.mxu0 0
      %925 = vmatmul.mubr.bf16.gmra.mrb[0].mxu0 %v724
      %v926 = vpop.f32.mrb[0].mxu0
      %v927 = vadd.f32 %v819, %v926
      %v928 = vpop.f32.mrb[0].mxu0
      %v929 = vpop.f32.mrb[0].mxu0
      %v930 = vadd.f32 %v822, %v929
      %v931 = vpop.f32.mrb[0].mxu0
      %932 = vmatprep.mubr.bf16.mxu0 0
      %933 = vmatmul.mubr.bf16.gmra.mrb[0].mxu0 %v727
      %v934 = vpop.f32.mrb[0].mxu0
      %v935 = vadd.f32 %v827, %v934
      %v936 = vpop.f32.mrb[0].mxu0
      %v937 = vpop.f32.mrb[0].mxu0
      %v938 = vadd.f32 %v830, %v937
      %v939 = vpop.f32.mrb[0].mxu0
      %940 = vdwg.mxu0
      %s941 = scalar_lea.vmem %s3, 16
      %v942 = vld [vmem:[%s941] sm:$0xf]
      %v943 = vld [vmem:[%s941 + $0x4] sm:$0x3]
      %v946 = vunpack.c.l.b16 %v942
      %v947 = vunpack.c.l.b16 %v943
      %v948 = vpack.c.b16 %v947, %v946
      %v950 = vsel %vm707, %v696, 0
      %v953 = vsel %vm732, %v948, 0
      %955 = vmatprep.subr.bf16.mxu0 0
      %956 = vmatpush1.bf16.msra.mxu0 %v953
      %957 = vmatprep.subr.bf16.mxu0 0
      %958 = vmatpush1.bf16.msra.mxu0 0
      %959 = vmatprep.subr.bf16.mxu0 0
      %960 = vmatpush1.bf16.msra.mxu0 0
      %961 = vmatprep.subr.bf16.mxu0 0
      %962 = vmatpush1.bf16.msra.mxu0 0
      %963 = vmatprep.subr.bf16.mxu0 0
      %964 = vmatpush1.bf16.msra.mxu0 0
      %965 = vmatprep.subr.bf16.mxu0 0
      %966 = vmatpush1.bf16.msra.mxu0 0
      %967 = vmatprep.subr.bf16.mxu0 0
      %968 = vmatpush1.bf16.msra.mxu0 0
      %969 = vmatprep.subr.bf16.mxu0 0
      %970 = vmatpush1.bf16.msra.mxu0 0
      %971 = vmatprep.subr.bf16.mxu0 0
      %972 = vmatpush1.bf16.msra.mxu0 0
      %973 = vmatprep.subr.bf16.mxu0 0
      %974 = vmatpush1.bf16.msra.mxu0 0
      %975 = vmatprep.subr.bf16.mxu0 0
      %976 = vmatpush1.bf16.msra.mxu0 0
      %977 = vmatprep.subr.bf16.mxu0 0
      %978 = vmatpush1.bf16.msra.mxu0 0
      %979 = vmatprep.subr.bf16.mxu0 0
      %980 = vmatpush1.bf16.msra.mxu0 0
      %981 = vmatprep.subr.bf16.mxu0 0
      %982 = vmatpush1.bf16.msra.mxu0 0
      %983 = vmatprep.subr.bf16.mxu0 0
      %984 = vmatpush1.bf16.msra.mxu0 0
      %985 = vmatprep.subr.bf16.mxu0 0
      %986 = vmatpush1.bf16.msra.mxu0 0
      %987 = vmatprep.mubr.bf16.mxu0 0
      %988 = vmatmul.mubr.bf16.gmra.mrb[0].mxu0 %v712
      %v989 = vpop.f32.mrb[0].mxu0
      %v990 = vadd.f32 0.0, %v989
      %v991 = vpop.f32.mrb[0].mxu0
      %v992 = vpop.f32.mrb[0].mxu0
      %v993 = vadd.f32 0.0, %v992
      %v994 = vpop.f32.mrb[0].mxu0
      %995 = vmatprep.mubr.bf16.mxu0 0
      %996 = vmatmul.mubr.bf16.gmra.mrb[0].mxu0 %v715
      %v997 = vpop.f32.mrb[0].mxu0
      %v998 = vadd.f32 0.0, %v997
      %v999 = vpop.f32.mrb[0].mxu0
      %v1000 = vpop.f32.mrb[0].mxu0
      %v1001 = vadd.f32 0.0, %v1000
      %v1002 = vpop.f32.mrb[0].mxu0
      %1003 = vmatprep.mubr.bf16.mxu0 0
      %1004 = vmatmul.mubr.bf16.gmra.mrb[0].mxu0 %v718
      %v1005 = vpop.f32.mrb[0].mxu0
      %v1006 = vadd.f32 0.0, %v1005
      %v1007 = vpop.f32.mrb[0].mxu0
      %v1008 = vpop.f32.mrb[0].mxu0
      %v1009 = vadd.f32 0.0, %v1008
      %v1010 = vpop.f32.mrb[0].mxu0
      %1011 = vmatprep.mubr.bf16.mxu0 0
      %1012 = vmatmul.mubr.bf16.gmra.mrb[0].mxu0 %v721
      %v1013 = vpop.f32.mrb[0].mxu0
      %v1014 = vadd.f32 0.0, %v1013
      %v1015 = vpop.f32.mrb[0].mxu0
      %v1016 = vpop.f32.mrb[0].mxu0
      %v1017 = vadd.f32 0.0, %v1016
      %v1018 = vpop.f32.mrb[0].mxu0
      %1019 = vmatprep.mubr.bf16.mxu0 0
      %1020 = vmatmul.mubr.bf16.gmra.mrb[0].mxu0 %v724
      %v1021 = vpop.f32.mrb[0].mxu0
      %v1022 = vadd.f32 0.0, %v1021
      %v1023 = vpop.f32.mrb[0].mxu0
      %v1024 = vpop.f32.mrb[0].mxu0
      %v1025 = vadd.f32 0.0, %v1024
      %v1026 = vpop.f32.mrb[0].mxu0
      %1027 = vmatprep.mubr.bf16.mxu0 0
      %1028 = vmatmul.mubr.bf16.gmra.mrb[0].mxu0 %v727
      %v1029 = vpop.f32.mrb[0].mxu0
      %v1030 = vadd.f32 0.0, %v1029
      %v1031 = vpop.f32.mrb[0].mxu0
      %v1032 = vpop.f32.mrb[0].mxu0
      %v1033 = vadd.f32 0.0, %v1032
      %v1034 = vpop.f32.mrb[0].mxu0
      %1035 = vmatprep.mubr.bf16.mxu0 0
      %1036 = vmatmul.mubr.bf16.gmra.mrb[0].mxu0 %v730
      %v1037 = vpop.f32.mrb[0].mxu0
      %v1038 = vadd.f32 0.0, %v1037
      %v1039 = vpop.f32.mrb[0].mxu0
      %v1040 = vpop.f32.mrb[0].mxu0
      %v1041 = vadd.f32 0.0, %v1040
      %v1042 = vpop.f32.mrb[0].mxu0
      %1043 = vmatprep.mubr.bf16.mxu0 0
      %1044 = vmatmul.mubr.bf16.gmra.mrb[0].mxu0 %v950
      %v1045 = vpop.f32.mrb[0].mxu0
      %v1046 = vadd.f32 0.0, %v1045
      %v1047 = vpop.f32.mrb[0].mxu0
      %v1048 = vpop.f32.mrb[0].mxu0
      %v1049 = vadd.f32 0.0, %v1048
      %v1050 = vpop.f32.mrb[0].mxu0
      %1051 = vdwg.mxu0
      %v1052 = vadd.f32 %v879, %v990
      %v1053 = vadd.f32 %v882, %v993
      %v1054 = vadd.f32 %v887, %v998
      %v1055 = vadd.f32 %v890, %v1001
      %v1056 = vadd.f32 %v895, %v1006
      %v1057 = vadd.f32 %v898, %v1009
      %v1058 = vadd.f32 %v903, %v1014
      %v1059 = vadd.f32 %v906, %v1017
      %v1060 = vadd.f32 %v911, %v1022
      %v1061 = vadd.f32 %v914, %v1025
      %v1062 = vadd.f32 %v919, %v1030
      %v1063 = vadd.f32 %v922, %v1033
      %v1064 = vadd.f32 %v927, %v1038
      %v1065 = vadd.f32 %v930, %v1041
      %v1066 = vadd.f32 %v935, %v1046
      %v1067 = vadd.f32 %v938, %v1049
      %v1068 = vld [vmem:[%s4] sm:$0x1]
      %v1070 = vlaneseq
      %v1071 = vshrl.u32 %v1070, 7
      %v1072 = vsub.s32 0, %v1071
      %v1073 = vrot.slane %v1068, %v1072
      %v1075 = vadd.f32 %v1052, %v1073
      %v1076 = vadd.f32 %v1053, %v1073
      %v1077 = vadd.f32 %v1054, %v1073
      %v1078 = vadd.f32 %v1055, %v1073
      %v1079 = vadd.f32 %v1056, %v1073
      %v1080 = vadd.f32 %v1057, %v1073
      %v1081 = vadd.f32 %v1058, %v1073
      %v1082 = vadd.f32 %v1059, %v1073
      %v1083 = vadd.f32 %v1060, %v1073
      %v1084 = vadd.f32 %v1061, %v1073
      %v1085 = vadd.f32 %v1062, %v1073
      %v1086 = vadd.f32 %v1063, %v1073
      %v1087 = vadd.f32 %v1064, %v1073
      %v1088 = vadd.f32 %v1065, %v1073
      %v1089 = vadd.f32 %v1066, %v1073
      %v1090 = vadd.f32 %v1067, %v1073
      %v1091 = vpack.c.bf16 %v1076, %v1075
      %v1092 = vpack.c.bf16 %v1078, %v1077
      %v1093 = vpack.c.bf16 %v1080, %v1079
      %v1094 = vpack.c.bf16 %v1082, %v1081
      %v1095 = vpack.c.bf16 %v1084, %v1083
      %v1096 = vpack.c.bf16 %v1086, %v1085
      %v1097 = vpack.c.bf16 %v1088, %v1087
      %v1098 = vpack.c.bf16 %v1090, %v1089
      %v1107 = vunpack.c.l.b16 %v1091
      %v1108 = vunpack.c.h.b16 %v1091
      %v1109 = vunpack.c.l.b16 %v1092
      %v1110 = vunpack.c.h.b16 %v1092
      %v1111 = vunpack.c.l.b16 %v1093
      %v1112 = vunpack.c.h.b16 %v1093
      %v1113 = vunpack.c.l.b16 %v1094
      %v1114 = vunpack.c.h.b16 %v1094
      %v1115 = vunpack.c.l.b16 %v1095
      %v1116 = vunpack.c.h.b16 %v1095
      %v1117 = vunpack.c.l.b16 %v1096
      %v1118 = vunpack.c.h.b16 %v1096
      %v1119 = vunpack.c.l.b16 %v1097
      %v1120 = vunpack.c.h.b16 %v1097
      %v1121 = vunpack.c.l.b16 %v1098
      %v1122 = vunpack.c.h.b16 %v1098
      %v1123 = vpack.c.b16 %v1107, %v1107
      %v1124 = vpack.c.b16 %v1108, %v1108
      %v1125 = vpack.c.b16 %v1109, %v1109
      %v1126 = vpack.c.b16 %v1110, %v1110
      %v1127 = vpack.c.b16 %v1111, %v1111
      %v1128 = vpack.c.b16 %v1112, %v1112
      %v1129 = vpack.c.b16 %v1113, %v1113
      %v1130 = vpack.c.b16 %v1114, %v1114
      %v1131 = vpack.c.b16 %v1115, %v1115
      %v1132 = vpack.c.b16 %v1116, %v1116
      %v1133 = vpack.c.b16 %v1117, %v1117
      %v1134 = vpack.c.b16 %v1118, %v1118
      %v1135 = vpack.c.b16 %v1119, %v1119
      %v1136 = vpack.c.b16 %v1120, %v1120
      %v1137 = vpack.c.b16 %v1121, %v1121
      %v1138 = vpack.c.b16 %v1122, %v1122
      %vm1155 = vcmask 27648
      %1156 = vst.msk [vmem:[%s258] sm:$0xf] %vm1155, %v1123
      %1157 = vst.msk [vmem:[%s258 + $0x4] sm:$0xf] %vm1155, %v1124
      %1158 = vst.msk [vmem:[%s258 + $0x8] sm:$0xf] %vm1155, %v1125
      %1159 = vst.msk [vmem:[%s258 + $0xc] sm:$0xf] %vm1155, %v1126
      %1160 = vst.msk [vmem:[%s258 + $0x10] sm:$0xf] %vm1155, %v1127
      %1161 = vst.msk [vmem:[%s258 + $0x14] sm:$0xf] %vm1155, %v1128
      %1162 = vst.msk [vmem:[%s258 + $0x18] sm:$0xf] %vm1155, %v1129
      %1163 = vst.msk [vmem:[%s258 + $0x1c] sm:$0xf] %vm1155, %v1130
      %1164 = vst.msk [vmem:[%s258 + $0x20] sm:$0xf] %vm1155, %v1131
      %1165 = vst.msk [vmem:[%s258 + $0x24] sm:$0xf] %vm1155, %v1132
      %1166 = vst.msk [vmem:[%s258 + $0x28] sm:$0xf] %vm1155, %v1133
      %1167 = vst.msk [vmem:[%s258 + $0x2c] sm:$0xf] %vm1155, %v1134
      %1168 = vst.msk [vmem:[%s258 + $0x30] sm:$0xf] %vm1155, %v1135
      %1169 = vst.msk [vmem:[%s258 + $0x34] sm:$0xf] %vm1155, %v1136
      %1170 = vst.msk [vmem:[%s258 + $0x38] sm:$0xf] %vm1155, %v1137
      %1171 = vst.msk [vmem:[%s258 + $0x3c] sm:$0xf] %vm1155, %v1138
      %v1172 = vsel %vm645, %v1075, 0.0
      %v1173 = vsel %vm645, %v1076, 0.0
      %v1174 = vadd.f32 %v1172, %v1173
      %v1175 = vsel %vm645, %v1077, 0.0
      %v1176 = vadd.f32 %v1174, %v1175
      %v1177 = vsel %vm645, %v1078, 0.0
      %v1178 = vadd.f32 %v1176, %v1177
      %v1179 = vsel %vm645, %v1079, 0.0
      %v1180 = vadd.f32 %v1178, %v1179
      %v1181 = vsel %vm645, %v1080, 0.0
      %v1182 = vadd.f32 %v1180, %v1181
      %v1183 = vsel %vm645, %v1081, 0.0
      %v1184 = vadd.f32 %v1182, %v1183
      %v1185 = vsel %vm645, %v1082, 0.0
      %v1186 = vadd.f32 %v1184, %v1185
      %v1187 = vsel %vm645, %v1083, 0.0
      %v1188 = vadd.f32 %v1186, %v1187
      %v1189 = vsel %vm645, %v1084, 0.0
      %v1190 = vadd.f32 %v1188, %v1189
      %v1191 = vsel %vm645, %v1085, 0.0
      %v1192 = vadd.f32 %v1190, %v1191
      %v1193 = vsel %vm645, %v1086, 0.0
      %v1194 = vadd.f32 %v1192, %v1193
      %v1195 = vsel %vm645, %v1087, 0.0
      %v1196 = vadd.f32 %v1194, %v1195
      %v1197 = vsel %vm645, %v1088, 0.0
      %v1198 = vadd.f32 %v1196, %v1197
      %v1199 = vsel %vm645, %v1089, 0.0
      %v1200 = vadd.f32 %v1198, %v1199
      %v1201 = vsel %vm645, %v1090, 0.0
      %v1202 = vadd.f32 %v1200, %v1201
      %v1203 = vrot.slane %v1202, 4
      %v1204 = vadd.f32 %v1202, %v1203
      %v1205 = vrot.slane %v1204, 2
      %v1206 = vadd.f32 %v1204, %v1205
      %v1207 = vrot.slane %v1206, 1
      %v1208 = vadd.f32 %v1206, %v1207
      %v1209 = vadd.f32 %v1208, 0.0
      %v1210 = vmul.f32 %v1075, %v1075
      %v1211 = vmul.f32 %v1076, %v1076
      %v1212 = vmul.f32 %v1077, %v1077
      %v1213 = vmul.f32 %v1078, %v1078
      %v1214 = vmul.f32 %v1079, %v1079
      %v1215 = vmul.f32 %v1080, %v1080
      %v1216 = vmul.f32 %v1081, %v1081
      %v1217 = vmul.f32 %v1082, %v1082
      %v1218 = vmul.f32 %v1083, %v1083
      %v1219 = vmul.f32 %v1084, %v1084
      %v1220 = vmul.f32 %v1085, %v1085
      %v1221 = vmul.f32 %v1086, %v1086
      %v1222 = vmul.f32 %v1087, %v1087
      %v1223 = vmul.f32 %v1088, %v1088
      %v1224 = vmul.f32 %v1089, %v1089
      %v1225 = vmul.f32 %v1090, %v1090
      %v1226 = vsel %vm645, %v1210, 0.0
      %v1227 = vsel %vm645, %v1211, 0.0
      %v1228 = vadd.f32 %v1226, %v1227
      %v1229 = vsel %vm645, %v1212, 0.0
      %v1230 = vadd.f32 %v1228, %v1229
      %v1231 = vsel %vm645, %v1213, 0.0
      %v1232 = vadd.f32 %v1230, %v1231
      %v1233 = vsel %vm645, %v1214, 0.0
      %v1234 = vadd.f32 %v1232, %v1233
      %v1235 = vsel %vm645, %v1215, 0.0
      %v1236 = vadd.f32 %v1234, %v1235
      %v1237 = vsel %vm645, %v1216, 0.0
      %v1238 = vadd.f32 %v1236, %v1237
      %v1239 = vsel %vm645, %v1217, 0.0
      %v1240 = vadd.f32 %v1238, %v1239
      %v1241 = vsel %vm645, %v1218, 0.0
      %v1242 = vadd.f32 %v1240, %v1241
      %v1243 = vsel %vm645, %v1219, 0.0
      %v1244 = vadd.f32 %v1242, %v1243
      %v1245 = vsel %vm645, %v1220, 0.0
      %v1246 = vadd.f32 %v1244, %v1245
      %v1247 = vsel %vm645, %v1221, 0.0
      %v1248 = vadd.f32 %v1246, %v1247
      %v1249 = vsel %vm645, %v1222, 0.0
      %v1250 = vadd.f32 %v1248, %v1249
      %v1251 = vsel %vm645, %v1223, 0.0
      %v1252 = vadd.f32 %v1250, %v1251
      %v1253 = vsel %vm645, %v1224, 0.0
      %v1254 = vadd.f32 %v1252, %v1253
      %v1255 = vsel %vm645, %v1225, 0.0
      %v1256 = vadd.f32 %v1254, %v1255
      %v1257 = vrot.slane %v1256, 4
      %v1258 = vadd.f32 %v1256, %v1257
      %v1259 = vrot.slane %v1258, 2
      %v1260 = vadd.f32 %v1258, %v1259
      %v1261 = vrot.slane %v1260, 1
      %v1262 = vadd.f32 %v1260, %v1261
      %v1263 = vadd.f32 %v1262, 0.0
      %s1264 = scalar_lea.vmem %s253, 56
      %v1265 = vld [vmem:[%s1264] sm:$0xf]
      %v1266 = vld [vmem:[%s1264 + $0x4] sm:$0xf]
      %v1267 = vld [vmem:[%s1264 + $0x8] sm:$0xf]
      %v1268 = vld [vmem:[%s1264 + $0xc] sm:$0xf]
      %v1269 = vld [vmem:[%s1264 + $0x10] sm:$0xf]
      %v1270 = vld [vmem:[%s1264 + $0x14] sm:$0xf]
      %v1271 = vld [vmem:[%s1264 + $0x18] sm:$0xf]
      %v1272 = vld [vmem:[%s1264 + $0x1c] sm:$0xf]
      %v1273 = vld [vmem:[%s1264 + $0x20] sm:$0xf]
      %v1274 = vld [vmem:[%s1264 + $0x24] sm:$0xf]
      %v1275 = vld [vmem:[%s1264 + $0x28] sm:$0xf]
      %v1276 = vld [vmem:[%s1264 + $0x2c] sm:$0xf]
      %v1277 = vld [vmem:[%s1264 + $0x30] sm:$0xf]
      %v1278 = vld [vmem:[%s1264 + $0x34] sm:$0xf]
      %v1279 = vld [vmem:[%s1264 + $0x38] sm:$0xf]
      %v1280 = vld [vmem:[%s1264 + $0x3c] sm:$0xf]
      %v1281 = vld [vmem:[%s1264 + $0x40] sm:$0xf]
      %v1282 = vld [vmem:[%s1264 + $0x44] sm:$0xf]
      %v1283 = vunpack.c.l.bf16 %v1265
      %v1284 = vunpack.c.l.bf16 %v1266
      %v1285 = vunpack.c.l.bf16 %v1267
      %v1286 = vunpack.c.l.bf16 %v1268
      %v1287 = vunpack.c.l.bf16 %v1269
      %v1288 = vunpack.c.l.bf16 %v1270
      %v1289 = vunpack.c.l.bf16 %v1271
      %v1290 = vunpack.c.l.bf16 %v1272
      %v1291 = vunpack.c.l.bf16 %v1273
      %v1292 = vunpack.c.l.bf16 %v1274
      %v1293 = vunpack.c.l.bf16 %v1275
      %v1294 = vunpack.c.l.bf16 %v1276
      %v1295 = vunpack.c.l.bf16 %v1277
      %v1296 = vunpack.c.l.bf16 %v1278
      %v1297 = vunpack.c.l.bf16 %v1279
      %v1298 = vunpack.c.l.bf16 %v1280
      %v1299 = vunpack.c.l.bf16 %v1281
      %v1300 = vunpack.c.l.bf16 %v1282
      %v1301 = vmul.f32 %v1283, %v306
      %v1302 = vmul.f32 %v1284, %v306
      %v1303 = vmul.f32 %v1285, %v306
      %v1304 = vmul.f32 %v1286, %v306
      %v1305 = vmul.f32 %v1287, %v306
      %v1306 = vmul.f32 %v1288, %v306
      %v1307 = vmul.f32 %v1289, %v306
      %v1308 = vmul.f32 %v1290, %v306
      %v1309 = vmul.f32 %v1291, %v306
      %v1310 = vmul.f32 %v1292, %v306
      %v1311 = vmul.f32 %v1293, %v306
      %v1312 = vmul.f32 %v1294, %v306
      %v1313 = vmul.f32 %v1295, %v306
      %v1314 = vmul.f32 %v1296, %v306
      %v1315 = vmul.f32 %v1297, %v306
      %v1316 = vmul.f32 %v1298, %v306
      %v1317 = vmul.f32 %v1299, %v306
      %v1318 = vmul.f32 %v1300, %v306
      %v1319 = vadd.f32 %v1301, %v330
      %v1320 = vadd.f32 %v1302, %v330
      %v1321 = vadd.f32 %v1303, %v330
      %v1322 = vadd.f32 %v1304, %v330
      %v1323 = vadd.f32 %v1305, %v330
      %v1324 = vadd.f32 %v1306, %v330
      %v1325 = vadd.f32 %v1307, %v330
      %v1326 = vadd.f32 %v1308, %v330
      %v1327 = vadd.f32 %v1309, %v330
      %v1328 = vadd.f32 %v1310, %v330
      %v1329 = vadd.f32 %v1311, %v330
      %v1330 = vadd.f32 %v1312, %v330
      %v1331 = vadd.f32 %v1313, %v330
      %v1332 = vadd.f32 %v1314, %v330
      %v1333 = vadd.f32 %v1315, %v330
      %v1334 = vadd.f32 %v1316, %v330
      %v1335 = vadd.f32 %v1317, %v330
      %v1336 = vadd.f32 %v1318, %v330
      %v1337 = vmax.f32 %v1319, 0.0
      %v1338 = vmax.f32 %v1320, 0.0
      %v1339 = vmax.f32 %v1321, 0.0
      %v1340 = vmax.f32 %v1322, 0.0
      %v1341 = vmax.f32 %v1323, 0.0
      %v1342 = vmax.f32 %v1324, 0.0
      %v1343 = vmax.f32 %v1325, 0.0
      %v1344 = vmax.f32 %v1326, 0.0
      %v1345 = vmax.f32 %v1327, 0.0
      %v1346 = vmax.f32 %v1328, 0.0
      %v1347 = vmax.f32 %v1329, 0.0
      %v1348 = vmax.f32 %v1330, 0.0
      %v1349 = vmax.f32 %v1331, 0.0
      %v1350 = vmax.f32 %v1332, 0.0
      %v1351 = vmax.f32 %v1333, 0.0
      %v1352 = vmax.f32 %v1334, 0.0
      %v1353 = vmax.f32 %v1335, 0.0
      %v1354 = vmax.f32 %v1336, 0.0
      %v1355 = vrot.slane %v1337, 7
      %v1356 = vrot.slane %v1339, 7
      %v1357 = vrot.slane %v1341, 7
      %v1358 = vrot.slane %v1343, 7
      %v1359 = vrot.slane %v1345, 7
      %v1360 = vrot.slane %v1347, 7
      %v1361 = vrot.slane %v1349, 7
      %v1362 = vrot.slane %v1351, 7
      %v1363 = vrot.slane %v1353, 7
      %v1364 = vrot.slane %v1338, 7
      %v1365 = vrot.slane %v1340, 7
      %v1366 = vrot.slane %v1342, 7
      %v1367 = vrot.slane %v1344, 7
      %v1368 = vrot.slane %v1346, 7
      %v1369 = vrot.slane %v1348, 7
      %v1370 = vrot.slane %v1350, 7
      %v1371 = vrot.slane %v1352, 7
      %v1372 = vrot.slane %v1354, 7
      %v1373 = vsel %vm391, %v1355, %v1364
      %v1374 = vsel %vm391, %v1356, %v1365
      %v1375 = vsel %vm391, %v1357, %v1366
      %v1376 = vsel %vm391, %v1358, %v1367
      %v1377 = vsel %vm391, %v1359, %v1368
      %v1378 = vsel %vm391, %v1360, %v1369
      %v1379 = vsel %vm391, %v1361, %v1370
      %v1380 = vsel %vm391, %v1362, %v1371
      %v1381 = vsel %vm391, %v1363, %v1372
      %v1382 = vsel %vm391, %v1364, %v1355
      %v1383 = vsel %vm391, %v1365, %v1356
      %v1384 = vsel %vm391, %v1366, %v1357
      %v1385 = vsel %vm391, %v1367, %v1358
      %v1386 = vsel %vm391, %v1368, %v1359
      %v1387 = vsel %vm391, %v1369, %v1360
      %v1388 = vsel %vm391, %v1370, %v1361
      %v1389 = vsel %vm391, %v1371, %v1362
      %v1390 = vsel %vm391, %v1372, %v1363
      %v1391 = vsel %vm371, 0.0, %v1382
      %v1392 = vsel %vm372, 0.0, %v1373
      %v1393 = vsel %vm371, 0.0, %v1383
      %v1394 = vsel %vm372, 0.0, %v1374
      %v1395 = vsel %vm371, 0.0, %v1384
      %v1396 = vsel %vm372, 0.0, %v1375
      %v1397 = vsel %vm371, 0.0, %v1385
      %v1398 = vsel %vm372, 0.0, %v1376
      %v1399 = vsel %vm371, 0.0, %v1386
      %v1400 = vsel %vm372, 0.0, %v1377
      %v1401 = vsel %vm371, 0.0, %v1387
      %v1402 = vsel %vm372, 0.0, %v1378
      %v1403 = vsel %vm371, 0.0, %v1388
      %v1404 = vsel %vm372, 0.0, %v1379
      %v1405 = vsel %vm371, 0.0, %v1389
      %v1406 = vsel %vm372, 0.0, %v1380
      %v1407 = vsel %vm371, 0.0, %v1390
      %v1408 = vsel %vm372, 0.0, %v1381
      %v1409 = vrot.slane %v1337, 1
      %v1410 = vrot.slane %v1339, 1
      %v1411 = vrot.slane %v1341, 1
      %v1412 = vrot.slane %v1343, 1
      %v1413 = vrot.slane %v1345, 1
      %v1414 = vrot.slane %v1347, 1
      %v1415 = vrot.slane %v1349, 1
      %v1416 = vrot.slane %v1351, 1
      %v1417 = vrot.slane %v1353, 1
      %v1418 = vrot.slane %v1338, 1
      %v1419 = vrot.slane %v1340, 1
      %v1420 = vrot.slane %v1342, 1
      %v1421 = vrot.slane %v1344, 1
      %v1422 = vrot.slane %v1346, 1
      %v1423 = vrot.slane %v1348, 1
      %v1424 = vrot.slane %v1350, 1
      %v1425 = vrot.slane %v1352, 1
      %v1426 = vrot.slane %v1354, 1
      %v1427 = vsel %vm450, %v1409, %v1418
      %v1428 = vsel %vm450, %v1410, %v1419
      %v1429 = vsel %vm450, %v1411, %v1420
      %v1430 = vsel %vm450, %v1412, %v1421
      %v1431 = vsel %vm450, %v1413, %v1422
      %v1432 = vsel %vm450, %v1414, %v1423
      %v1433 = vsel %vm450, %v1415, %v1424
      %v1434 = vsel %vm450, %v1416, %v1425
      %v1435 = vsel %vm450, %v1417, %v1426
      %v1436 = vsel %vm450, %v1418, %v1409
      %v1437 = vsel %vm450, %v1419, %v1410
      %v1438 = vsel %vm450, %v1420, %v1411
      %v1439 = vsel %vm450, %v1421, %v1412
      %v1440 = vsel %vm450, %v1422, %v1413
      %v1441 = vsel %vm450, %v1423, %v1414
      %v1442 = vsel %vm450, %v1424, %v1415
      %v1443 = vsel %vm450, %v1425, %v1416
      %v1444 = vsel %vm450, %v1426, %v1417
      %v1445 = vsel %vm430, 0.0, %v1427
      %v1446 = vsel %vm431, 0.0, %v1436
      %v1447 = vsel %vm430, 0.0, %v1428
      %v1448 = vsel %vm431, 0.0, %v1437
      %v1449 = vsel %vm430, 0.0, %v1429
      %v1450 = vsel %vm431, 0.0, %v1438
      %v1451 = vsel %vm430, 0.0, %v1430
      %v1452 = vsel %vm431, 0.0, %v1439
      %v1453 = vsel %vm430, 0.0, %v1431
      %v1454 = vsel %vm431, 0.0, %v1440
      %v1455 = vsel %vm430, 0.0, %v1432
      %v1456 = vsel %vm431, 0.0, %v1441
      %v1457 = vsel %vm430, 0.0, %v1433
      %v1458 = vsel %vm431, 0.0, %v1442
      %v1459 = vsel %vm430, 0.0, %v1434
      %v1460 = vsel %vm431, 0.0, %v1443
      %v1461 = vsel %vm430, 0.0, %v1435
      %v1462 = vsel %vm431, 0.0, %v1444
      %1481 = vrot.lane.b32.xlu0 %v1337, 4
      %v1482 = vpop.permute.xlu0 %1481
      %1483 = vrot.lane.b32.xlu0 %v1338, 4
      %v1484 = vpop.permute.xlu0 %1483
      %1485 = vrot.lane.b32.xlu0 %v1339, 4
      %v1486 = vpop.permute.xlu0 %1485
      %1487 = vrot.lane.b32.xlu0 %v1340, 4
      %v1488 = vpop.permute.xlu0 %1487
      %1489 = vrot.lane.b32.xlu0 %v1341, 4
      %v1490 = vpop.permute.xlu0 %1489
      %1491 = vrot.lane.b32.xlu0 %v1342, 4
      %v1492 = vpop.permute.xlu0 %1491
      %1493 = vrot.lane.b32.xlu0 %v1343, 4
      %v1494 = vpop.permute.xlu0 %1493
      %1495 = vrot.lane.b32.xlu0 %v1344, 4
      %v1496 = vpop.permute.xlu0 %1495
      %1497 = vrot.lane.b32.xlu0 %v1345, 4
      %v1498 = vpop.permute.xlu0 %1497
      %1499 = vrot.lane.b32.xlu0 %v1346, 4
      %v1500 = vpop.permute.xlu0 %1499
      %1501 = vrot.lane.b32.xlu0 %v1347, 4
      %v1502 = vpop.permute.xlu0 %1501
      %1503 = vrot.lane.b32.xlu0 %v1348, 4
      %v1504 = vpop.permute.xlu0 %1503
      %1505 = vrot.lane.b32.xlu0 %v1349, 4
      %v1506 = vpop.permute.xlu0 %1505
      %1507 = vrot.lane.b32.xlu0 %v1350, 4
      %v1508 = vpop.permute.xlu0 %1507
      %1509 = vrot.lane.b32.xlu0 %v1351, 4
      %v1510 = vpop.permute.xlu0 %1509
      %1511 = vrot.lane.b32.xlu0 %v1352, 4
      %v1512 = vpop.permute.xlu0 %1511
      %1513 = vrot.lane.b32.xlu0 %v1353, 4
      %v1514 = vpop.permute.xlu0 %1513
      %1515 = vrot.lane.b32.xlu0 %v1354, 4
      %v1516 = vpop.permute.xlu0 %1515
      %1553 = vrot.lane.b32.xlu0 %v1445, 8
      %v1554 = vpop.permute.xlu0 %1553
      %1555 = vrot.lane.b32.xlu0 %v1446, 8
      %v1556 = vpop.permute.xlu0 %1555
      %1557 = vrot.lane.b32.xlu0 %v1447, 8
      %v1558 = vpop.permute.xlu0 %1557
      %1559 = vrot.lane.b32.xlu0 %v1448, 8
      %v1560 = vpop.permute.xlu0 %1559
      %1561 = vrot.lane.b32.xlu0 %v1449, 8
      %v1562 = vpop.permute.xlu0 %1561
      %1563 = vrot.lane.b32.xlu0 %v1450, 8
      %v1564 = vpop.permute.xlu0 %1563
      %1565 = vrot.lane.b32.xlu0 %v1451, 8
      %v1566 = vpop.permute.xlu0 %1565
      %1567 = vrot.lane.b32.xlu0 %v1452, 8
      %v1568 = vpop.permute.xlu0 %1567
      %1569 = vrot.lane.b32.xlu0 %v1453, 8
      %v1570 = vpop.permute.xlu0 %1569
      %1571 = vrot.lane.b32.xlu0 %v1454, 8
      %v1572 = vpop.permute.xlu0 %1571
      %1573 = vrot.lane.b32.xlu0 %v1455, 8
      %v1574 = vpop.permute.xlu0 %1573
      %1575 = vrot.lane.b32.xlu0 %v1456, 8
      %v1576 = vpop.permute.xlu0 %1575
      %1577 = vrot.lane.b32.xlu0 %v1457, 8
      %v1578 = vpop.permute.xlu0 %1577
      %1579 = vrot.lane.b32.xlu0 %v1458, 8
      %v1580 = vpop.permute.xlu0 %1579
      %1581 = vrot.lane.b32.xlu0 %v1459, 8
      %v1582 = vpop.permute.xlu0 %1581
      %1583 = vrot.lane.b32.xlu0 %v1460, 8
      %v1584 = vpop.permute.xlu0 %1583
      %1585 = vrot.lane.b32.xlu0 %v1461, 8
      %v1586 = vpop.permute.xlu0 %1585
      %1587 = vrot.lane.b32.xlu0 %v1462, 8
      %v1588 = vpop.permute.xlu0 %1587
      %v1607 = vsel %vm645, %v1391, %v1482
      %v1608 = vsel %vm645, %v1392, %v1484
      %v1609 = vsel %vm645, %v1393, %v1486
      %v1610 = vsel %vm645, %v1394, %v1488
      %v1611 = vsel %vm645, %v1395, %v1490
      %v1612 = vsel %vm645, %v1396, %v1492
      %v1613 = vsel %vm645, %v1397, %v1494
      %v1614 = vsel %vm645, %v1398, %v1496
      %v1615 = vsel %vm645, %v1399, %v1498
      %v1616 = vsel %vm645, %v1400, %v1500
      %v1617 = vsel %vm645, %v1401, %v1502
      %v1618 = vsel %vm645, %v1402, %v1504
      %v1619 = vsel %vm645, %v1403, %v1506
      %v1620 = vsel %vm645, %v1404, %v1508
      %v1621 = vsel %vm645, %v1405, %v1510
      %v1622 = vsel %vm645, %v1406, %v1512
      %v1623 = vsel %vm645, %v1407, %v1514
      %v1624 = vsel %vm645, %v1408, %v1516
      %v1625 = vsel %vm666, %v1607, %v1554
      %v1626 = vsel %vm666, %v1608, %v1556
      %v1627 = vsel %vm666, %v1609, %v1558
      %v1628 = vsel %vm666, %v1610, %v1560
      %v1629 = vsel %vm666, %v1611, %v1562
      %v1630 = vsel %vm666, %v1612, %v1564
      %v1631 = vsel %vm666, %v1613, %v1566
      %v1632 = vsel %vm666, %v1614, %v1568
      %v1633 = vsel %vm666, %v1615, %v1570
      %v1634 = vsel %vm666, %v1616, %v1572
      %v1635 = vsel %vm666, %v1617, %v1574
      %v1636 = vsel %vm666, %v1618, %v1576
      %v1637 = vsel %vm666, %v1619, %v1578
      %v1638 = vsel %vm666, %v1620, %v1580
      %v1639 = vsel %vm666, %v1621, %v1582
      %v1640 = vsel %vm666, %v1622, %v1584
      %v1641 = vsel %vm666, %v1623, %v1586
      %v1642 = vsel %vm666, %v1624, %v1588
      %v1643 = vpack.c.bf16 %v1626, %v1625
      %v1644 = vpack.c.bf16 %v1628, %v1627
      %v1645 = vpack.c.bf16 %v1630, %v1629
      %v1646 = vpack.c.bf16 %v1632, %v1631
      %v1647 = vpack.c.bf16 %v1634, %v1633
      %v1648 = vpack.c.bf16 %v1636, %v1635
      %v1649 = vpack.c.bf16 %v1638, %v1637
      %v1650 = vpack.c.bf16 %v1640, %v1639
      %v1651 = vpack.c.bf16 %v1642, %v1641
      %v1652 = vld [vmem:[%s3] sm:$0xf]
      %v1653 = vld [vmem:[%s3 + $0x4] sm:$0x3]
      %v1654 = vld [vmem:[%s699] sm:$0xf]
      %v1655 = vld [vmem:[%s699 + $0x4] sm:$0x3]
      %v1658 = vunpack.c.l.b16 %v1654
      %v1659 = vunpack.c.l.b16 %v1655
      %v1660 = vpack.c.b16 %v1659, %v1658
      %v1662 = vsel %vm707, %v1644, 0
      %v1665 = vsel %vm707, %v1645, 0
      %v1668 = vsel %vm707, %v1646, 0
      %v1671 = vsel %vm707, %v1647, 0
      %v1674 = vsel %vm707, %v1648, 0
      %v1677 = vsel %vm707, %v1649, 0
      %v1680 = vsel %vm707, %v1650, 0
      %v1683 = vsel %vm707, %v1651, 0
      %v1686 = vsel %vm732, %v1660, 0
      %1688 = vmatprep.subr.bf16.mxu0 0
      %1689 = vmatpush1.bf16.msra.mxu0 %v1686
      %1690 = vmatprep.subr.bf16.mxu0 0
      %1691 = vmatpush1.bf16.msra.mxu0 0
      %1692 = vmatprep.subr.bf16.mxu0 0
      %1693 = vmatpush1.bf16.msra.mxu0 0
      %1694 = vmatprep.subr.bf16.mxu0 0
      %1695 = vmatpush1.bf16.msra.mxu0 0
      %1696 = vmatprep.subr.bf16.mxu0 0
      %1697 = vmatpush1.bf16.msra.mxu0 0
      %1698 = vmatprep.subr.bf16.mxu0 0
      %1699 = vmatpush1.bf16.msra.mxu0 0
      %1700 = vmatprep.subr.bf16.mxu0 0
      %1701 = vmatpush1.bf16.msra.mxu0 0
      %1702 = vmatprep.subr.bf16.mxu0 0
      %1703 = vmatpush1.bf16.msra.mxu0 0
      %1704 = vmatprep.subr.bf16.mxu0 0
      %1705 = vmatpush1.bf16.msra.mxu0 0
      %1706 = vmatprep.subr.bf16.mxu0 0
      %1707 = vmatpush1.bf16.msra.mxu0 0
      %1708 = vmatprep.subr.bf16.mxu0 0
      %1709 = vmatpush1.bf16.msra.mxu0 0
      %1710 = vmatprep.subr.bf16.mxu0 0
      %1711 = vmatpush1.bf16.msra.mxu0 0
      %1712 = vmatprep.subr.bf16.mxu0 0
      %1713 = vmatpush1.bf16.msra.mxu0 0
      %1714 = vmatprep.subr.bf16.mxu0 0
      %1715 = vmatpush1.bf16.msra.mxu0 0
      %1716 = vmatprep.subr.bf16.mxu0 0
      %1717 = vmatpush1.bf16.msra.mxu0 0
      %1718 = vmatprep.subr.bf16.mxu0 0
      %1719 = vmatpush1.bf16.msra.mxu0 0
      %1720 = vmatprep.mubr.bf16.mxu0 0
      %1721 = vmatmul.mubr.bf16.gmra.mrb[0].mxu0 %v1662
      %v1722 = vpop.f32.mrb[0].mxu0
      %v1723 = vadd.f32 0.0, %v1722
      %v1724 = vpop.f32.mrb[0].mxu0
      %v1725 = vpop.f32.mrb[0].mxu0
      %v1726 = vadd.f32 0.0, %v1725
      %v1727 = vpop.f32.mrb[0].mxu0
      %1728 = vmatprep.mubr.bf16.mxu0 0
      %1729 = vmatmul.mubr.bf16.gmra.mrb[0].mxu0 %v1665
      %v1730 = vpop.f32.mrb[0].mxu0
      %v1731 = vadd.f32 0.0, %v1730
      %v1732 = vpop.f32.mrb[0].mxu0
      %v1733 = vpop.f32.mrb[0].mxu0
      %v1734 = vadd.f32 0.0, %v1733
      %v1735 = vpop.f32.mrb[0].mxu0
      %1736 = vmatprep.mubr.bf16.mxu0 0
      %1737 = vmatmul.mubr.bf16.gmra.mrb[0].mxu0 %v1668
      %v1738 = vpop.f32.mrb[0].mxu0
      %v1739 = vadd.f32 0.0, %v1738
      %v1740 = vpop.f32.mrb[0].mxu0
      %v1741 = vpop.f32.mrb[0].mxu0
      %v1742 = vadd.f32 0.0, %v1741
      %v1743 = vpop.f32.mrb[0].mxu0
      %1744 = vmatprep.mubr.bf16.mxu0 0
      %1745 = vmatmul.mubr.bf16.gmra.mrb[0].mxu0 %v1671
      %v1746 = vpop.f32.mrb[0].mxu0
      %v1747 = vadd.f32 0.0, %v1746
      %v1748 = vpop.f32.mrb[0].mxu0
      %v1749 = vpop.f32.mrb[0].mxu0
      %v1750 = vadd.f32 0.0, %v1749
      %v1751 = vpop.f32.mrb[0].mxu0
      %1752 = vmatprep.mubr.bf16.mxu0 0
      %1753 = vmatmul.mubr.bf16.gmra.mrb[0].mxu0 %v1674
      %v1754 = vpop.f32.mrb[0].mxu0
      %v1755 = vadd.f32 0.0, %v1754
      %v1756 = vpop.f32.mrb[0].mxu0
      %v1757 = vpop.f32.mrb[0].mxu0
      %v1758 = vadd.f32 0.0, %v1757
      %v1759 = vpop.f32.mrb[0].mxu0
      %1760 = vmatprep.mubr.bf16.mxu0 0
      %1761 = vmatmul.mubr.bf16.gmra.mrb[0].mxu0 %v1677
      %v1762 = vpop.f32.mrb[0].mxu0
      %v1763 = vadd.f32 0.0, %v1762
      %v1764 = vpop.f32.mrb[0].mxu0
      %v1765 = vpop.f32.mrb[0].mxu0
      %v1766 = vadd.f32 0.0, %v1765
      %v1767 = vpop.f32.mrb[0].mxu0
      %1768 = vmatprep.mubr.bf16.mxu0 0
      %1769 = vmatmul.mubr.bf16.gmra.mrb[0].mxu0 %v1680
      %v1770 = vpop.f32.mrb[0].mxu0
      %v1771 = vadd.f32 0.0, %v1770
      %v1772 = vpop.f32.mrb[0].mxu0
      %v1773 = vpop.f32.mrb[0].mxu0
      %v1774 = vadd.f32 0.0, %v1773
      %v1775 = vpop.f32.mrb[0].mxu0
      %1776 = vmatprep.mubr.bf16.mxu0 0
      %1777 = vmatmul.mubr.bf16.gmra.mrb[0].mxu0 %v1683
      %v1778 = vpop.f32.mrb[0].mxu0
      %v1779 = vadd.f32 0.0, %v1778
      %v1780 = vpop.f32.mrb[0].mxu0
      %v1781 = vpop.f32.mrb[0].mxu0
      %v1782 = vadd.f32 0.0, %v1781
      %v1783 = vpop.f32.mrb[0].mxu0
      %1784 = vdwg.mxu0
      %v1787 = vunpack.c.l.b16 %v1652
      %v1788 = vunpack.c.l.b16 %v1653
      %v1789 = vpack.c.b16 %v1788, %v1787
      %v1791 = vsel %vm707, %v1643, 0
      %v1794 = vsel %vm732, %v1789, 0
      %1796 = vmatprep.subr.bf16.mxu0 0
      %1797 = vmatpush1.bf16.msra.mxu0 %v1794
      %1798 = vmatprep.subr.bf16.mxu0 0
      %1799 = vmatpush1.bf16.msra.mxu0 0
      %1800 = vmatprep.subr.bf16.mxu0 0
      %1801 = vmatpush1.bf16.msra.mxu0 0
      %1802 = vmatprep.subr.bf16.mxu0 0
      %1803 = vmatpush1.bf16.msra.mxu0 0
      %1804 = vmatprep.subr.bf16.mxu0 0
      %1805 = vmatpush1.bf16.msra.mxu0 0
      %1806 = vmatprep.subr.bf16.mxu0 0
      %1807 = vmatpush1.bf16.msra.mxu0 0
      %1808 = vmatprep.subr.bf16.mxu0 0
      %1809 = vmatpush1.bf16.msra.mxu0 0
      %1810 = vmatprep.subr.bf16.mxu0 0
      %1811 = vmatpush1.bf16.msra.mxu0 0
      %1812 = vmatprep.subr.bf16.mxu0 0
      %1813 = vmatpush1.bf16.msra.mxu0 0
      %1814 = vmatprep.subr.bf16.mxu0 0
      %1815 = vmatpush1.bf16.msra.mxu0 0
      %1816 = vmatprep.subr.bf16.mxu0 0
      %1817 = vmatpush1.bf16.msra.mxu0 0
      %1818 = vmatprep.subr.bf16.mxu0 0
      %1819 = vmatpush1.bf16.msra.mxu0 0
      %1820 = vmatprep.subr.bf16.mxu0 0
      %1821 = vmatpush1.bf16.msra.mxu0 0
      %1822 = vmatprep.subr.bf16.mxu0 0
      %1823 = vmatpush1.bf16.msra.mxu0 0
      %1824 = vmatprep.subr.bf16.mxu0 0
      %1825 = vmatpush1.bf16.msra.mxu0 0
      %1826 = vmatprep.subr.bf16.mxu0 0
      %1827 = vmatpush1.bf16.msra.mxu0 0
      %1828 = vmatprep.mubr.bf16.mxu0 0
      %1829 = vmatmul.mubr.bf16.gmra.mrb[0].mxu0 %v1791
      %v1830 = vpop.f32.mrb[0].mxu0
      %v1831 = vadd.f32 %v1723, %v1830
      %v1832 = vpop.f32.mrb[0].mxu0
      %v1833 = vpop.f32.mrb[0].mxu0
      %v1834 = vadd.f32 %v1726, %v1833
      %v1835 = vpop.f32.mrb[0].mxu0
      %1836 = vmatprep.mubr.bf16.mxu0 0
      %1837 = vmatmul.mubr.bf16.gmra.mrb[0].mxu0 %v1662
      %v1838 = vpop.f32.mrb[0].mxu0
      %v1839 = vadd.f32 %v1731, %v1838
      %v1840 = vpop.f32.mrb[0].mxu0
      %v1841 = vpop.f32.mrb[0].mxu0
      %v1842 = vadd.f32 %v1734, %v1841
      %v1843 = vpop.f32.mrb[0].mxu0
      %1844 = vmatprep.mubr.bf16.mxu0 0
      %1845 = vmatmul.mubr.bf16.gmra.mrb[0].mxu0 %v1665
      %v1846 = vpop.f32.mrb[0].mxu0
      %v1847 = vadd.f32 %v1739, %v1846
      %v1848 = vpop.f32.mrb[0].mxu0
      %v1849 = vpop.f32.mrb[0].mxu0
      %v1850 = vadd.f32 %v1742, %v1849
      %v1851 = vpop.f32.mrb[0].mxu0
      %1852 = vmatprep.mubr.bf16.mxu0 0
      %1853 = vmatmul.mubr.bf16.gmra.mrb[0].mxu0 %v1668
      %v1854 = vpop.f32.mrb[0].mxu0
      %v1855 = vadd.f32 %v1747, %v1854
      %v1856 = vpop.f32.mrb[0].mxu0
      %v1857 = vpop.f32.mrb[0].mxu0
      %v1858 = vadd.f32 %v1750, %v1857
      %v1859 = vpop.f32.mrb[0].mxu0
      %1860 = vmatprep.mubr.bf16.mxu0 0
      %1861 = vmatmul.mubr.bf16.gmra.mrb[0].mxu0 %v1671
      %v1862 = vpop.f32.mrb[0].mxu0
      %v1863 = vadd.f32 %v1755, %v1862
      %v1864 = vpop.f32.mrb[0].mxu0
      %v1865 = vpop.f32.mrb[0].mxu0
      %v1866 = vadd.f32 %v1758, %v1865
      %v1867 = vpop.f32.mrb[0].mxu0
      %1868 = vmatprep.mubr.bf16.mxu0 0
      %1869 = vmatmul.mubr.bf16.gmra.mrb[0].mxu0 %v1674
      %v1870 = vpop.f32.mrb[0].mxu0
      %v1871 = vadd.f32 %v1763, %v1870
      %v1872 = vpop.f32.mrb[0].mxu0
      %v1873 = vpop.f32.mrb[0].mxu0
      %v1874 = vadd.f32 %v1766, %v1873
      %v1875 = vpop.f32.mrb[0].mxu0
      %1876 = vmatprep.mubr.bf16.mxu0 0
      %1877 = vmatmul.mubr.bf16.gmra.mrb[0].mxu0 %v1677
      %v1878 = vpop.f32.mrb[0].mxu0
      %v1879 = vadd.f32 %v1771, %v1878
      %v1880 = vpop.f32.mrb[0].mxu0
      %v1881 = vpop.f32.mrb[0].mxu0
      %v1882 = vadd.f32 %v1774, %v1881
      %v1883 = vpop.f32.mrb[0].mxu0
      %1884 = vmatprep.mubr.bf16.mxu0 0
      %1885 = vmatmul.mubr.bf16.gmra.mrb[0].mxu0 %v1680
      %v1886 = vpop.f32.mrb[0].mxu0
      %v1887 = vadd.f32 %v1779, %v1886
      %v1888 = vpop.f32.mrb[0].mxu0
      %v1889 = vpop.f32.mrb[0].mxu0
      %v1890 = vadd.f32 %v1782, %v1889
      %v1891 = vpop.f32.mrb[0].mxu0
      %1892 = vdwg.mxu0
      %v1893 = vld [vmem:[%s941] sm:$0xf]
      %v1894 = vld [vmem:[%s941 + $0x4] sm:$0x3]
      %v1897 = vunpack.c.l.b16 %v1893
      %v1898 = vunpack.c.l.b16 %v1894
      %v1899 = vpack.c.b16 %v1898, %v1897
      %v1901 = vsel %vm732, %v1899, 0
      %1903 = vmatprep.subr.bf16.mxu0 0
      %1904 = vmatpush1.bf16.msra.mxu0 %v1901
      %1905 = vmatprep.subr.bf16.mxu0 0
      %1906 = vmatpush1.bf16.msra.mxu0 0
      %1907 = vmatprep.subr.bf16.mxu0 0
      %1908 = vmatpush1.bf16.msra.mxu0 0
      %1909 = vmatprep.subr.bf16.mxu0 0
      %1910 = vmatpush1.bf16.msra.mxu0 0
      %1911 = vmatprep.subr.bf16.mxu0 0
      %1912 = vmatpush1.bf16.msra.mxu0 0
      %1913 = vmatprep.subr.bf16.mxu0 0
      %1914 = vmatpush1.bf16.msra.mxu0 0
      %1915 = vmatprep.subr.bf16.mxu0 0
      %1916 = vmatpush1.bf16.msra.mxu0 0
      %1917 = vmatprep.subr.bf16.mxu0 0
      %1918 = vmatpush1.bf16.msra.mxu0 0
      %1919 = vmatprep.subr.bf16.mxu0 0
      %1920 = vmatpush1.bf16.msra.mxu0 0
      %1921 = vmatprep.subr.bf16.mxu0 0
      %1922 = vmatpush1.bf16.msra.mxu0 0
      %1923 = vmatprep.subr.bf16.mxu0 0
      %1924 = vmatpush1.bf16.msra.mxu0 0
      %1925 = vmatprep.subr.bf16.mxu0 0
      %1926 = vmatpush1.bf16.msra.mxu0 0
      %1927 = vmatprep.subr.bf16.mxu0 0
      %1928 = vmatpush1.bf16.msra.mxu0 0
      %1929 = vmatprep.subr.bf16.mxu0 0
      %1930 = vmatpush1.bf16.msra.mxu0 0
      %1931 = vmatprep.subr.bf16.mxu0 0
      %1932 = vmatpush1.bf16.msra.mxu0 0
      %1933 = vmatprep.subr.bf16.mxu0 0
      %1934 = vmatpush1.bf16.msra.mxu0 0
      %1935 = vmatprep.mubr.bf16.mxu0 0
      %1936 = vmatmul.mubr.bf16.gmra.mrb[0].mxu0 %v1665
      %v1937 = vpop.f32.mrb[0].mxu0
      %v1938 = vadd.f32 0.0, %v1937
      %v1939 = vpop.f32.mrb[0].mxu0
      %v1940 = vpop.f32.mrb[0].mxu0
      %v1941 = vadd.f32 0.0, %v1940
      %v1942 = vpop.f32.mrb[0].mxu0
      %1943 = vmatprep.mubr.bf16.mxu0 0
      %1944 = vmatmul.mubr.bf16.gmra.mrb[0].mxu0 %v1668
      %v1945 = vpop.f32.mrb[0].mxu0
      %v1946 = vadd.f32 0.0, %v1945
      %v1947 = vpop.f32.mrb[0].mxu0
      %v1948 = vpop.f32.mrb[0].mxu0
      %v1949 = vadd.f32 0.0, %v1948
      %v1950 = vpop.f32.mrb[0].mxu0
      %1951 = vmatprep.mubr.bf16.mxu0 0
      %1952 = vmatmul.mubr.bf16.gmra.mrb[0].mxu0 %v1671
      %v1953 = vpop.f32.mrb[0].mxu0
      %v1954 = vadd.f32 0.0, %v1953
      %v1955 = vpop.f32.mrb[0].mxu0
      %v1956 = vpop.f32.mrb[0].mxu0
      %v1957 = vadd.f32 0.0, %v1956
      %v1958 = vpop.f32.mrb[0].mxu0
      %1959 = vmatprep.mubr.bf16.mxu0 0
      %1960 = vmatmul.mubr.bf16.gmra.mrb[0].mxu0 %v1674
      %v1961 = vpop.f32.mrb[0].mxu0
      %v1962 = vadd.f32 0.0, %v1961
      %v1963 = vpop.f32.mrb[0].mxu0
      %v1964 = vpop.f32.mrb[0].mxu0
      %v1965 = vadd.f32 0.0, %v1964
      %v1966 = vpop.f32.mrb[0].mxu0
      %1967 = vmatprep.mubr.bf16.mxu0 0
      %1968 = vmatmul.mubr.bf16.gmra.mrb[0].mxu0 %v1677
      %v1969 = vpop.f32.mrb[0].mxu0
      %v1970 = vadd.f32 0.0, %v1969
      %v1971 = vpop.f32.mrb[0].mxu0
      %v1972 = vpop.f32.mrb[0].mxu0
      %v1973 = vadd.f32 0.0, %v1972
      %v1974 = vpop.f32.mrb[0].mxu0
      %1975 = vmatprep.mubr.bf16.mxu0 0
      %1976 = vmatmul.mubr.bf16.gmra.mrb[0].mxu0 %v1680
      %v1977 = vpop.f32.mrb[0].mxu0
      %v1978 = vadd.f32 0.0, %v1977
      %v1979 = vpop.f32.mrb[0].mxu0
      %v1980 = vpop.f32.mrb[0].mxu0
      %v1981 = vadd.f32 0.0, %v1980
      %v1982 = vpop.f32.mrb[0].mxu0
      %1983 = vmatprep.mubr.bf16.mxu0 0
      %1984 = vmatmul.mubr.bf16.gmra.mrb[0].mxu0 %v1683
      %v1985 = vpop.f32.mrb[0].mxu0
      %v1986 = vadd.f32 0.0, %v1985
      %v1987 = vpop.f32.mrb[0].mxu0
      %v1988 = vpop.f32.mrb[0].mxu0
      %v1989 = vadd.f32 0.0, %v1988
      %v1990 = vpop.f32.mrb[0].mxu0
      %1991 = vmatprep.mubr.bf16.mxu0 0
      %1992 = vmatmul.mubr.bf16.gmra.mrb[0].mxu0 %v839
      %v1993 = vpop.f32.mrb[0].mxu0
      %v1994 = vadd.f32 0.0, %v1993
      %v1995 = vpop.f32.mrb[0].mxu0
      %v1996 = vpop.f32.mrb[0].mxu0
      %v1997 = vadd.f32 0.0, %v1996
      %v1998 = vpop.f32.mrb[0].mxu0
      %1999 = vdwg.mxu0
      %v2000 = vadd.f32 %v1831, %v1938
      %v2001 = vadd.f32 %v1834, %v1941
      %v2002 = vadd.f32 %v1839, %v1946
      %v2003 = vadd.f32 %v1842, %v1949
      %v2004 = vadd.f32 %v1847, %v1954
      %v2005 = vadd.f32 %v1850, %v1957
      %v2006 = vadd.f32 %v1855, %v1962
      %v2007 = vadd.f32 %v1858, %v1965
      %v2008 = vadd.f32 %v1863, %v1970
      %v2009 = vadd.f32 %v1866, %v1973
      %v2010 = vadd.f32 %v1871, %v1978
      %v2011 = vadd.f32 %v1874, %v1981
      %v2012 = vadd.f32 %v1879, %v1986
      %v2013 = vadd.f32 %v1882, %v1989
      %v2014 = vadd.f32 %v1887, %v1994
      %v2015 = vadd.f32 %v1890, %v1997
      %v2016 = vld [vmem:[%s4] sm:$0x1]
      %v2018 = vlaneseq
      %v2019 = vshrl.u32 %v2018, 7
      %v2020 = vsub.s32 0, %v2019
      %v2021 = vrot.slane %v2016, %v2020
      %v2023 = vadd.f32 %v2000, %v2021
      %v2024 = vadd.f32 %v2001, %v2021
      %v2025 = vadd.f32 %v2002, %v2021
      %v2026 = vadd.f32 %v2003, %v2021
      %v2027 = vadd.f32 %v2004, %v2021
      %v2028 = vadd.f32 %v2005, %v2021
      %v2029 = vadd.f32 %v2006, %v2021
      %v2030 = vadd.f32 %v2007, %v2021
      %v2031 = vadd.f32 %v2008, %v2021
      %v2032 = vadd.f32 %v2009, %v2021
      %v2033 = vadd.f32 %v2010, %v2021
      %v2034 = vadd.f32 %v2011, %v2021
      %v2035 = vadd.f32 %v2012, %v2021
      %v2036 = vadd.f32 %v2013, %v2021
      %v2037 = vadd.f32 %v2014, %v2021
      %v2038 = vadd.f32 %v2015, %v2021
      %v2039 = vpack.c.bf16 %v2024, %v2023
      %v2040 = vpack.c.bf16 %v2026, %v2025
      %v2041 = vpack.c.bf16 %v2028, %v2027
      %v2042 = vpack.c.bf16 %v2030, %v2029
      %v2043 = vpack.c.bf16 %v2032, %v2031
      %v2044 = vpack.c.bf16 %v2034, %v2033
      %v2045 = vpack.c.bf16 %v2036, %v2035
      %v2046 = vpack.c.bf16 %v2038, %v2037
      %v2055 = vunpack.c.l.b16 %v2039
      %v2056 = vunpack.c.h.b16 %v2039
      %v2057 = vunpack.c.l.b16 %v2040
      %v2058 = vunpack.c.h.b16 %v2040
      %v2059 = vunpack.c.l.b16 %v2041
      %v2060 = vunpack.c.h.b16 %v2041
      %v2061 = vunpack.c.l.b16 %v2042
      %v2062 = vunpack.c.h.b16 %v2042
      %v2063 = vunpack.c.l.b16 %v2043
      %v2064 = vunpack.c.h.b16 %v2043
      %v2065 = vunpack.c.l.b16 %v2044
      %v2066 = vunpack.c.h.b16 %v2044
      %v2067 = vunpack.c.l.b16 %v2045
      %v2068 = vunpack.c.h.b16 %v2045
      %v2069 = vunpack.c.l.b16 %v2046
      %v2070 = vunpack.c.h.b16 %v2046
      %v2071 = vpack.c.b16 %v2055, %v2055
      %v2072 = vpack.c.b16 %v2056, %v2056
      %v2073 = vpack.c.b16 %v2057, %v2057
      %v2074 = vpack.c.b16 %v2058, %v2058
      %v2075 = vpack.c.b16 %v2059, %v2059
      %v2076 = vpack.c.b16 %v2060, %v2060
      %v2077 = vpack.c.b16 %v2061, %v2061
      %v2078 = vpack.c.b16 %v2062, %v2062
      %v2079 = vpack.c.b16 %v2063, %v2063
      %v2080 = vpack.c.b16 %v2064, %v2064
      %v2081 = vpack.c.b16 %v2065, %v2065
      %v2082 = vpack.c.b16 %v2066, %v2066
      %v2083 = vpack.c.b16 %v2067, %v2067
      %v2084 = vpack.c.b16 %v2068, %v2068
      %v2085 = vpack.c.b16 %v2069, %v2069
      %v2086 = vpack.c.b16 %v2070, %v2070
      %s2103 = scalar_lea.vmem %s258, 64
      %2104 = vst.msk [vmem:[%s2103] sm:$0xf] %vm1155, %v2071
      %2105 = vst.msk [vmem:[%s2103 + $0x4] sm:$0xf] %vm1155, %v2072
      %2106 = vst.msk [vmem:[%s2103 + $0x8] sm:$0xf] %vm1155, %v2073
      %2107 = vst.msk [vmem:[%s2103 + $0xc] sm:$0xf] %vm1155, %v2074
      %2108 = vst.msk [vmem:[%s2103 + $0x10] sm:$0xf] %vm1155, %v2075
      %2109 = vst.msk [vmem:[%s2103 + $0x14] sm:$0xf] %vm1155, %v2076
      %2110 = vst.msk [vmem:[%s2103 + $0x18] sm:$0xf] %vm1155, %v2077
      %2111 = vst.msk [vmem:[%s2103 + $0x1c] sm:$0xf] %vm1155, %v2078
      %2112 = vst.msk [vmem:[%s2103 + $0x20] sm:$0xf] %vm1155, %v2079
      %2113 = vst.msk [vmem:[%s2103 + $0x24] sm:$0xf] %vm1155, %v2080
      %2114 = vst.msk [vmem:[%s2103 + $0x28] sm:$0xf] %vm1155, %v2081
      %2115 = vst.msk [vmem:[%s2103 + $0x2c] sm:$0xf] %vm1155, %v2082
      %2116 = vst.msk [vmem:[%s2103 + $0x30] sm:$0xf] %vm1155, %v2083
      %2117 = vst.msk [vmem:[%s2103 + $0x34] sm:$0xf] %vm1155, %v2084
      %2118 = vst.msk [vmem:[%s2103 + $0x38] sm:$0xf] %vm1155, %v2085
      %2119 = vst.msk [vmem:[%s2103 + $0x3c] sm:$0xf] %vm1155, %v2086
      %v2120 = vsel %vm645, %v2023, 0.0
      %v2121 = vsel %vm645, %v2024, 0.0
      %v2122 = vadd.f32 %v2120, %v2121
      %v2123 = vsel %vm645, %v2025, 0.0
      %v2124 = vadd.f32 %v2122, %v2123
      %v2125 = vsel %vm645, %v2026, 0.0
      %v2126 = vadd.f32 %v2124, %v2125
      %v2127 = vsel %vm645, %v2027, 0.0
      %v2128 = vadd.f32 %v2126, %v2127
      %v2129 = vsel %vm645, %v2028, 0.0
      %v2130 = vadd.f32 %v2128, %v2129
      %v2131 = vsel %vm645, %v2029, 0.0
      %v2132 = vadd.f32 %v2130, %v2131
      %v2133 = vsel %vm645, %v2030, 0.0
      %v2134 = vadd.f32 %v2132, %v2133
      %v2135 = vsel %vm645, %v2031, 0.0
      %v2136 = vadd.f32 %v2134, %v2135
      %v2137 = vsel %vm645, %v2032, 0.0
      %v2138 = vadd.f32 %v2136, %v2137
      %v2139 = vsel %vm645, %v2033, 0.0
      %v2140 = vadd.f32 %v2138, %v2139
      %v2141 = vsel %vm645, %v2034, 0.0
      %v2142 = vadd.f32 %v2140, %v2141
      %v2143 = vsel %vm645, %v2035, 0.0
      %v2144 = vadd.f32 %v2142, %v2143
      %v2145 = vsel %vm645, %v2036, 0.0
      %v2146 = vadd.f32 %v2144, %v2145
      %v2147 = vsel %vm645, %v2037, 0.0
      %v2148 = vadd.f32 %v2146, %v2147
      %v2149 = vsel %vm645, %v2038, 0.0
      %v2150 = vadd.f32 %v2148, %v2149
      %v2151 = vrot.slane %v2150, 4
      %v2152 = vadd.f32 %v2150, %v2151
      %v2153 = vrot.slane %v2152, 2
      %v2154 = vadd.f32 %v2152, %v2153
      %v2155 = vrot.slane %v2154, 1
      %v2156 = vadd.f32 %v2154, %v2155
      %v2157 = vadd.f32 %v1209, %v2156
      %v2158 = vmul.f32 %v2023, %v2023
      %v2159 = vmul.f32 %v2024, %v2024
      %v2160 = vmul.f32 %v2025, %v2025
      %v2161 = vmul.f32 %v2026, %v2026
      %v2162 = vmul.f32 %v2027, %v2027
      %v2163 = vmul.f32 %v2028, %v2028
      %v2164 = vmul.f32 %v2029, %v2029
      %v2165 = vmul.f32 %v2030, %v2030
      %v2166 = vmul.f32 %v2031, %v2031
      %v2167 = vmul.f32 %v2032, %v2032
      %v2168 = vmul.f32 %v2033, %v2033
      %v2169 = vmul.f32 %v2034, %v2034
      %v2170 = vmul.f32 %v2035, %v2035
      %v2171 = vmul.f32 %v2036, %v2036
      %v2172 = vmul.f32 %v2037, %v2037
      %v2173 = vmul.f32 %v2038, %v2038
      %v2174 = vsel %vm645, %v2158, 0.0
      %v2175 = vsel %vm645, %v2159, 0.0
      %v2176 = vadd.f32 %v2174, %v2175
      %v2177 = vsel %vm645, %v2160, 0.0
      %v2178 = vadd.f32 %v2176, %v2177
      %v2179 = vsel %vm645, %v2161, 0.0
      %v2180 = vadd.f32 %v2178, %v2179
      %v2181 = vsel %vm645, %v2162, 0.0
      %v2182 = vadd.f32 %v2180, %v2181
      %v2183 = vsel %vm645, %v2163, 0.0
      %v2184 = vadd.f32 %v2182, %v2183
      %v2185 = vsel %vm645, %v2164, 0.0
      %v2186 = vadd.f32 %v2184, %v2185
      %v2187 = vsel %vm645, %v2165, 0.0
      %v2188 = vadd.f32 %v2186, %v2187
      %v2189 = vsel %vm645, %v2166, 0.0
      %v2190 = vadd.f32 %v2188, %v2189
      %v2191 = vsel %vm645, %v2167, 0.0
      %v2192 = vadd.f32 %v2190, %v2191
      %v2193 = vsel %vm645, %v2168, 0.0
      %v2194 = vadd.f32 %v2192, %v2193
      %v2195 = vsel %vm645, %v2169, 0.0
      %v2196 = vadd.f32 %v2194, %v2195
      %v2197 = vsel %vm645, %v2170, 0.0
      %v2198 = vadd.f32 %v2196, %v2197
      %v2199 = vsel %vm645, %v2171, 0.0
      %v2200 = vadd.f32 %v2198, %v2199
      %v2201 = vsel %vm645, %v2172, 0.0
      %v2202 = vadd.f32 %v2200, %v2201
      %v2203 = vsel %vm645, %v2173, 0.0
      %v2204 = vadd.f32 %v2202, %v2203
      %v2205 = vrot.slane %v2204, 4
      %v2206 = vadd.f32 %v2204, %v2205
      %v2207 = vrot.slane %v2206, 2
      %v2208 = vadd.f32 %v2206, %v2207
      %v2209 = vrot.slane %v2208, 1
      %v2210 = vadd.f32 %v2208, %v2209
      %v2211 = vadd.f32 %v1263, %v2210
      %vm2212 = vcmask 1040384
      %v2213 = vsel %vm2212, %v2157, %v2211
      %vm2214 = vcmask 25600
      %2215 = vst.msk [vmem:[%s262] sm:$0x3] %vm2214, %v2213
      %p2216 = scmp.lt.s32.totalorder %s18, 1
      %s2217 = scalar_select %p2216, %s18, 1
      %s2218 = smul.addr %s2217, 32
      %s2219 = smul.addr %s2218, 4
      %s2220 = scalar_lea.vmem %s5, %s2219
      %p2221 = scmp.lt.s32.totalorder %s18, 1
      %s2222 = scalar_select %p2221, %s18, 1
      %s2223 = smul.addr %s2222, 2
      %s2224 = scalar_lea.vmem %s6, %s2223
      // Predicated region
      $region41: #{conv_block_forward.4} parent=39 // pred_check
        %p2225 = pneg %p146
      $region42: #{conv_block_forward.4} parent=39 // pred_check_branch
        %2227 = sbr.rel (%p2225) target = $region44
      $region43: #{conv_block_forward.4} parent=39 // pred_region
        _
      $region44: #{conv_block_forward.4} parent=39 // pred_fallthru
        _
      // Predicated region
      $region45: #{conv_block_forward.4} parent=39 // pred_check
        %p2228 = pneg %p172
      $region46: #{conv_block_forward.4} parent=39 // pred_check_branch
        %2230 = sbr.rel (%p2228) target = $region48
      $region47: #{conv_block_forward.4} parent=39 // pred_region
        _
      $region48: #{conv_block_forward.4} parent=39 // pred_fallthru
        _
    $region40: #{conv_block_forward.4} parent=5 // pred_fallthru
      _
    %p2231 = scmp.le.s32.totalorder 2, %s13
    // Predicated region
    $region49: #{conv_block_forward.4} parent=5 // pred_check
      %p2232 = pneg %p2231
    $region50: #{conv_block_forward.4} parent=5 // pred_check_branch
      %2234 = sbr.rel (%p2232) target = $region52
    $region51: #{conv_block_forward.4} parent=5 // pred_region
      %s2235 = ssub.s32 %s13, 2
      // Predicated region
      $region53: #{conv_block_forward.4} parent=51 // pred_check
        %p2236 = pneg %p152
      $region54: #{conv_block_forward.4} parent=51 // pred_check_branch
        %2238 = sbr.rel (%p2236) target = $region56
      $region55: #{conv_block_forward.4} parent=51 // pred_region
        %p2239 = scmp.lt.s32.totalorder %s19, 1
        %s2240 = scalar_select %p2239, %s19, 1
        %s2241 = smul.addr %s2240, 32
        %s2242 = smul.addr %s2241, 4
        %s2243 = scalar_lea.vmem %s5, %s2242
      $region56: #{conv_block_forward.4} parent=51 // pred_fallthru
        _
      // Predicated region
      $region57: #{conv_block_forward.4} parent=51 // pred_check
        %p2244 = pneg %p178
      $region58: #{conv_block_forward.4} parent=51 // pred_check_branch
        %2246 = sbr.rel (%p2244) target = $region60
      $region59: #{conv_block_forward.4} parent=51 // pred_region
        %p2247 = scmp.lt.s32.totalorder %s19, 1
        %s2248 = scalar_select %p2247, %s19, 1
        %s2249 = smul.addr %s2248, 2
        %s2250 = scalar_lea.vmem %s6, %s2249
      $region60: #{conv_block_forward.4} parent=51 // pred_fallthru
        _
    $region52: #{conv_block_forward.4} parent=5 // pred_fallthru
      _
  $region6: #{conv_block_forward.4} parent=0 // loop_footer
    %s17 = sadd.s32 1, %s13
  $region7: #{conv_block_forward.4} parent=0 // loop_footer_branch
    %12 = sbr.rel target = $region3
  $region8: #{conv_block_forward.4} parent=0 // loop_exit
    _

</llo_original>
